<compile_context>
chip_gen: v5e
topology: v5e:2x2
jax: 0.10.0
libtpu: 0.0.40
codegen_flags: <defaults>
</compile_context>

<pallas_src>
import functools

import jax
import jax.numpy as jnp
from jax.experimental import pallas as pl
from jax.experimental.pallas import tpu as pltpu


def _round_up(x: int, m: int) -> int:
    return (x + m - 1) // m * m


def _default_n_splits() -> int:
    """2 on v7x (2 TensorCores/chip; 'parallel' split shards across them), else 1."""
    try:
        kind = jax.devices()[0].device_kind.lower()
    except Exception:  # pragma: no cover - be conservative if device query fails
        return 1
    return 2 if ("v7" in kind or "tpu7" in kind or "7x" in kind) else 1


def simplenet_kernel(x_ref, w1_ref, b1_ref, w2_ref, b2_ref, w3_ref, b3_ref, o_ref,
                     *, t_total, t_tile, tiles_per_split):
    # x_ref: (t_tile, C_in_pad) bf16    w1: (C_in_pad, C_out_pad) bf16   b1: (1, C_out_pad) f32
    # w2: (C_out_pad, H_pad) bf16  b2: (1, H_pad) f32
    # w3: (H_pad, C_out_pad) bf16  b3: (1, C_out_pad) f32
    # o_ref: (1, C_out_pad) f32 — per-split running row-sum (output-resident accumulator)
    c = pl.program_id(0)   # split across cores ("parallel")
    t = pl.program_id(1)   # frame tiles within a split ("arbitrary" reduction axis)

    # Zero-init must stay OUTSIDE the tile-skip guard: a split whose first tile is all
    # padding still needs a defined (zero) partial sum.
    @pl.when(t == 0)
    def _():
        o_ref[...] = jnp.zeros_like(o_ref)

    row_start = (c * tiles_per_split + t) * t_tile

    # Skip all-padding tiles entirely (short sequences / leftover split): no DMA'd zeros
    # get multiplied, the ~1 GFLOP of MXU work per padded tile disappears.
    @pl.when(row_start < t_total)
    def _():
        x = x_ref[...]                                                       # bf16

        # conv1 (1x1) -> per-frame linear; residual branch kept in f32.
        h1 = jnp.dot(x, w1_ref[...], preferred_element_type=jnp.float32) + b1_ref[...]

        # relu -> conv2 -> relu -> conv3 (second/third-layer branch).
        y = jnp.maximum(h1, 0.0).astype(jnp.bfloat16)
        y = jnp.dot(y, w2_ref[...], preferred_element_type=jnp.float32) + b2_ref[...]
        y = jnp.maximum(y, 0.0).astype(jnp.bfloat16)
        y = jnp.dot(y, w3_ref[...], preferred_element_type=jnp.float32) + b3_ref[...]

        s = h1 + y                                                           # (t_tile, C_out_pad) f32

        # Interior tiles: plain row-sum. Boundary tile: mask padded frames first
        # (a zero-padded row would otherwise still contribute b1 + MLP(b1)).
        @pl.when(row_start + t_tile <= t_total)
        def _():
            o_ref[...] += jnp.sum(s, axis=0, keepdims=True)

        @pl.when(row_start + t_tile > t_total)
        def _():
            row_ids = row_start + jax.lax.broadcasted_iota(jnp.int32, s.shape, 0)
            s_m = jnp.where(row_ids < t_total, s, 0.0)
            o_ref[...] += jnp.sum(s_m, axis=0, keepdims=True)


@functools.partial(jax.jit,
                   static_argnames=("nr_inputs", "nr_outputs", "t_tile", "n_splits"))
def simplenet_forward(x, kernel_params, *, nr_inputs, nr_outputs, t_tile=1024, n_splits=1):
    """x: any shape whose total size is a multiple of nr_inputs (as in the torch module).
    kernel_params: padded/bf16 params from prepare_kernel_params()."""
    w1, b1, w2, b2, w3, b3 = kernel_params
    c_in_pad, c_out_pad = w1.shape
    hid_pad = w2.shape[1]

    # Glue: equivalent of x.view(1, -1, nr_inputs).transpose(1, 2), kept frame-major (T, C_in).
    # Cast to bf16 BEFORE padding so the materialized copy (and the kernel's HBM stream)
    # is half-width.
    x2d = x.reshape(-1, nr_inputs).astype(jnp.bfloat16)
    T = x2d.shape[0]

    # Frame tiling: multiple of 16 sublanes (bf16 (16,128) pack rule), never bigger than
    # the rounded-up T.
    t_tile = max(16, min(_round_up(t_tile, 16), _round_up(T, 16)))
    tiles_per_split = max(1, pl.cdiv(T, n_splits * t_tile))
    t_pad = n_splits * tiles_per_split * t_tile

    # Zero-pad frames (masked / skipped in-kernel) and channels (numerically exact).
    # TODO(synk): for repeated large-T calls, keep x pre-padded upstream in (T, c_in_pad)
    #             bf16 so this jnp.pad HBM round-trip disappears entirely.
    x_pad = jnp.pad(x2d, ((0, t_pad - T), (0, c_in_pad - nr_inputs)))

    kernel = functools.partial(simplenet_kernel, t_total=T, t_tile=t_tile,
                               tiles_per_split=tiles_per_split)

    weight_bytes = 2 * (c_in_pad * c_out_pad + c_out_pad * hid_pad + hid_pad * c_out_pad)
    flops = 2 * t_pad * (c_in_pad * c_out_pad + c_out_pad * hid_pad + hid_pad * c_out_pad)

    partial_sums = pl.pallas_call(
        kernel,
        out_shape=jax.ShapeDtypeStruct((n_splits, 1, c_out_pad), jnp.float32),
        grid=(n_splits, tiles_per_split),
        in_specs=[
            pl.BlockSpec((t_tile, c_in_pad),
                         lambda c, t: (c * tiles_per_split + t, 0)),
            pl.BlockSpec((c_in_pad, c_out_pad), lambda c, t: (0, 0)),   # w1 (VMEM-resident)
            pl.BlockSpec((1, c_out_pad), lambda c, t: (0, 0)),          # b1
            pl.BlockSpec((c_out_pad, hid_pad), lambda c, t: (0, 0)),    # w2
            pl.BlockSpec((1, hid_pad), lambda c, t: (0, 0)),            # b2
            pl.BlockSpec((hid_pad, c_out_pad), lambda c, t: (0, 0)),    # w3
            pl.BlockSpec((1, c_out_pad), lambda c, t: (0, 0)),          # b3
        ],
        out_specs=pl.BlockSpec((None, 1, c_out_pad), lambda c, t: (c, 0, 0)),
        compiler_params=pltpu.CompilerParams(
            dimension_semantics=("parallel", "arbitrary"),
            vmem_limit_bytes=48 * 1024 * 1024),
        cost_estimate=pl.CostEstimate(
            flops=flops,
            transcendentals=0,
            # bf16 x stream + resident bf16 weights + f32 partial-sum writebacks.
            bytes_accessed=t_pad * c_in_pad * 2 + weight_bytes
                           + n_splits * c_out_pad * 4),
    )(x_pad, w1, b1, w2, b2, w3, b3)

    # Combine per-split partial sums, apply the single 1/T scale, drop channel padding.
    out = jnp.sum(partial_sums, axis=0) * (1.0 / T)       # (1, C_out_pad)
    return out[:, :nr_outputs]                            # (1, nr_outputs)


def init_params(key, nr_inputs, nr_outputs, hidden):
    """Deterministic f32 init mimicking PyTorch Conv1d default (uniform +/- 1/sqrt(fan_in)).
    Weights are stored transposed relative to torch's (out, in, 1): here (in, out)."""
    ks = jax.random.split(key, 6)

    def u(k, shape, fan_in):
        bound = 1.0 / jnp.sqrt(float(fan_in))
        return jax.random.uniform(k, shape, jnp.float32, -bound, bound)

    w1 = u(ks[0], (nr_inputs, nr_outputs), nr_inputs)
    b1 = u(ks[1], (1, nr_outputs), nr_inputs)
    w2 = u(ks[2], (nr_outputs, hidden), nr_outputs)
    b2 = u(ks[3], (1, hidden), nr_outputs)
    w3 = u(ks[4], (hidden, nr_outputs), hidden)
    b3 = u(ks[5], (1, nr_outputs), hidden)
    return (w1, b1, w2, b2, w3, b3)


def prepare_kernel_params(params):
    """Zero-pad channel dims to lane multiples (128) and cast weights to bf16 (biases f32)."""
    w1, b1, w2, b2, w3, b3 = params
    c_in, c_out = w1.shape
    hid = w2.shape[1]
    c_in_p, c_out_p, hid_p = _round_up(c_in, 128), _round_up(c_out, 128), _round_up(hid, 128)

    def pad2(a, rows, cols):
        return jnp.pad(a, ((0, rows - a.shape[0]), (0, cols - a.shape[1])))

    return (pad2(w1, c_in_p, c_out_p).astype(jnp.bfloat16),
            pad2(b1, 1, c_out_p),
            pad2(w2, c_out_p, hid_p).astype(jnp.bfloat16),
            pad2(b2, 1, hid_p),
            pad2(w3, hid_p, c_out_p).astype(jnp.bfloat16),
            pad2(b3, 1, c_out_p))


def reference_forward(x, params, nr_inputs):
    """Pure-JAX reference replicating the torch forward with the kernel's numerics
    (bf16 matmul inputs, f32 accumulation), for verification."""
    w1, b1, w2, b2, w3, b3 = params
    xf = x.reshape(-1, nr_inputs).astype(jnp.bfloat16)
    h1 = jnp.dot(xf, w1.astype(jnp.bfloat16), preferred_element_type=jnp.float32) + b1
    y = jnp.maximum(h1, 0.0).astype(jnp.bfloat16)
    y = jnp.dot(y, w2.astype(jnp.bfloat16), preferred_element_type=jnp.float32) + b2
    y = jnp.maximum(y, 0.0).astype(jnp.bfloat16)
    y = jnp.dot(y, w3.astype(jnp.bfloat16), preferred_element_type=jnp.float32) + b3
    return jnp.mean(h1 + y, axis=0, keepdims=True)


if __name__ == "__main__":
    # Module defaults: nr_inputs = 543*3 = 1629, nr_outputs = 250, hidden = 1000.
    NR_INPUTS = 543 * 3
    NR_OUTPUTS = 250
    HIDDEN = 1000
    FRAMES = 8  # small sequence of frames

    key = jax.random.PRNGKey(0)
    k_x, k_p = jax.random.split(key)

    # (frames, 543 landmarks, 3 coords); view(1, -1, 1629) in torch gives T=8 frames.
    x = jax.random.normal(k_x, (FRAMES, 543, 3), dtype=jnp.float32)
    params = init_params(k_p, NR_INPUTS, NR_OUTPUTS, HIDDEN)
    kparams = prepare_kernel_params(params)

    n_splits = _default_n_splits()   # 2 on v7x (2 TCs), 1 on v5e/v6e
    out = simplenet_forward(x, kparams, nr_inputs=NR_INPUTS, nr_outputs=NR_OUTPUTS,
                            n_splits=n_splits)
    out = jax.block_until_ready(out)

    ref = reference_forward(x, params, NR_INPUTS)
    assert out.shape == (1, NR_OUTPUTS), out.shape
    assert jnp.allclose(out, ref, atol=1e-2, rtol=1e-2), "mismatch vs JAX reference"

    print("KERNEL_OK")
</pallas_src>

<mosaic_0001>
module attributes {stable_mosaic.version = 11 : i64} {
  func.func @simplenet_kernel(%arg0: i32, %arg1: i32, %arg2: memref<16x1664xbf16, #tpu.memory_space<vmem>>, %arg3: memref<1664x256xbf16, #tpu.memory_space<vmem>>, %arg4: memref<1x256xf32, #tpu.memory_space<vmem>>, %arg5: memref<256x1024xbf16, #tpu.memory_space<vmem>>, %arg6: memref<1x1024xf32, #tpu.memory_space<vmem>>, %arg7: memref<1024x256xbf16, #tpu.memory_space<vmem>>, %arg8: memref<1x256xf32, #tpu.memory_space<vmem>>, %arg9: memref<1x1x256xf32, #tpu.memory_space<vmem>>) attributes {dimension_semantics = [#tpu.dimension_semantics<parallel>, #tpu.dimension_semantics<arbitrary>], iteration_bounds = array<i64: 1, 1>, scalar_prefetch = 0 : i64, scratch_operands = 0 : i64, tpu.core_type = #tpu.core_type<tc>, window_params = [{transform_indices = @transform_0, window_bounds = array<i64: 16, 1664>}, {pipeline_mode = #tpu.pipeline_mode<synchronous>, transform_indices = @transform_1, window_bounds = array<i64: 1664, 256>}, {pipeline_mode = #tpu.pipeline_mode<synchronous>, transform_indices = @transform_2, window_bounds = array<i64: 1, 256>}, {pipeline_mode = #tpu.pipeline_mode<synchronous>, transform_indices = @transform_3, window_bounds = array<i64: 256, 1024>}, {pipeline_mode = #tpu.pipeline_mode<synchronous>, transform_indices = @transform_4, window_bounds = array<i64: 1, 1024>}, {pipeline_mode = #tpu.pipeline_mode<synchronous>, transform_indices = @transform_5, window_bounds = array<i64: 1024, 256>}, {pipeline_mode = #tpu.pipeline_mode<synchronous>, transform_indices = @transform_6, window_bounds = array<i64: 1, 256>}, {transform_indices = @transform_7, window_bounds = array<i64: 1, 1, 256>}]} {
    %c0_i32 = arith.constant 0 : i32
    %0 = arith.cmpi eq, %arg1, %c0_i32 : i32
    %1 = arith.extui %0 : i1 to i32
    %c0_i32_0 = arith.constant 0 : i32
    %2 = arith.cmpi ne, %1, %c0_i32_0 : i32
    scf.if %2 {
      %cst = arith.constant 0.000000e+00 : f32
      %9 = vector.broadcast %cst : f32 to vector<1x256xf32>
      %c0 = arith.constant 0 : index
      %c0_2 = arith.constant 0 : index
      %c0_3 = arith.constant 0 : index
      %10 = vector.load %arg9[%c0, %c0_2, %c0_3] : memref<1x1x256xf32, #tpu.memory_space<vmem>>, vector<1x1x256xf32>
      %11 = vector.shape_cast %10 : vector<1x1x256xf32> to vector<1x256xf32>
      %12 = vector.shape_cast %9 : vector<1x256xf32> to vector<1x1x256xf32>
      tpu.vector_store %arg9[%c0, %c0_2, %c0_3], %12 {strides = array<i32>} : memref<1x1x256xf32, #tpu.memory_space<vmem>>, vector<1x1x256xf32>,
    } else {
    }
    %c1_i32 = arith.constant 1 : i32
    %3 = arith.muli %arg0, %c1_i32 : i32
    %4 = arith.addi %3, %arg1 : i32
    %c16_i32 = arith.constant 16 : i32
    %5 = arith.muli %4, %c16_i32 : i32
    %c8_i32 = arith.constant 8 : i32
    %6 = arith.cmpi slt, %5, %c8_i32 : i32
    %7 = arith.extui %6 : i1 to i32
    %c0_i32_1 = arith.constant 0 : i32
    %8 = arith.cmpi ne, %7, %c0_i32_1 : i32
    scf.if %8 {
      %c0 = arith.constant 0 : index
      %c0_2 = arith.constant 0 : index
      %9 = vector.load %arg2[%c0, %c0_2] : memref<16x1664xbf16, #tpu.memory_space<vmem>>, vector<16x1664xbf16>
      %c0_3 = arith.constant 0 : index
      %c0_4 = arith.constant 0 : index
      %10 = vector.load %arg3[%c0_3, %c0_4] : memref<1664x256xbf16, #tpu.memory_space<vmem>>, vector<1664x256xbf16>
      %cst = arith.constant dense<0.000000e+00> : vector<16x256xf32>
      %11 = tpu.matmul %9, %10, %cst {dimension_numbers = #tpu.dot_dimension_numbers<[1], [0], [0], [1], [0, 0, 1, 1], [], []>} : vector<16x1664xbf16>, vector<1664x256xbf16>, vector<16x256xf32> -> vector<16x256xf32>
      %c0_5 = arith.constant 0 : index
      %c0_6 = arith.constant 0 : index
      %12 = vector.load %arg4[%c0_5, %c0_6] : memref<1x256xf32, #tpu.memory_space<vmem>>, vector<1x256xf32>
      %13 = vector.broadcast %12 : vector<1x256xf32> to vector<16x256xf32>
      %14 = arith.addf %11, %13 : vector<16x256xf32>
      %cst_7 = arith.constant 0.000000e+00 : f32
      %15 = vector.broadcast %cst_7 : f32 to vector<16x256xf32>
      %16 = arith.maximumf %14, %15 : vector<16x256xf32>
      %17 = arith.truncf %16 : vector<16x256xf32> to vector<16x256xbf16>
      %c0_8 = arith.constant 0 : index
      %c0_9 = arith.constant 0 : index
      %18 = vector.load %arg5[%c0_8, %c0_9] : memref<256x1024xbf16, #tpu.memory_space<vmem>>, vector<256x1024xbf16>
      %cst_10 = arith.constant dense<0.000000e+00> : vector<16x1024xf32>
      %19 = tpu.matmul %17, %18, %cst_10 {dimension_numbers = #tpu.dot_dimension_numbers<[1], [0], [0], [1], [0, 0, 1, 1], [], []>} : vector<16x256xbf16>, vector<256x1024xbf16>, vector<16x1024xf32> -> vector<16x1024xf32>
      %c0_11 = arith.constant 0 : index
      %c0_12 = arith.constant 0 : index
      %20 = vector.load %arg6[%c0_11, %c0_12] : memref<1x1024xf32, #tpu.memory_space<vmem>>, vector<1x1024xf32>
      %21 = vector.broadcast %20 : vector<1x1024xf32> to vector<16x1024xf32>
      %22 = arith.addf %19, %21 : vector<16x1024xf32>
      %cst_13 = arith.constant 0.000000e+00 : f32
      %23 = vector.broadcast %cst_13 : f32 to vector<16x1024xf32>
      %24 = arith.maximumf %22, %23 : vector<16x1024xf32>
      %25 = arith.truncf %24 : vector<16x1024xf32> to vector<16x1024xbf16>
      %c0_14 = arith.constant 0 : index
      %c0_15 = arith.constant 0 : index
      %26 = vector.load %arg7[%c0_14, %c0_15] : memref<1024x256xbf16, #tpu.memory_space<vmem>>, vector<1024x256xbf16>
      %cst_16 = arith.constant dense<0.000000e+00> : vector<16x256xf32>
      %27 = tpu.matmul %25, %26, %cst_16 {dimension_numbers = #tpu.dot_dimension_numbers<[1], [0], [0], [1], [0, 0, 1, 1], [], []>} : vector<16x1024xbf16>, vector<1024x256xbf16>, vector<16x256xf32> -> vector<16x256xf32>
      %c0_17 = arith.constant 0 : index
      %c0_18 = arith.constant 0 : index
      %28 = vector.load %arg8[%c0_17, %c0_18] : memref<1x256xf32, #tpu.memory_space<vmem>>, vector<1x256xf32>
      %29 = vector.broadcast %28 : vector<1x256xf32> to vector<16x256xf32>
      %30 = arith.addf %27, %29 : vector<16x256xf32>
      %31 = arith.addf %14, %30 : vector<16x256xf32>
      %c16_i32_19 = arith.constant 16 : i32
      %32 = arith.addi %5, %c16_i32_19 : i32
      %c8_i32_20 = arith.constant 8 : i32
      %33 = arith.cmpi sle, %32, %c8_i32_20 : i32
      %34 = arith.extui %33 : i1 to i32
      %c0_i32_21 = arith.constant 0 : i32
      %35 = arith.cmpi ne, %34, %c0_i32_21 : i32
      scf.if %35 {
        %c0_25 = arith.constant 0 : index
        %c0_26 = arith.constant 0 : index
        %c0_27 = arith.constant 0 : index
        %40 = vector.load %arg9[%c0_25, %c0_26, %c0_27] : memref<1x1x256xf32, #tpu.memory_space<vmem>>, vector<1x1x256xf32>
        %41 = vector.shape_cast %40 : vector<1x1x256xf32> to vector<1x256xf32>
        %cst_28 = arith.constant dense<0.000000e+00> : vector<256xf32>
        %42 = vector.multi_reduction <add>, %31, %cst_28 [0] : vector<16x256xf32> to vector<256xf32>
        %43 = vector.shape_cast %42 : vector<256xf32> to vector<1x256xf32>
        %44 = arith.addf %41, %43 : vector<1x256xf32>
        %c0_29 = arith.constant 0 : index
        %c0_30 = arith.constant 0 : index
        %c0_31 = arith.constant 0 : index
        %45 = vector.load %arg9[%c0_29, %c0_30, %c0_31] : memref<1x1x256xf32, #tpu.memory_space<vmem>>, vector<1x1x256xf32>
        %46 = vector.shape_cast %45 : vector<1x1x256xf32> to vector<1x256xf32>
        %47 = vector.shape_cast %44 : vector<1x256xf32> to vector<1x1x256xf32>
        tpu.vector_store %arg9[%c0_29, %c0_30, %c0_31], %47 {strides = array<i32>} : memref<1x1x256xf32, #tpu.memory_space<vmem>>, vector<1x1x256xf32>,
      } else {
      }
      %c16_i32_22 = arith.constant 16 : i32
      %36 = arith.addi %5, %c16_i32_22 : i32
      %c8_i32_23 = arith.constant 8 : i32
      %37 = arith.cmpi sgt, %36, %c8_i32_23 : i32
      %38 = arith.extui %37 : i1 to i32
      %c0_i32_24 = arith.constant 0 : i32
      %39 = arith.cmpi ne, %38, %c0_i32_24 : i32
      scf.if %39 {
        %40 = tpu.iota {dimensions = array<i32: 0>} : vector<16x256xi32>
        %41 = vector.broadcast %5 : i32 to vector<16x256xi32>
        %42 = arith.addi %41, %40 : vector<16x256xi32>
        %c8_i32_25 = arith.constant 8 : i32
        %43 = vector.broadcast %c8_i32_25 : i32 to vector<16x256xi32>
        %44 = arith.cmpi slt, %42, %43 : vector<16x256xi32>
        %cst_26 = arith.constant 0.000000e+00 : f32
        %45 = vector.broadcast %cst_26 : f32 to vector<16x256xf32>
        %46 = arith.select %44, %31, %45 : vector<16x256xi1>, vector<16x256xf32>
        %c0_27 = arith.constant 0 : index
        %c0_28 = arith.constant 0 : index
        %c0_29 = arith.constant 0 : index
        %47 = vector.load %arg9[%c0_27, %c0_28, %c0_29] : memref<1x1x256xf32, #tpu.memory_space<vmem>>, vector<1x1x256xf32>
        %48 = vector.shape_cast %47 : vector<1x1x256xf32> to vector<1x256xf32>
        %cst_30 = arith.constant dense<0.000000e+00> : vector<256xf32>
        %49 = vector.multi_reduction <add>, %46, %cst_30 [0] : vector<16x256xf32> to vector<256xf32>
        %50 = vector.shape_cast %49 : vector<256xf32> to vector<1x256xf32>
        %51 = arith.addf %48, %50 : vector<1x256xf32>
        %c0_31 = arith.constant 0 : index
        %c0_32 = arith.constant 0 : index
        %c0_33 = arith.constant 0 : index
        %52 = vector.load %arg9[%c0_31, %c0_32, %c0_33] : memref<1x1x256xf32, #tpu.memory_space<vmem>>, vector<1x1x256xf32>
        %53 = vector.shape_cast %52 : vector<1x1x256xf32> to vector<1x256xf32>
        %54 = vector.shape_cast %51 : vector<1x256xf32> to vector<1x1x256xf32>
        tpu.vector_store %arg9[%c0_31, %c0_32, %c0_33], %54 {strides = array<i32>} : memref<1x1x256xf32, #tpu.memory_space<vmem>>, vector<1x1x256xf32>,
      } else {
      }
    } else {
    }
    return
  }
  func.func @transform_0(%arg0: i32, %arg1: i32) -> (i32, i32) {
    %c1_i32 = arith.constant 1 : i32
    %0 = arith.muli %arg0, %c1_i32 : i32
    %1 = arith.addi %0, %arg1 : i32
    %c0_i32 = arith.constant 0 : i32
    %c0_i32_0 = arith.constant 0 : i32
    return %1, %c0_i32 : i32, i32
  }
  func.func @transform_1(%arg0: i32, %arg1: i32) -> (i32, i32) {
    %c0_i32 = arith.constant 0 : i32
    %c0_i32_0 = arith.constant 0 : i32
    %c0_i32_1 = arith.constant 0 : i32
    return %c0_i32, %c0_i32_0 : i32, i32
  }
  func.func @transform_2(%arg0: i32, %arg1: i32) -> (i32, i32) {
    %c0_i32 = arith.constant 0 : i32
    %c0_i32_0 = arith.constant 0 : i32
    %c0_i32_1 = arith.constant 0 : i32
    return %c0_i32, %c0_i32_0 : i32, i32
  }
  func.func @transform_3(%arg0: i32, %arg1: i32) -> (i32, i32) {
    %c0_i32 = arith.constant 0 : i32
    %c0_i32_0 = arith.constant 0 : i32
    %c0_i32_1 = arith.constant 0 : i32
    return %c0_i32, %c0_i32_0 : i32, i32
  }
  func.func @transform_4(%arg0: i32, %arg1: i32) -> (i32, i32) {
    %c0_i32 = arith.constant 0 : i32
    %c0_i32_0 = arith.constant 0 : i32
    %c0_i32_1 = arith.constant 0 : i32
    return %c0_i32, %c0_i32_0 : i32, i32
  }
  func.func @transform_5(%arg0: i32, %arg1: i32) -> (i32, i32) {
    %c0_i32 = arith.constant 0 : i32
    %c0_i32_0 = arith.constant 0 : i32
    %c0_i32_1 = arith.constant 0 : i32
    return %c0_i32, %c0_i32_0 : i32, i32
  }
  func.func @transform_6(%arg0: i32, %arg1: i32) -> (i32, i32) {
    %c0_i32 = arith.constant 0 : i32
    %c0_i32_0 = arith.constant 0 : i32
    %c0_i32_1 = arith.constant 0 : i32
    return %c0_i32, %c0_i32_0 : i32, i32
  }
  func.func @transform_7(%arg0: i32, %arg1: i32) -> (i32, i32, i32) {
    %c0_i32 = arith.constant 0 : i32
    %c0_i32_0 = arith.constant 0 : i32
    %c0_i32_1 = arith.constant 0 : i32
    return %arg0, %c0_i32, %c0_i32_0 : i32, i32, i32
  }
}

</mosaic_0001>

<llo_original>
// kernel: simplenet_forward.1
$region0: #{simplenet_forward.1}
  #allocation0 [shape = 'u32[]', space=smem, size = 0x4, offset = 0x4, fixed_abs, tag = 'smem constant byte address 0x4 - core index']
  #allocation1 [shape = 'u32[72,128]{1,0:T(1,128)}', space=vmem, size = 0x9000, scoped, tag = 'internal scratch']
  %s0 = inlined_call_operand.vmem [shape: bf16[16,1664], index: 0, kind: input, shape index: {}]
  %s1 = inlined_call_operand.vmem [shape: bf16[1664,256], index: 1, kind: input, shape index: {}]
  %s2 = inlined_call_operand.vmem [shape: f32[1,256], index: 2, kind: input, shape index: {}]
  %s3 = inlined_call_operand.vmem [shape: bf16[256,1024], index: 3, kind: input, shape index: {}]
  %s4 = inlined_call_operand.vmem [shape: f32[1,1024], index: 4, kind: input, shape index: {}]
  %s5 = inlined_call_operand.vmem [shape: bf16[1024,256], index: 5, kind: input, shape index: {}]
  %s6 = inlined_call_operand.vmem [shape: f32[1,256], index: 6, kind: input, shape index: {}]
  %s7 = inlined_call_operand.vmem [shape: f32[1,1,256], index: 7, kind: output, shape index: {}]
  %s8 = sld [smem:[#allocation0]]
  $region54: #{simplenet_forward.1} parent=0
    _
  %s10 = ssub.s32 1, %s8
  %s11 = scalar_select 0, %s10, %s8
  // Predicated region
  $region2: #{simplenet_forward.1} parent=0 // pred_check
    _
  $region3: #{simplenet_forward.1} parent=0 // pred_check_branch
    %13 = sbr.rel (0) target = $region5
  $region4: #{simplenet_forward.1} parent=0 // pred_region
    %s14 = sadd.s32 0, 0
    %s15 = smul.u32 2, %s14
    %p16 = scmp.lt.s32.totalorder %s15, 1
    %s17 = scalar_select %p16, %s15, 1
    %s18 = smul.addr %s17, 13
    %s19 = smul.addr %s18, 4
    %s20 = scalar_lea.vmem %s0, %s19
    %s21 = sadd.s32 0, 0
    %s22 = smul.u32 2, %s21
  $region5: #{simplenet_forward.1} parent=0 // pred_fallthru
    _
  // Predicated region
  $region6: #{simplenet_forward.1} parent=0 // pred_check
    _
  $region7: #{simplenet_forward.1} parent=0 // pred_check_branch
    %24 = sbr.rel (0) target = $region9
  $region8: #{simplenet_forward.1} parent=0 // pred_region
    _
  $region9: #{simplenet_forward.1} parent=0 // pred_fallthru
    _
  // Predicated region
  $region10: #{simplenet_forward.1} parent=0 // pred_check
    _
  $region11: #{simplenet_forward.1} parent=0 // pred_check_branch
    %26 = sbr.rel (0) target = $region13
  $region12: #{simplenet_forward.1} parent=0 // pred_region
    _
  $region13: #{simplenet_forward.1} parent=0 // pred_fallthru
    _
  // Predicated region
  $region14: #{simplenet_forward.1} parent=0 // pred_check
    _
  $region15: #{simplenet_forward.1} parent=0 // pred_check_branch
    %28 = sbr.rel (0) target = $region17
  $region16: #{simplenet_forward.1} parent=0 // pred_region
    _
  $region17: #{simplenet_forward.1} parent=0 // pred_fallthru
    _
  // Predicated region
  $region18: #{simplenet_forward.1} parent=0 // pred_check
    _
  $region19: #{simplenet_forward.1} parent=0 // pred_check_branch
    %30 = sbr.rel (0) target = $region21
  $region20: #{simplenet_forward.1} parent=0 // pred_region
    _
  $region21: #{simplenet_forward.1} parent=0 // pred_fallthru
    _
  // Predicated region
  $region22: #{simplenet_forward.1} parent=0 // pred_check
    _
  $region23: #{simplenet_forward.1} parent=0 // pred_check_branch
    %32 = sbr.rel (0) target = $region25
  $region24: #{simplenet_forward.1} parent=0 // pred_region
    _
  $region25: #{simplenet_forward.1} parent=0 // pred_fallthru
    _
  // Predicated region
  $region26: #{simplenet_forward.1} parent=0 // pred_check
    _
  $region27: #{simplenet_forward.1} parent=0 // pred_check_branch
    %34 = sbr.rel (0) target = $region29
  $region28: #{simplenet_forward.1} parent=0 // pred_region
    _
  $region29: #{simplenet_forward.1} parent=0 // pred_fallthru
    _
  %s35 = sadd.s32 0, 0
  %s36 = smul.u32 2, %s35
  %p37 = scmp.lt.s32.totalorder %s36, 1
  %s38 = scalar_select %p37, %s36, 1
  %s39 = smul.addr %s38, 13
  %s40 = smul.addr %s39, 4
  %s41 = scalar_lea.vmem %s0, %s40
  %s42 = sadd.s32 0, 0
  %s43 = smul.u32 2, %s42
  %p44 = scmp.lt.s32.totalorder %s43, 1
  %s45 = scalar_select %p44, %s43, 1
  %s46 = smul.addr %s45, 13
  %s47 = smul.addr %s46, 4
  %s48 = scalar_lea.vmem %s0, %s47
  %s49 = sadd.s32 0, 0
  %s50 = smul.u32 2, %s49
  %p51 = scmp.eq.s32.totalorder 0, 0
  // Predicated region
  $region30: #{simplenet_forward.1} parent=0 // pred_check
    %p52 = pneg %p51
  $region31: #{simplenet_forward.1} parent=0 // pred_check_branch
    %54 = sbr.rel (%p52) target = $region33
  $region32: #{simplenet_forward.1} parent=0 // pred_region
    %v55 = vlaneseq
    %vm56 = vcmp.ge.s32.totalorder %v55, 0
    %vm57 = vcmp.lt.s32.totalorder %v55, 256
    %vm58 = vmand %vm56, %vm57
    %59 = vst.msk [vmem:[%s7] sm:$0x3] %vm58, 0.0
  $region33: #{simplenet_forward.1} parent=0 // pred_fallthru
    _
  %s60 = sadd.s32 0, 0
  %s61 = smul.u32 %s60, 16
  %p62 = scmp.lt.s32.totalorder %s61, 8
  // Predicated region
  $region34: #{simplenet_forward.1} parent=0 // pred_check
    %p63 = pneg %p62
  $region35: #{simplenet_forward.1} parent=0 // pred_check_branch
    %65 = sbr.rel (%p63) target = $region37
  $region36: #{simplenet_forward.1} parent=0 // pred_region
    %v66 = vld [vmem:[%s48] sm:$0xff]
    %v67 = vld [vmem:[%s48 + $0x8] sm:$0xff]
    %v68 = vld [vmem:[%s48 + $0x10] sm:$0xff]
    %v69 = vld [vmem:[%s48 + $0x18] sm:$0xff]
    %v70 = vld [vmem:[%s48 + $0x20] sm:$0xff]
    %v71 = vld [vmem:[%s48 + $0x28] sm:$0xff]
    %v72 = vld [vmem:[%s48 + $0x30] sm:$0xf]
    %v73 = vld [vmem:[%s48 + $0x34] sm:$0xff]
    %v74 = vld [vmem:[%s48 + $0x3c] sm:$0xff]
    %v75 = vld [vmem:[%s48 + $0x44] sm:$0xff]
    %v76 = vld [vmem:[%s48 + $0x4c] sm:$0xff]
    %v77 = vld [vmem:[%s48 + $0x54] sm:$0xff]
    %v78 = vld [vmem:[%s48 + $0x5c] sm:$0xff]
    %v79 = vld [vmem:[%s48 + $0x64] sm:$0xf]
    %v80 = vld [vmem:[%s1] sm:$0xff]
    %v81 = vld [vmem:[%s1 + $0x8] sm:$0xff]
    %v82 = vld [vmem:[%s1 + $0x10] sm:$0xff]
    %v83 = vld [vmem:[%s1 + $0x18] sm:$0xff]
    %v84 = vld [vmem:[%s1 + $0x20] sm:$0xff]
    %v85 = vld [vmem:[%s1 + $0x28] sm:$0xff]
    %v86 = vld [vmem:[%s1 + $0x30] sm:$0xff]
    %v87 = vld [vmem:[%s1 + $0x38] sm:$0xff]
    %v88 = vld [vmem:[%s1 + $0x40] sm:$0xff]
    %v89 = vld [vmem:[%s1 + $0x48] sm:$0xff]
    %v90 = vld [vmem:[%s1 + $0x50] sm:$0xff]
    %v91 = vld [vmem:[%s1 + $0x58] sm:$0xff]
    %v92 = vld [vmem:[%s1 + $0x60] sm:$0xff]
    %v93 = vld [vmem:[%s1 + $0x68] sm:$0xff]
    %v94 = vld [vmem:[%s1 + $0x70] sm:$0xff]
    %v95 = vld [vmem:[%s1 + $0x78] sm:$0xff]
    %v96 = vld [vmem:[%s1 + $0x80] sm:$0xff]
    %v97 = vld [vmem:[%s1 + $0x88] sm:$0xff]
    %v98 = vld [vmem:[%s1 + $0x90] sm:$0xff]
    %v99 = vld [vmem:[%s1 + $0x98] sm:$0xff]
    %v100 = vld [vmem:[%s1 + $0xa0] sm:$0xff]
    %v101 = vld [vmem:[%s1 + $0xa8] sm:$0xff]
    %v102 = vld [vmem:[%s1 + $0xb0] sm:$0xff]
    %v103 = vld [vmem:[%s1 + $0xb8] sm:$0xff]
    %v104 = vld [vmem:[%s1 + $0xc0] sm:$0xff]
    %v105 = vld [vmem:[%s1 + $0xc8] sm:$0xff]
    %v106 = vld [vmem:[%s1 + $0xd0] sm:$0xff]
    %v107 = vld [vmem:[%s1 + $0xd8] sm:$0xff]
    %v108 = vld [vmem:[%s1 + $0xe0] sm:$0xff]
    %v109 = vld [vmem:[%s1 + $0xe8] sm:$0xff]
    %v110 = vld [vmem:[%s1 + $0xf0] sm:$0xff]
    %v111 = vld [vmem:[%s1 + $0xf8] sm:$0xff]
    %v112 = vld [vmem:[%s1 + $0x100] sm:$0xff]
    %v113 = vld [vmem:[%s1 + $0x108] sm:$0xff]
    %v114 = vld [vmem:[%s1 + $0x110] sm:$0xff]
    %v115 = vld [vmem:[%s1 + $0x118] sm:$0xff]
    %v116 = vld [vmem:[%s1 + $0x120] sm:$0xff]
    %v117 = vld [vmem:[%s1 + $0x128] sm:$0xff]
    %v118 = vld [vmem:[%s1 + $0x130] sm:$0xff]
    %v119 = vld [vmem:[%s1 + $0x138] sm:$0xff]
    %v120 = vld [vmem:[%s1 + $0x140] sm:$0xff]
    %v121 = vld [vmem:[%s1 + $0x148] sm:$0xff]
    %v122 = vld [vmem:[%s1 + $0x150] sm:$0xff]
    %v123 = vld [vmem:[%s1 + $0x158] sm:$0xff]
    %v124 = vld [vmem:[%s1 + $0x160] sm:$0xff]
    %v125 = vld [vmem:[%s1 + $0x168] sm:$0xff]
    %v126 = vld [vmem:[%s1 + $0x170] sm:$0xff]
    %v127 = vld [vmem:[%s1 + $0x178] sm:$0xff]
    %v128 = vld [vmem:[%s1 + $0x180] sm:$0xff]
    %v129 = vld [vmem:[%s1 + $0x188] sm:$0xff]
    %v130 = vld [vmem:[%s1 + $0x190] sm:$0xff]
    %v131 = vld [vmem:[%s1 + $0x198] sm:$0xff]
    %v132 = vld [vmem:[%s1 + $0x1a0] sm:$0xff]
    %v133 = vld [vmem:[%s1 + $0x1a8] sm:$0xff]
    %v134 = vld [vmem:[%s1 + $0x1b0] sm:$0xff]
    %v135 = vld [vmem:[%s1 + $0x1b8] sm:$0xff]
    %v136 = vld [vmem:[%s1 + $0x1c0] sm:$0xff]
    %v137 = vld [vmem:[%s1 + $0x1c8] sm:$0xff]
    %v138 = vld [vmem:[%s1 + $0x1d0] sm:$0xff]
    %v139 = vld [vmem:[%s1 + $0x1d8] sm:$0xff]
    %v140 = vld [vmem:[%s1 + $0x1e0] sm:$0xff]
    %v141 = vld [vmem:[%s1 + $0x1e8] sm:$0xff]
    %v142 = vld [vmem:[%s1 + $0x1f0] sm:$0xff]
    %v143 = vld [vmem:[%s1 + $0x1f8] sm:$0xff]
    %v144 = vld [vmem:[%s1 + $0x200] sm:$0xff]
    %v145 = vld [vmem:[%s1 + $0x208] sm:$0xff]
    %v146 = vld [vmem:[%s1 + $0x210] sm:$0xff]
    %v147 = vld [vmem:[%s1 + $0x218] sm:$0xff]
    %v148 = vld [vmem:[%s1 + $0x220] sm:$0xff]
    %v149 = vld [vmem:[%s1 + $0x228] sm:$0xff]
    %v150 = vld [vmem:[%s1 + $0x230] sm:$0xff]
    %v151 = vld [vmem:[%s1 + $0x238] sm:$0xff]
    %v152 = vld [vmem:[%s1 + $0x240] sm:$0xff]
    %v153 = vld [vmem:[%s1 + $0x248] sm:$0xff]
    %v154 = vld [vmem:[%s1 + $0x250] sm:$0xff]
    %v155 = vld [vmem:[%s1 + $0x258] sm:$0xff]
    %v156 = vld [vmem:[%s1 + $0x260] sm:$0xff]
    %v157 = vld [vmem:[%s1 + $0x268] sm:$0xff]
    %v158 = vld [vmem:[%s1 + $0x270] sm:$0xff]
    %v159 = vld [vmem:[%s1 + $0x278] sm:$0xff]
    %v160 = vld [vmem:[%s1 + $0x280] sm:$0xff]
    %v161 = vld [vmem:[%s1 + $0x288] sm:$0xff]
    %v162 = vld [vmem:[%s1 + $0x290] sm:$0xff]
    %v163 = vld [vmem:[%s1 + $0x298] sm:$0xff]
    %v164 = vld [vmem:[%s1 + $0x2a0] sm:$0xff]
    %v165 = vld [vmem:[%s1 + $0x2a8] sm:$0xff]
    %v166 = vld [vmem:[%s1 + $0x2b0] sm:$0xff]
    %v167 = vld [vmem:[%s1 + $0x2b8] sm:$0xff]
    %v168 = vld [vmem:[%s1 + $0x2c0] sm:$0xff]
    %v169 = vld [vmem:[%s1 + $0x2c8] sm:$0xff]
    %v170 = vld [vmem:[%s1 + $0x2d0] sm:$0xff]
    %v171 = vld [vmem:[%s1 + $0x2d8] sm:$0xff]
    %v172 = vld [vmem:[%s1 + $0x2e0] sm:$0xff]
    %v173 = vld [vmem:[%s1 + $0x2e8] sm:$0xff]
    %v174 = vld [vmem:[%s1 + $0x2f0] sm:$0xff]
    %v175 = vld [vmem:[%s1 + $0x2f8] sm:$0xff]
    %v176 = vld [vmem:[%s1 + $0x300] sm:$0xff]
    %v177 = vld [vmem:[%s1 + $0x308] sm:$0xff]
    %v178 = vld [vmem:[%s1 + $0x310] sm:$0xff]
    %v179 = vld [vmem:[%s1 + $0x318] sm:$0xff]
    %v180 = vld [vmem:[%s1 + $0x320] sm:$0xff]
    %v181 = vld [vmem:[%s1 + $0x328] sm:$0xff]
    %v182 = vld [vmem:[%s1 + $0x330] sm:$0xff]
    %v183 = vld [vmem:[%s1 + $0x338] sm:$0xff]
    %v184 = vld [vmem:[%s1 + $0x340] sm:$0xff]
    %v185 = vld [vmem:[%s1 + $0x348] sm:$0xff]
    %v186 = vld [vmem:[%s1 + $0x350] sm:$0xff]
    %v187 = vld [vmem:[%s1 + $0x358] sm:$0xff]
    %v188 = vld [vmem:[%s1 + $0x360] sm:$0xff]
    %v189 = vld [vmem:[%s1 + $0x368] sm:$0xff]
    %v190 = vld [vmem:[%s1 + $0x370] sm:$0xff]
    %v191 = vld [vmem:[%s1 + $0x378] sm:$0xff]
    %v192 = vld [vmem:[%s1 + $0x380] sm:$0xff]
    %v193 = vld [vmem:[%s1 + $0x388] sm:$0xff]
    %v194 = vld [vmem:[%s1 + $0x390] sm:$0xff]
    %v195 = vld [vmem:[%s1 + $0x398] sm:$0xff]
    %v196 = vld [vmem:[%s1 + $0x3a0] sm:$0xff]
    %v197 = vld [vmem:[%s1 + $0x3a8] sm:$0xff]
    %v198 = vld [vmem:[%s1 + $0x3b0] sm:$0xff]
    %v199 = vld [vmem:[%s1 + $0x3b8] sm:$0xff]
    %v200 = vld [vmem:[%s1 + $0x3c0] sm:$0xff]
    %v201 = vld [vmem:[%s1 + $0x3c8] sm:$0xff]
    %v202 = vld [vmem:[%s1 + $0x3d0] sm:$0xff]
    %v203 = vld [vmem:[%s1 + $0x3d8] sm:$0xff]
    %v204 = vld [vmem:[%s1 + $0x3e0] sm:$0xff]
    %v205 = vld [vmem:[%s1 + $0x3e8] sm:$0xff]
    %v206 = vld [vmem:[%s1 + $0x3f0] sm:$0xff]
    %v207 = vld [vmem:[%s1 + $0x3f8] sm:$0xff]
    %v208 = vld [vmem:[%s1 + $0x400] sm:$0xff]
    %v209 = vld [vmem:[%s1 + $0x408] sm:$0xff]
    %v210 = vld [vmem:[%s1 + $0x410] sm:$0xff]
    %v211 = vld [vmem:[%s1 + $0x418] sm:$0xff]
    %v212 = vld [vmem:[%s1 + $0x420] sm:$0xff]
    %v213 = vld [vmem:[%s1 + $0x428] sm:$0xff]
    %v214 = vld [vmem:[%s1 + $0x430] sm:$0xff]
    %v215 = vld [vmem:[%s1 + $0x438] sm:$0xff]
    %v216 = vld [vmem:[%s1 + $0x440] sm:$0xff]
    %v217 = vld [vmem:[%s1 + $0x448] sm:$0xff]
    %v218 = vld [vmem:[%s1 + $0x450] sm:$0xff]
    %v219 = vld [vmem:[%s1 + $0x458] sm:$0xff]
    %v220 = vld [vmem:[%s1 + $0x460] sm:$0xff]
    %v221 = vld [vmem:[%s1 + $0x468] sm:$0xff]
    %v222 = vld [vmem:[%s1 + $0x470] sm:$0xff]
    %v223 = vld [vmem:[%s1 + $0x478] sm:$0xff]
    %v224 = vld [vmem:[%s1 + $0x480] sm:$0xff]
    %v225 = vld [vmem:[%s1 + $0x488] sm:$0xff]
    %v226 = vld [vmem:[%s1 + $0x490] sm:$0xff]
    %v227 = vld [vmem:[%s1 + $0x498] sm:$0xff]
    %v228 = vld [vmem:[%s1 + $0x4a0] sm:$0xff]
    %v229 = vld [vmem:[%s1 + $0x4a8] sm:$0xff]
    %v230 = vld [vmem:[%s1 + $0x4b0] sm:$0xff]
    %v231 = vld [vmem:[%s1 + $0x4b8] sm:$0xff]
    %v232 = vld [vmem:[%s1 + $0x4c0] sm:$0xff]
    %v233 = vld [vmem:[%s1 + $0x4c8] sm:$0xff]
    %v234 = vld [vmem:[%s1 + $0x4d0] sm:$0xff]
    %v235 = vld [vmem:[%s1 + $0x4d8] sm:$0xff]
    %v236 = vld [vmem:[%s1 + $0x4e0] sm:$0xff]
    %v237 = vld [vmem:[%s1 + $0x4e8] sm:$0xff]
    %v238 = vld [vmem:[%s1 + $0x4f0] sm:$0xff]
    %v239 = vld [vmem:[%s1 + $0x4f8] sm:$0xff]
    %v240 = vld [vmem:[%s1 + $0x500] sm:$0xff]
    %v241 = vld [vmem:[%s1 + $0x508] sm:$0xff]
    %v242 = vld [vmem:[%s1 + $0x510] sm:$0xff]
    %v243 = vld [vmem:[%s1 + $0x518] sm:$0xff]
    %v244 = vld [vmem:[%s1 + $0x520] sm:$0xff]
    %v245 = vld [vmem:[%s1 + $0x528] sm:$0xff]
    %v246 = vld [vmem:[%s1 + $0x530] sm:$0xff]
    %v247 = vld [vmem:[%s1 + $0x538] sm:$0xff]
    %v248 = vld [vmem:[%s1 + $0x540] sm:$0xff]
    %v249 = vld [vmem:[%s1 + $0x548] sm:$0xff]
    %v250 = vld [vmem:[%s1 + $0x550] sm:$0xff]
    %v251 = vld [vmem:[%s1 + $0x558] sm:$0xff]
    %v252 = vld [vmem:[%s1 + $0x560] sm:$0xff]
    %v253 = vld [vmem:[%s1 + $0x568] sm:$0xff]
    %v254 = vld [vmem:[%s1 + $0x570] sm:$0xff]
    %v255 = vld [vmem:[%s1 + $0x578] sm:$0xff]
    %v256 = vld [vmem:[%s1 + $0x580] sm:$0xff]
    %v257 = vld [vmem:[%s1 + $0x588] sm:$0xff]
    %v258 = vld [vmem:[%s1 + $0x590] sm:$0xff]
    %v259 = vld [vmem:[%s1 + $0x598] sm:$0xff]
    %v260 = vld [vmem:[%s1 + $0x5a0] sm:$0xff]
    %v261 = vld [vmem:[%s1 + $0x5a8] sm:$0xff]
    %v262 = vld [vmem:[%s1 + $0x5b0] sm:$0xff]
    %v263 = vld [vmem:[%s1 + $0x5b8] sm:$0xff]
    %v264 = vld [vmem:[%s1 + $0x5c0] sm:$0xff]
    %v265 = vld [vmem:[%s1 + $0x5c8] sm:$0xff]
    %v266 = vld [vmem:[%s1 + $0x5d0] sm:$0xff]
    %v267 = vld [vmem:[%s1 + $0x5d8] sm:$0xff]
    %v268 = vld [vmem:[%s1 + $0x5e0] sm:$0xff]
    %v269 = vld [vmem:[%s1 + $0x5e8] sm:$0xff]
    %v270 = vld [vmem:[%s1 + $0x5f0] sm:$0xff]
    %v271 = vld [vmem:[%s1 + $0x5f8] sm:$0xff]
    %v272 = vld [vmem:[%s1 + $0x600] sm:$0xff]
    %v273 = vld [vmem:[%s1 + $0x608] sm:$0xff]
    %v274 = vld [vmem:[%s1 + $0x610] sm:$0xff]
    %v275 = vld [vmem:[%s1 + $0x618] sm:$0xff]
    %v276 = vld [vmem:[%s1 + $0x620] sm:$0xff]
    %v277 = vld [vmem:[%s1 + $0x628] sm:$0xff]
    %v278 = vld [vmem:[%s1 + $0x630] sm:$0xff]
    %v279 = vld [vmem:[%s1 + $0x638] sm:$0xff]
    %v280 = vld [vmem:[%s1 + $0x640] sm:$0xff]
    %v281 = vld [vmem:[%s1 + $0x648] sm:$0xff]
    %v282 = vld [vmem:[%s1 + $0x650] sm:$0xff]
    %v283 = vld [vmem:[%s1 + $0x658] sm:$0xff]
    %v284 = vld [vmem:[%s1 + $0x660] sm:$0xff]
    %v285 = vld [vmem:[%s1 + $0x668] sm:$0xff]
    %v286 = vld [vmem:[%s1 + $0x670] sm:$0xff]
    %v287 = vld [vmem:[%s1 + $0x678] sm:$0xff]
    %v288 = vld [vmem:[%s2] sm:$0x3]
    %v290 = vperm.slane %v288, 0
    %v291 = vperm.slane %v288, 1
    %v308 = vunpack.c.l.b16 %v66
    %v309 = vunpack.c.h.b16 %v66
    %v310 = vunpack.c.l.b16 %v67
    %v311 = vunpack.c.h.b16 %v67
    %v312 = vunpack.c.l.b16 %v68
    %v313 = vunpack.c.h.b16 %v68
    %v314 = vunpack.c.l.b16 %v69
    %v315 = vunpack.c.h.b16 %v69
    %v316 = vunpack.c.l.b16 %v70
    %v317 = vunpack.c.h.b16 %v70
    %v318 = vunpack.c.l.b16 %v71
    %v319 = vunpack.c.h.b16 %v71
    %v320 = vunpack.c.l.b16 %v72
    %v321 = vunpack.c.l.b16 %v73
    %v322 = vunpack.c.h.b16 %v73
    %v323 = vunpack.c.l.b16 %v74
    %v324 = vunpack.c.h.b16 %v74
    %v325 = vunpack.c.l.b16 %v75
    %v326 = vunpack.c.h.b16 %v75
    %v327 = vunpack.c.l.b16 %v76
    %v328 = vunpack.c.h.b16 %v76
    %v329 = vunpack.c.l.b16 %v77
    %v330 = vunpack.c.h.b16 %v77
    %v331 = vunpack.c.l.b16 %v78
    %v332 = vunpack.c.h.b16 %v78
    %v333 = vunpack.c.l.b16 %v79
    %v334 = vpack.c.b16 %v321, %v308
    %v335 = vpack.c.b16 %v322, %v309
    %v336 = vpack.c.b16 %v323, %v310
    %v337 = vpack.c.b16 %v324, %v311
    %v338 = vpack.c.b16 %v325, %v312
    %v339 = vpack.c.b16 %v326, %v313
    %v340 = vpack.c.b16 %v327, %v314
    %v341 = vpack.c.b16 %v328, %v315
    %v342 = vpack.c.b16 %v329, %v316
    %v343 = vpack.c.b16 %v330, %v317
    %v344 = vpack.c.b16 %v331, %v318
    %v345 = vpack.c.b16 %v332, %v319
    %v346 = vpack.c.b16 %v333, %v320
    %v568 = vunpack.c.l.b16 %v80
    %v569 = vunpack.c.h.b16 %v80
    %v570 = vunpack.c.l.b16 %v81
    %v571 = vunpack.c.h.b16 %v81
    %v572 = vunpack.c.l.b16 %v82
    %v573 = vunpack.c.h.b16 %v82
    %v574 = vunpack.c.l.b16 %v83
    %v575 = vunpack.c.h.b16 %v83
    %v576 = vunpack.c.l.b16 %v84
    %v577 = vunpack.c.h.b16 %v84
    %v578 = vunpack.c.l.b16 %v85
    %v579 = vunpack.c.h.b16 %v85
    %v580 = vunpack.c.l.b16 %v86
    %v581 = vunpack.c.h.b16 %v86
    %v582 = vunpack.c.l.b16 %v87
    %v583 = vunpack.c.h.b16 %v87
    %v584 = vunpack.c.l.b16 %v88
    %v585 = vunpack.c.h.b16 %v88
    %v586 = vunpack.c.l.b16 %v89
    %v587 = vunpack.c.h.b16 %v89
    %v588 = vunpack.c.l.b16 %v90
    %v589 = vunpack.c.h.b16 %v90
    %v590 = vunpack.c.l.b16 %v91
    %v591 = vunpack.c.h.b16 %v91
    %v592 = vunpack.c.l.b16 %v92
    %v593 = vunpack.c.h.b16 %v92
    %v594 = vunpack.c.l.b16 %v93
    %v595 = vunpack.c.h.b16 %v93
    %v596 = vunpack.c.l.b16 %v94
    %v597 = vunpack.c.h.b16 %v94
    %v598 = vunpack.c.l.b16 %v95
    %v599 = vunpack.c.h.b16 %v95
    %v600 = vunpack.c.l.b16 %v96
    %v601 = vunpack.c.h.b16 %v96
    %v602 = vunpack.c.l.b16 %v97
    %v603 = vunpack.c.h.b16 %v97
    %v604 = vunpack.c.l.b16 %v98
    %v605 = vunpack.c.h.b16 %v98
    %v606 = vunpack.c.l.b16 %v99
    %v607 = vunpack.c.h.b16 %v99
    %v608 = vunpack.c.l.b16 %v100
    %v609 = vunpack.c.h.b16 %v100
    %v610 = vunpack.c.l.b16 %v101
    %v611 = vunpack.c.h.b16 %v101
    %v612 = vunpack.c.l.b16 %v102
    %v613 = vunpack.c.h.b16 %v102
    %v614 = vunpack.c.l.b16 %v103
    %v615 = vunpack.c.h.b16 %v103
    %v616 = vunpack.c.l.b16 %v104
    %v617 = vunpack.c.h.b16 %v104
    %v618 = vunpack.c.l.b16 %v105
    %v619 = vunpack.c.h.b16 %v105
    %v620 = vunpack.c.l.b16 %v106
    %v621 = vunpack.c.h.b16 %v106
    %v622 = vunpack.c.l.b16 %v107
    %v623 = vunpack.c.h.b16 %v107
    %v624 = vunpack.c.l.b16 %v108
    %v625 = vunpack.c.h.b16 %v108
    %v626 = vunpack.c.l.b16 %v109
    %v627 = vunpack.c.h.b16 %v109
    %v628 = vunpack.c.l.b16 %v110
    %v629 = vunpack.c.h.b16 %v110
    %v630 = vunpack.c.l.b16 %v111
    %v631 = vunpack.c.h.b16 %v111
    %v632 = vunpack.c.l.b16 %v112
    %v633 = vunpack.c.h.b16 %v112
    %v634 = vunpack.c.l.b16 %v113
    %v635 = vunpack.c.h.b16 %v113
    %v636 = vunpack.c.l.b16 %v114
    %v637 = vunpack.c.h.b16 %v114
    %v638 = vunpack.c.l.b16 %v115
    %v639 = vunpack.c.h.b16 %v115
    %v640 = vunpack.c.l.b16 %v116
    %v641 = vunpack.c.h.b16 %v116
    %v642 = vunpack.c.l.b16 %v117
    %v643 = vunpack.c.h.b16 %v117
    %v644 = vunpack.c.l.b16 %v118
    %v645 = vunpack.c.h.b16 %v118
    %v646 = vunpack.c.l.b16 %v119
    %v647 = vunpack.c.h.b16 %v119
    %v648 = vunpack.c.l.b16 %v120
    %v649 = vunpack.c.h.b16 %v120
    %v650 = vunpack.c.l.b16 %v121
    %v651 = vunpack.c.h.b16 %v121
    %v652 = vunpack.c.l.b16 %v122
    %v653 = vunpack.c.h.b16 %v122
    %v654 = vunpack.c.l.b16 %v123
    %v655 = vunpack.c.h.b16 %v123
    %v656 = vunpack.c.l.b16 %v124
    %v657 = vunpack.c.h.b16 %v124
    %v658 = vunpack.c.l.b16 %v125
    %v659 = vunpack.c.h.b16 %v125
    %v660 = vunpack.c.l.b16 %v126
    %v661 = vunpack.c.h.b16 %v126
    %v662 = vunpack.c.l.b16 %v127
    %v663 = vunpack.c.h.b16 %v127
    %v664 = vunpack.c.l.b16 %v128
    %v665 = vunpack.c.h.b16 %v128
    %v666 = vunpack.c.l.b16 %v129
    %v667 = vunpack.c.h.b16 %v129
    %v668 = vunpack.c.l.b16 %v130
    %v669 = vunpack.c.h.b16 %v130
    %v670 = vunpack.c.l.b16 %v131
    %v671 = vunpack.c.h.b16 %v131
    %v672 = vunpack.c.l.b16 %v132
    %v673 = vunpack.c.h.b16 %v132
    %v674 = vunpack.c.l.b16 %v133
    %v675 = vunpack.c.h.b16 %v133
    %v676 = vunpack.c.l.b16 %v134
    %v677 = vunpack.c.h.b16 %v134
    %v678 = vunpack.c.l.b16 %v135
    %v679 = vunpack.c.h.b16 %v135
    %v680 = vunpack.c.l.b16 %v136
    %v681 = vunpack.c.h.b16 %v136
    %v682 = vunpack.c.l.b16 %v137
    %v683 = vunpack.c.h.b16 %v137
    %v684 = vunpack.c.l.b16 %v138
    %v685 = vunpack.c.h.b16 %v138
    %v686 = vunpack.c.l.b16 %v139
    %v687 = vunpack.c.h.b16 %v139
    %v688 = vunpack.c.l.b16 %v140
    %v689 = vunpack.c.h.b16 %v140
    %v690 = vunpack.c.l.b16 %v141
    %v691 = vunpack.c.h.b16 %v141
    %v692 = vunpack.c.l.b16 %v142
    %v693 = vunpack.c.h.b16 %v142
    %v694 = vunpack.c.l.b16 %v143
    %v695 = vunpack.c.h.b16 %v143
    %v696 = vunpack.c.l.b16 %v144
    %v697 = vunpack.c.h.b16 %v144
    %v698 = vunpack.c.l.b16 %v145
    %v699 = vunpack.c.h.b16 %v145
    %v700 = vunpack.c.l.b16 %v146
    %v701 = vunpack.c.h.b16 %v146
    %v702 = vunpack.c.l.b16 %v147
    %v703 = vunpack.c.h.b16 %v147
    %v704 = vunpack.c.l.b16 %v148
    %v705 = vunpack.c.h.b16 %v148
    %v706 = vunpack.c.l.b16 %v149
    %v707 = vunpack.c.h.b16 %v149
    %v708 = vunpack.c.l.b16 %v150
    %v709 = vunpack.c.h.b16 %v150
    %v710 = vunpack.c.l.b16 %v151
    %v711 = vunpack.c.h.b16 %v151
    %v712 = vunpack.c.l.b16 %v152
    %v713 = vunpack.c.h.b16 %v152
    %v714 = vunpack.c.l.b16 %v153
    %v715 = vunpack.c.h.b16 %v153
    %v716 = vunpack.c.l.b16 %v154
    %v717 = vunpack.c.h.b16 %v154
    %v718 = vunpack.c.l.b16 %v155
    %v719 = vunpack.c.h.b16 %v155
    %v720 = vunpack.c.l.b16 %v156
    %v721 = vunpack.c.h.b16 %v156
    %v722 = vunpack.c.l.b16 %v157
    %v723 = vunpack.c.h.b16 %v157
    %v724 = vunpack.c.l.b16 %v158
    %v725 = vunpack.c.h.b16 %v158
    %v726 = vunpack.c.l.b16 %v159
    %v727 = vunpack.c.h.b16 %v159
    %v728 = vunpack.c.l.b16 %v160
    %v729 = vunpack.c.h.b16 %v160
    %v730 = vunpack.c.l.b16 %v161
    %v731 = vunpack.c.h.b16 %v161
    %v732 = vunpack.c.l.b16 %v162
    %v733 = vunpack.c.h.b16 %v162
    %v734 = vunpack.c.l.b16 %v163
    %v735 = vunpack.c.h.b16 %v163
    %v736 = vunpack.c.l.b16 %v164
    %v737 = vunpack.c.h.b16 %v164
    %v738 = vunpack.c.l.b16 %v165
    %v739 = vunpack.c.h.b16 %v165
    %v740 = vunpack.c.l.b16 %v166
    %v741 = vunpack.c.h.b16 %v166
    %v742 = vunpack.c.l.b16 %v167
    %v743 = vunpack.c.h.b16 %v167
    %v744 = vunpack.c.l.b16 %v168
    %v745 = vunpack.c.h.b16 %v168
    %v746 = vunpack.c.l.b16 %v169
    %v747 = vunpack.c.h.b16 %v169
    %v748 = vunpack.c.l.b16 %v170
    %v749 = vunpack.c.h.b16 %v170
    %v750 = vunpack.c.l.b16 %v171
    %v751 = vunpack.c.h.b16 %v171
    %v752 = vunpack.c.l.b16 %v172
    %v753 = vunpack.c.h.b16 %v172
    %v754 = vunpack.c.l.b16 %v173
    %v755 = vunpack.c.h.b16 %v173
    %v756 = vunpack.c.l.b16 %v174
    %v757 = vunpack.c.h.b16 %v174
    %v758 = vunpack.c.l.b16 %v175
    %v759 = vunpack.c.h.b16 %v175
    %v760 = vunpack.c.l.b16 %v176
    %v761 = vunpack.c.h.b16 %v176
    %v762 = vunpack.c.l.b16 %v177
    %v763 = vunpack.c.h.b16 %v177
    %v764 = vunpack.c.l.b16 %v178
    %v765 = vunpack.c.h.b16 %v178
    %v766 = vunpack.c.l.b16 %v179
    %v767 = vunpack.c.h.b16 %v179
    %v768 = vunpack.c.l.b16 %v180
    %v769 = vunpack.c.h.b16 %v180
    %v770 = vunpack.c.l.b16 %v181
    %v771 = vunpack.c.h.b16 %v181
    %v772 = vunpack.c.l.b16 %v182
    %v773 = vunpack.c.h.b16 %v182
    %v774 = vunpack.c.l.b16 %v183
    %v775 = vunpack.c.h.b16 %v183
    %v776 = vunpack.c.l.b16 %v184
    %v777 = vunpack.c.h.b16 %v184
    %v778 = vunpack.c.l.b16 %v185
    %v779 = vunpack.c.h.b16 %v185
    %v780 = vunpack.c.l.b16 %v186
    %v781 = vunpack.c.h.b16 %v186
    %v782 = vunpack.c.l.b16 %v187
    %v783 = vunpack.c.h.b16 %v187
    %v784 = vunpack.c.l.b16 %v188
    %v785 = vunpack.c.h.b16 %v188
    %v786 = vunpack.c.l.b16 %v189
    %v787 = vunpack.c.h.b16 %v189
    %v788 = vunpack.c.l.b16 %v190
    %v789 = vunpack.c.h.b16 %v190
    %v790 = vunpack.c.l.b16 %v191
    %v791 = vunpack.c.h.b16 %v191
    %v792 = vunpack.c.l.b16 %v192
    %v793 = vunpack.c.h.b16 %v192
    %v794 = vunpack.c.l.b16 %v193
    %v795 = vunpack.c.h.b16 %v193
    %v796 = vunpack.c.l.b16 %v194
    %v797 = vunpack.c.h.b16 %v194
    %v798 = vunpack.c.l.b16 %v195
    %v799 = vunpack.c.h.b16 %v195
    %v800 = vunpack.c.l.b16 %v196
    %v801 = vunpack.c.h.b16 %v196
    %v802 = vunpack.c.l.b16 %v197
    %v803 = vunpack.c.h.b16 %v197
    %v804 = vunpack.c.l.b16 %v198
    %v805 = vunpack.c.h.b16 %v198
    %v806 = vunpack.c.l.b16 %v199
    %v807 = vunpack.c.h.b16 %v199
    %v808 = vunpack.c.l.b16 %v200
    %v809 = vunpack.c.h.b16 %v200
    %v810 = vunpack.c.l.b16 %v201
    %v811 = vunpack.c.h.b16 %v201
    %v812 = vunpack.c.l.b16 %v202
    %v813 = vunpack.c.h.b16 %v202
    %v814 = vunpack.c.l.b16 %v203
    %v815 = vunpack.c.h.b16 %v203
    %v816 = vunpack.c.l.b16 %v204
    %v817 = vunpack.c.h.b16 %v204
    %v818 = vunpack.c.l.b16 %v205
    %v819 = vunpack.c.h.b16 %v205
    %v820 = vunpack.c.l.b16 %v206
    %v821 = vunpack.c.h.b16 %v206
    %v822 = vunpack.c.l.b16 %v207
    %v823 = vunpack.c.h.b16 %v207
    %v824 = vunpack.c.l.b16 %v208
    %v825 = vunpack.c.h.b16 %v208
    %v826 = vunpack.c.l.b16 %v209
    %v827 = vunpack.c.h.b16 %v209
    %v828 = vunpack.c.l.b16 %v210
    %v829 = vunpack.c.h.b16 %v210
    %v830 = vunpack.c.l.b16 %v211
    %v831 = vunpack.c.h.b16 %v211
    %v832 = vunpack.c.l.b16 %v212
    %v833 = vunpack.c.h.b16 %v212
    %v834 = vunpack.c.l.b16 %v213
    %v835 = vunpack.c.h.b16 %v213
    %v836 = vunpack.c.l.b16 %v214
    %v837 = vunpack.c.h.b16 %v214
    %v838 = vunpack.c.l.b16 %v215
    %v839 = vunpack.c.h.b16 %v215
    %v840 = vunpack.c.l.b16 %v216
    %v841 = vunpack.c.h.b16 %v216
    %v842 = vunpack.c.l.b16 %v217
    %v843 = vunpack.c.h.b16 %v217
    %v844 = vunpack.c.l.b16 %v218
    %v845 = vunpack.c.h.b16 %v218
    %v846 = vunpack.c.l.b16 %v219
    %v847 = vunpack.c.h.b16 %v219
    %v848 = vunpack.c.l.b16 %v220
    %v849 = vunpack.c.h.b16 %v220
    %v850 = vunpack.c.l.b16 %v221
    %v851 = vunpack.c.h.b16 %v221
    %v852 = vunpack.c.l.b16 %v222
    %v853 = vunpack.c.h.b16 %v222
    %v854 = vunpack.c.l.b16 %v223
    %v855 = vunpack.c.h.b16 %v223
    %v856 = vunpack.c.l.b16 %v224
    %v857 = vunpack.c.h.b16 %v224
    %v858 = vunpack.c.l.b16 %v225
    %v859 = vunpack.c.h.b16 %v225
    %v860 = vunpack.c.l.b16 %v226
    %v861 = vunpack.c.h.b16 %v226
    %v862 = vunpack.c.l.b16 %v227
    %v863 = vunpack.c.h.b16 %v227
    %v864 = vunpack.c.l.b16 %v228
    %v865 = vunpack.c.h.b16 %v228
    %v866 = vunpack.c.l.b16 %v229
    %v867 = vunpack.c.h.b16 %v229
    %v868 = vunpack.c.l.b16 %v230
    %v869 = vunpack.c.h.b16 %v230
    %v870 = vunpack.c.l.b16 %v231
    %v871 = vunpack.c.h.b16 %v231
    %v872 = vunpack.c.l.b16 %v232
    %v873 = vunpack.c.h.b16 %v232
    %v874 = vunpack.c.l.b16 %v233
    %v875 = vunpack.c.h.b16 %v233
    %v876 = vunpack.c.l.b16 %v234
    %v877 = vunpack.c.h.b16 %v234
    %v878 = vunpack.c.l.b16 %v235
    %v879 = vunpack.c.h.b16 %v235
    %v880 = vunpack.c.l.b16 %v236
    %v881 = vunpack.c.h.b16 %v236
    %v882 = vunpack.c.l.b16 %v237
    %v883 = vunpack.c.h.b16 %v237
    %v884 = vunpack.c.l.b16 %v238
    %v885 = vunpack.c.h.b16 %v238
    %v886 = vunpack.c.l.b16 %v239
    %v887 = vunpack.c.h.b16 %v239
    %v888 = vunpack.c.l.b16 %v240
    %v889 = vunpack.c.h.b16 %v240
    %v890 = vunpack.c.l.b16 %v241
    %v891 = vunpack.c.h.b16 %v241
    %v892 = vunpack.c.l.b16 %v242
    %v893 = vunpack.c.h.b16 %v242
    %v894 = vunpack.c.l.b16 %v243
    %v895 = vunpack.c.h.b16 %v243
    %v896 = vunpack.c.l.b16 %v244
    %v897 = vunpack.c.h.b16 %v244
    %v898 = vunpack.c.l.b16 %v245
    %v899 = vunpack.c.h.b16 %v245
    %v900 = vunpack.c.l.b16 %v246
    %v901 = vunpack.c.h.b16 %v246
    %v902 = vunpack.c.l.b16 %v247
    %v903 = vunpack.c.h.b16 %v247
    %v904 = vunpack.c.l.b16 %v248
    %v905 = vunpack.c.h.b16 %v248
    %v906 = vunpack.c.l.b16 %v249
    %v907 = vunpack.c.h.b16 %v249
    %v908 = vunpack.c.l.b16 %v250
    %v909 = vunpack.c.h.b16 %v250
    %v910 = vunpack.c.l.b16 %v251
    %v911 = vunpack.c.h.b16 %v251
    %v912 = vunpack.c.l.b16 %v252
    %v913 = vunpack.c.h.b16 %v252
    %v914 = vunpack.c.l.b16 %v253
    %v915 = vunpack.c.h.b16 %v253
    %v916 = vunpack.c.l.b16 %v254
    %v917 = vunpack.c.h.b16 %v254
    %v918 = vunpack.c.l.b16 %v255
    %v919 = vunpack.c.h.b16 %v255
    %v920 = vunpack.c.l.b16 %v256
    %v921 = vunpack.c.h.b16 %v256
    %v922 = vunpack.c.l.b16 %v257
    %v923 = vunpack.c.h.b16 %v257
    %v924 = vunpack.c.l.b16 %v258
    %v925 = vunpack.c.h.b16 %v258
    %v926 = vunpack.c.l.b16 %v259
    %v927 = vunpack.c.h.b16 %v259
    %v928 = vunpack.c.l.b16 %v260
    %v929 = vunpack.c.h.b16 %v260
    %v930 = vunpack.c.l.b16 %v261
    %v931 = vunpack.c.h.b16 %v261
    %v932 = vunpack.c.l.b16 %v262
    %v933 = vunpack.c.h.b16 %v262
    %v934 = vunpack.c.l.b16 %v263
    %v935 = vunpack.c.h.b16 %v263
    %v936 = vunpack.c.l.b16 %v264
    %v937 = vunpack.c.h.b16 %v264
    %v938 = vunpack.c.l.b16 %v265
    %v939 = vunpack.c.h.b16 %v265
    %v940 = vunpack.c.l.b16 %v266
    %v941 = vunpack.c.h.b16 %v266
    %v942 = vunpack.c.l.b16 %v267
    %v943 = vunpack.c.h.b16 %v267
    %v944 = vunpack.c.l.b16 %v268
    %v945 = vunpack.c.h.b16 %v268
    %v946 = vunpack.c.l.b16 %v269
    %v947 = vunpack.c.h.b16 %v269
    %v948 = vunpack.c.l.b16 %v270
    %v949 = vunpack.c.h.b16 %v270
    %v950 = vunpack.c.l.b16 %v271
    %v951 = vunpack.c.h.b16 %v271
    %v952 = vunpack.c.l.b16 %v272
    %v953 = vunpack.c.h.b16 %v272
    %v954 = vunpack.c.l.b16 %v273
    %v955 = vunpack.c.h.b16 %v273
    %v956 = vunpack.c.l.b16 %v274
    %v957 = vunpack.c.h.b16 %v274
    %v958 = vunpack.c.l.b16 %v275
    %v959 = vunpack.c.h.b16 %v275
    %v960 = vunpack.c.l.b16 %v276
    %v961 = vunpack.c.h.b16 %v276
    %v962 = vunpack.c.l.b16 %v277
    %v963 = vunpack.c.h.b16 %v277
    %v964 = vunpack.c.l.b16 %v278
    %v965 = vunpack.c.h.b16 %v278
    %v966 = vunpack.c.l.b16 %v279
    %v967 = vunpack.c.h.b16 %v279
    %v968 = vunpack.c.l.b16 %v280
    %v969 = vunpack.c.h.b16 %v280
    %v970 = vunpack.c.l.b16 %v281
    %v971 = vunpack.c.h.b16 %v281
    %v972 = vunpack.c.l.b16 %v282
    %v973 = vunpack.c.h.b16 %v282
    %v974 = vunpack.c.l.b16 %v283
    %v975 = vunpack.c.h.b16 %v283
    %v976 = vunpack.c.l.b16 %v284
    %v977 = vunpack.c.h.b16 %v284
    %v978 = vunpack.c.l.b16 %v285
    %v979 = vunpack.c.h.b16 %v285
    %v980 = vunpack.c.l.b16 %v286
    %v981 = vunpack.c.h.b16 %v286
    %v982 = vunpack.c.l.b16 %v287
    %v983 = vunpack.c.h.b16 %v287
    %v984 = vpack.c.b16 %v570, %v568
    %v985 = vpack.c.b16 %v571, %v569
    %v986 = vpack.c.b16 %v574, %v572
    %v987 = vpack.c.b16 %v575, %v573
    %v988 = vpack.c.b16 %v578, %v576
    %v989 = vpack.c.b16 %v579, %v577
    %v990 = vpack.c.b16 %v582, %v580
    %v991 = vpack.c.b16 %v583, %v581
    %v992 = vpack.c.b16 %v586, %v584
    %v993 = vpack.c.b16 %v587, %v585
    %v994 = vpack.c.b16 %v590, %v588
    %v995 = vpack.c.b16 %v591, %v589
    %v996 = vpack.c.b16 %v594, %v592
    %v997 = vpack.c.b16 %v595, %v593
    %v998 = vpack.c.b16 %v598, %v596
    %v999 = vpack.c.b16 %v599, %v597
    %v1000 = vpack.c.b16 %v602, %v600
    %v1001 = vpack.c.b16 %v603, %v601
    %v1002 = vpack.c.b16 %v606, %v604
    %v1003 = vpack.c.b16 %v607, %v605
    %v1004 = vpack.c.b16 %v610, %v608
    %v1005 = vpack.c.b16 %v611, %v609
    %v1006 = vpack.c.b16 %v614, %v612
    %v1007 = vpack.c.b16 %v615, %v613
    %v1008 = vpack.c.b16 %v618, %v616
    %v1009 = vpack.c.b16 %v619, %v617
    %v1010 = vpack.c.b16 %v622, %v620
    %v1011 = vpack.c.b16 %v623, %v621
    %v1012 = vpack.c.b16 %v626, %v624
    %v1013 = vpack.c.b16 %v627, %v625
    %v1014 = vpack.c.b16 %v630, %v628
    %v1015 = vpack.c.b16 %v631, %v629
    %v1016 = vpack.c.b16 %v634, %v632
    %v1017 = vpack.c.b16 %v635, %v633
    %v1018 = vpack.c.b16 %v638, %v636
    %v1019 = vpack.c.b16 %v639, %v637
    %v1020 = vpack.c.b16 %v642, %v640
    %v1021 = vpack.c.b16 %v643, %v641
    %v1022 = vpack.c.b16 %v646, %v644
    %v1023 = vpack.c.b16 %v647, %v645
    %v1024 = vpack.c.b16 %v650, %v648
    %v1025 = vpack.c.b16 %v651, %v649
    %v1026 = vpack.c.b16 %v654, %v652
    %v1027 = vpack.c.b16 %v655, %v653
    %v1028 = vpack.c.b16 %v658, %v656
    %v1029 = vpack.c.b16 %v659, %v657
    %v1030 = vpack.c.b16 %v662, %v660
    %v1031 = vpack.c.b16 %v663, %v661
    %v1032 = vpack.c.b16 %v666, %v664
    %v1033 = vpack.c.b16 %v667, %v665
    %v1034 = vpack.c.b16 %v670, %v668
    %v1035 = vpack.c.b16 %v671, %v669
    %v1036 = vpack.c.b16 %v674, %v672
    %v1037 = vpack.c.b16 %v675, %v673
    %v1038 = vpack.c.b16 %v678, %v676
    %v1039 = vpack.c.b16 %v679, %v677
    %v1040 = vpack.c.b16 %v682, %v680
    %v1041 = vpack.c.b16 %v683, %v681
    %v1042 = vpack.c.b16 %v686, %v684
    %v1043 = vpack.c.b16 %v687, %v685
    %v1044 = vpack.c.b16 %v690, %v688
    %v1045 = vpack.c.b16 %v691, %v689
    %v1046 = vpack.c.b16 %v694, %v692
    %v1047 = vpack.c.b16 %v695, %v693
    %v1048 = vpack.c.b16 %v698, %v696
    %v1049 = vpack.c.b16 %v699, %v697
    %v1050 = vpack.c.b16 %v702, %v700
    %v1051 = vpack.c.b16 %v703, %v701
    %v1052 = vpack.c.b16 %v706, %v704
    %v1053 = vpack.c.b16 %v707, %v705
    %v1054 = vpack.c.b16 %v710, %v708
    %v1055 = vpack.c.b16 %v711, %v709
    %v1056 = vpack.c.b16 %v714, %v712
    %v1057 = vpack.c.b16 %v715, %v713
    %v1058 = vpack.c.b16 %v718, %v716
    %v1059 = vpack.c.b16 %v719, %v717
    %v1060 = vpack.c.b16 %v722, %v720
    %v1061 = vpack.c.b16 %v723, %v721
    %v1062 = vpack.c.b16 %v726, %v724
    %v1063 = vpack.c.b16 %v727, %v725
    %v1064 = vpack.c.b16 %v730, %v728
    %v1065 = vpack.c.b16 %v731, %v729
    %v1066 = vpack.c.b16 %v734, %v732
    %v1067 = vpack.c.b16 %v735, %v733
    %v1068 = vpack.c.b16 %v738, %v736
    %v1069 = vpack.c.b16 %v739, %v737
    %v1070 = vpack.c.b16 %v742, %v740
    %v1071 = vpack.c.b16 %v743, %v741
    %v1072 = vpack.c.b16 %v746, %v744
    %v1073 = vpack.c.b16 %v747, %v745
    %v1074 = vpack.c.b16 %v750, %v748
    %v1075 = vpack.c.b16 %v751, %v749
    %v1076 = vpack.c.b16 %v754, %v752
    %v1077 = vpack.c.b16 %v755, %v753
    %v1078 = vpack.c.b16 %v758, %v756
    %v1079 = vpack.c.b16 %v759, %v757
    %v1080 = vpack.c.b16 %v762, %v760
    %v1081 = vpack.c.b16 %v763, %v761
    %v1082 = vpack.c.b16 %v766, %v764
    %v1083 = vpack.c.b16 %v767, %v765
    %v1084 = vpack.c.b16 %v770, %v768
    %v1085 = vpack.c.b16 %v771, %v769
    %v1086 = vpack.c.b16 %v774, %v772
    %v1087 = vpack.c.b16 %v775, %v773
    %v1088 = vpack.c.b16 %v778, %v776
    %v1089 = vpack.c.b16 %v779, %v777
    %v1090 = vpack.c.b16 %v782, %v780
    %v1091 = vpack.c.b16 %v783, %v781
    %v1092 = vpack.c.b16 %v786, %v784
    %v1093 = vpack.c.b16 %v787, %v785
    %v1094 = vpack.c.b16 %v790, %v788
    %v1095 = vpack.c.b16 %v791, %v789
    %v1096 = vpack.c.b16 %v794, %v792
    %v1097 = vpack.c.b16 %v795, %v793
    %v1098 = vpack.c.b16 %v798, %v796
    %v1099 = vpack.c.b16 %v799, %v797
    %v1100 = vpack.c.b16 %v802, %v800
    %v1101 = vpack.c.b16 %v803, %v801
    %v1102 = vpack.c.b16 %v806, %v804
    %v1103 = vpack.c.b16 %v807, %v805
    %v1104 = vpack.c.b16 %v810, %v808
    %v1105 = vpack.c.b16 %v811, %v809
    %v1106 = vpack.c.b16 %v814, %v812
    %v1107 = vpack.c.b16 %v815, %v813
    %v1108 = vpack.c.b16 %v818, %v816
    %v1109 = vpack.c.b16 %v819, %v817
    %v1110 = vpack.c.b16 %v822, %v820
    %v1111 = vpack.c.b16 %v823, %v821
    %v1112 = vpack.c.b16 %v826, %v824
    %v1113 = vpack.c.b16 %v827, %v825
    %v1114 = vpack.c.b16 %v830, %v828
    %v1115 = vpack.c.b16 %v831, %v829
    %v1116 = vpack.c.b16 %v834, %v832
    %v1117 = vpack.c.b16 %v835, %v833
    %v1118 = vpack.c.b16 %v838, %v836
    %v1119 = vpack.c.b16 %v839, %v837
    %v1120 = vpack.c.b16 %v842, %v840
    %v1121 = vpack.c.b16 %v843, %v841
    %v1122 = vpack.c.b16 %v846, %v844
    %v1123 = vpack.c.b16 %v847, %v845
    %v1124 = vpack.c.b16 %v850, %v848
    %v1125 = vpack.c.b16 %v851, %v849
    %v1126 = vpack.c.b16 %v854, %v852
    %v1127 = vpack.c.b16 %v855, %v853
    %v1128 = vpack.c.b16 %v858, %v856
    %v1129 = vpack.c.b16 %v859, %v857
    %v1130 = vpack.c.b16 %v862, %v860
    %v1131 = vpack.c.b16 %v863, %v861
    %v1132 = vpack.c.b16 %v866, %v864
    %v1133 = vpack.c.b16 %v867, %v865
    %v1134 = vpack.c.b16 %v870, %v868
    %v1135 = vpack.c.b16 %v871, %v869
    %v1136 = vpack.c.b16 %v874, %v872
    %v1137 = vpack.c.b16 %v875, %v873
    %v1138 = vpack.c.b16 %v878, %v876
    %v1139 = vpack.c.b16 %v879, %v877
    %v1140 = vpack.c.b16 %v882, %v880
    %v1141 = vpack.c.b16 %v883, %v881
    %v1142 = vpack.c.b16 %v886, %v884
    %v1143 = vpack.c.b16 %v887, %v885
    %v1144 = vpack.c.b16 %v890, %v888
    %v1145 = vpack.c.b16 %v891, %v889
    %v1146 = vpack.c.b16 %v894, %v892
    %v1147 = vpack.c.b16 %v895, %v893
    %v1148 = vpack.c.b16 %v898, %v896
    %v1149 = vpack.c.b16 %v899, %v897
    %v1150 = vpack.c.b16 %v902, %v900
    %v1151 = vpack.c.b16 %v903, %v901
    %v1152 = vpack.c.b16 %v906, %v904
    %v1153 = vpack.c.b16 %v907, %v905
    %v1154 = vpack.c.b16 %v910, %v908
    %v1155 = vpack.c.b16 %v911, %v909
    %v1156 = vpack.c.b16 %v914, %v912
    %v1157 = vpack.c.b16 %v915, %v913
    %v1158 = vpack.c.b16 %v918, %v916
    %v1159 = vpack.c.b16 %v919, %v917
    %v1160 = vpack.c.b16 %v922, %v920
    %v1161 = vpack.c.b16 %v923, %v921
    %v1162 = vpack.c.b16 %v926, %v924
    %v1163 = vpack.c.b16 %v927, %v925
    %v1164 = vpack.c.b16 %v930, %v928
    %v1165 = vpack.c.b16 %v931, %v929
    %v1166 = vpack.c.b16 %v934, %v932
    %v1167 = vpack.c.b16 %v935, %v933
    %v1168 = vpack.c.b16 %v938, %v936
    %v1169 = vpack.c.b16 %v939, %v937
    %v1170 = vpack.c.b16 %v942, %v940
    %v1171 = vpack.c.b16 %v943, %v941
    %v1172 = vpack.c.b16 %v946, %v944
    %v1173 = vpack.c.b16 %v947, %v945
    %v1174 = vpack.c.b16 %v950, %v948
    %v1175 = vpack.c.b16 %v951, %v949
    %v1176 = vpack.c.b16 %v954, %v952
    %v1177 = vpack.c.b16 %v955, %v953
    %v1178 = vpack.c.b16 %v958, %v956
    %v1179 = vpack.c.b16 %v959, %v957
    %v1180 = vpack.c.b16 %v962, %v960
    %v1181 = vpack.c.b16 %v963, %v961
    %v1182 = vpack.c.b16 %v966, %v964
    %v1183 = vpack.c.b16 %v967, %v965
    %v1184 = vpack.c.b16 %v970, %v968
    %v1185 = vpack.c.b16 %v971, %v969
    %v1186 = vpack.c.b16 %v974, %v972
    %v1187 = vpack.c.b16 %v975, %v973
    %v1188 = vpack.c.b16 %v978, %v976
    %v1189 = vpack.c.b16 %v979, %v977
    %v1190 = vpack.c.b16 %v982, %v980
    %v1191 = vpack.c.b16 %v983, %v981
    %1400 = vmatpush.bf16.msra.mxu0 %v998
    %1401 = vmatpush.bf16.msra.mxu0 %v996
    %1402 = vmatpush.bf16.msra.mxu0 %v994
    %1403 = vmatpush.bf16.msra.mxu0 %v992
    %1404 = vmatpush.bf16.msra.mxu0 %v990
    %1405 = vmatpush.bf16.msra.mxu0 %v988
    %1406 = vmatpush.bf16.msra.mxu0 %v986
    %1407 = vmatpush.bf16.msra.mxu0 %v984
    %1408 = vmatmul.bf16.gmra.mxu0 %v334
    %v1409 = vpop.f32.mrf.mxu0
    %v1410 = vadd.f32 %v290, %v1409
    %v1411 = vpop.f32.mrf.mxu0
    %v1412 = vadd.f32 %v290, %v1411
    %1413 = vdwg.mxu0
    %1414 = vmatpush.bf16.msra.mxu0 %v1014
    %1415 = vmatpush.bf16.msra.mxu0 %v1012
    %1416 = vmatpush.bf16.msra.mxu0 %v1010
    %1417 = vmatpush.bf16.msra.mxu0 %v1008
    %1418 = vmatpush.bf16.msra.mxu0 %v1006
    %1419 = vmatpush.bf16.msra.mxu0 %v1004
    %1420 = vmatpush.bf16.msra.mxu0 %v1002
    %1421 = vmatpush.bf16.msra.mxu0 %v1000
    %1422 = vmatmul.bf16.gmra.mxu0 %v335
    %v1423 = vpop.f32.mrf.mxu0
    %v1424 = vadd.f32 %v1410, %v1423
    %v1425 = vpop.f32.mrf.mxu0
    %v1426 = vadd.f32 %v1412, %v1425
    %1427 = vdwg.mxu0
    %1428 = vmatpush.bf16.msra.mxu0 %v1030
    %1429 = vmatpush.bf16.msra.mxu0 %v1028
    %1430 = vmatpush.bf16.msra.mxu0 %v1026
    %1431 = vmatpush.bf16.msra.mxu0 %v1024
    %1432 = vmatpush.bf16.msra.mxu0 %v1022
    %1433 = vmatpush.bf16.msra.mxu0 %v1020
    %1434 = vmatpush.bf16.msra.mxu0 %v1018
    %1435 = vmatpush.bf16.msra.mxu0 %v1016
    %1436 = vmatmul.bf16.gmra.mxu0 %v336
    %v1437 = vpop.f32.mrf.mxu0
    %v1438 = vadd.f32 %v1424, %v1437
    %v1439 = vpop.f32.mrf.mxu0
    %v1440 = vadd.f32 %v1426, %v1439
    %1441 = vdwg.mxu0
    %1442 = vmatpush.bf16.msra.mxu0 %v1046
    %1443 = vmatpush.bf16.msra.mxu0 %v1044
    %1444 = vmatpush.bf16.msra.mxu0 %v1042
    %1445 = vmatpush.bf16.msra.mxu0 %v1040
    %1446 = vmatpush.bf16.msra.mxu0 %v1038
    %1447 = vmatpush.bf16.msra.mxu0 %v1036
    %1448 = vmatpush.bf16.msra.mxu0 %v1034
    %1449 = vmatpush.bf16.msra.mxu0 %v1032
    %1450 = vmatmul.bf16.gmra.mxu0 %v337
    %v1451 = vpop.f32.mrf.mxu0
    %v1452 = vadd.f32 %v1438, %v1451
    %v1453 = vpop.f32.mrf.mxu0
    %v1454 = vadd.f32 %v1440, %v1453
    %1455 = vdwg.mxu0
    %1456 = vmatpush.bf16.msra.mxu0 %v1062
    %1457 = vmatpush.bf16.msra.mxu0 %v1060
    %1458 = vmatpush.bf16.msra.mxu0 %v1058
    %1459 = vmatpush.bf16.msra.mxu0 %v1056
    %1460 = vmatpush.bf16.msra.mxu0 %v1054
    %1461 = vmatpush.bf16.msra.mxu0 %v1052
    %1462 = vmatpush.bf16.msra.mxu0 %v1050
    %1463 = vmatpush.bf16.msra.mxu0 %v1048
    %1464 = vmatmul.bf16.gmra.mxu0 %v338
    %v1465 = vpop.f32.mrf.mxu0
    %v1466 = vadd.f32 %v1452, %v1465
    %v1467 = vpop.f32.mrf.mxu0
    %v1468 = vadd.f32 %v1454, %v1467
    %1469 = vdwg.mxu0
    %1470 = vmatpush.bf16.msra.mxu0 %v1078
    %1471 = vmatpush.bf16.msra.mxu0 %v1076
    %1472 = vmatpush.bf16.msra.mxu0 %v1074
    %1473 = vmatpush.bf16.msra.mxu0 %v1072
    %1474 = vmatpush.bf16.msra.mxu0 %v1070
    %1475 = vmatpush.bf16.msra.mxu0 %v1068
    %1476 = vmatpush.bf16.msra.mxu0 %v1066
    %1477 = vmatpush.bf16.msra.mxu0 %v1064
    %1478 = vmatmul.bf16.gmra.mxu0 %v339
    %v1479 = vpop.f32.mrf.mxu0
    %v1480 = vadd.f32 %v1466, %v1479
    %v1481 = vpop.f32.mrf.mxu0
    %v1482 = vadd.f32 %v1468, %v1481
    %1483 = vdwg.mxu0
    %1484 = vmatpush.bf16.msra.mxu0 %v1094
    %1485 = vmatpush.bf16.msra.mxu0 %v1092
    %1486 = vmatpush.bf16.msra.mxu0 %v1090
    %1487 = vmatpush.bf16.msra.mxu0 %v1088
    %1488 = vmatpush.bf16.msra.mxu0 %v1086
    %1489 = vmatpush.bf16.msra.mxu0 %v1084
    %1490 = vmatpush.bf16.msra.mxu0 %v1082
    %1491 = vmatpush.bf16.msra.mxu0 %v1080
    %1492 = vmatmul.bf16.gmra.mxu0 %v340
    %v1493 = vpop.f32.mrf.mxu0
    %v1494 = vadd.f32 %v1480, %v1493
    %v1495 = vpop.f32.mrf.mxu0
    %v1496 = vadd.f32 %v1482, %v1495
    %1497 = vdwg.mxu0
    %1498 = vmatpush.bf16.msra.mxu0 %v1110
    %1499 = vmatpush.bf16.msra.mxu0 %v1108
    %1500 = vmatpush.bf16.msra.mxu0 %v1106
    %1501 = vmatpush.bf16.msra.mxu0 %v1104
    %1502 = vmatpush.bf16.msra.mxu0 %v1102
    %1503 = vmatpush.bf16.msra.mxu0 %v1100
    %1504 = vmatpush.bf16.msra.mxu0 %v1098
    %1505 = vmatpush.bf16.msra.mxu0 %v1096
    %1506 = vmatmul.bf16.gmra.mxu0 %v341
    %v1507 = vpop.f32.mrf.mxu0
    %v1508 = vadd.f32 %v1494, %v1507
    %v1509 = vpop.f32.mrf.mxu0
    %v1510 = vadd.f32 %v1496, %v1509
    %1511 = vdwg.mxu0
    %1512 = vmatpush.bf16.msra.mxu0 %v1126
    %1513 = vmatpush.bf16.msra.mxu0 %v1124
    %1514 = vmatpush.bf16.msra.mxu0 %v1122
    %1515 = vmatpush.bf16.msra.mxu0 %v1120
    %1516 = vmatpush.bf16.msra.mxu0 %v1118
    %1517 = vmatpush.bf16.msra.mxu0 %v1116
    %1518 = vmatpush.bf16.msra.mxu0 %v1114
    %1519 = vmatpush.bf16.msra.mxu0 %v1112
    %1520 = vmatmul.bf16.gmra.mxu0 %v342
    %v1521 = vpop.f32.mrf.mxu0
    %v1522 = vadd.f32 %v1508, %v1521
    %v1523 = vpop.f32.mrf.mxu0
    %v1524 = vadd.f32 %v1510, %v1523
    %1525 = vdwg.mxu0
    %1526 = vmatpush.bf16.msra.mxu0 %v1142
    %1527 = vmatpush.bf16.msra.mxu0 %v1140
    %1528 = vmatpush.bf16.msra.mxu0 %v1138
    %1529 = vmatpush.bf16.msra.mxu0 %v1136
    %1530 = vmatpush.bf16.msra.mxu0 %v1134
    %1531 = vmatpush.bf16.msra.mxu0 %v1132
    %1532 = vmatpush.bf16.msra.mxu0 %v1130
    %1533 = vmatpush.bf16.msra.mxu0 %v1128
    %1534 = vmatmul.bf16.gmra.mxu0 %v343
    %v1535 = vpop.f32.mrf.mxu0
    %v1536 = vadd.f32 %v1522, %v1535
    %v1537 = vpop.f32.mrf.mxu0
    %v1538 = vadd.f32 %v1524, %v1537
    %1539 = vdwg.mxu0
    %1540 = vmatpush.bf16.msra.mxu0 %v1158
    %1541 = vmatpush.bf16.msra.mxu0 %v1156
    %1542 = vmatpush.bf16.msra.mxu0 %v1154
    %1543 = vmatpush.bf16.msra.mxu0 %v1152
    %1544 = vmatpush.bf16.msra.mxu0 %v1150
    %1545 = vmatpush.bf16.msra.mxu0 %v1148
    %1546 = vmatpush.bf16.msra.mxu0 %v1146
    %1547 = vmatpush.bf16.msra.mxu0 %v1144
    %1548 = vmatmul.bf16.gmra.mxu0 %v344
    %v1549 = vpop.f32.mrf.mxu0
    %v1550 = vadd.f32 %v1536, %v1549
    %v1551 = vpop.f32.mrf.mxu0
    %v1552 = vadd.f32 %v1538, %v1551
    %1553 = vdwg.mxu0
    %1554 = vmatpush.bf16.msra.mxu0 %v1174
    %1555 = vmatpush.bf16.msra.mxu0 %v1172
    %1556 = vmatpush.bf16.msra.mxu0 %v1170
    %1557 = vmatpush.bf16.msra.mxu0 %v1168
    %1558 = vmatpush.bf16.msra.mxu0 %v1166
    %1559 = vmatpush.bf16.msra.mxu0 %v1164
    %1560 = vmatpush.bf16.msra.mxu0 %v1162
    %1561 = vmatpush.bf16.msra.mxu0 %v1160
    %1562 = vmatmul.bf16.gmra.mxu0 %v345
    %v1563 = vpop.f32.mrf.mxu0
    %v1564 = vadd.f32 %v1550, %v1563
    %v1565 = vpop.f32.mrf.mxu0
    %v1566 = vadd.f32 %v1552, %v1565
    %1567 = vdwg.mxu0
    %1568 = vmatpush.bf16.msra.mxu0 %v1190
    %1569 = vmatpush.bf16.msra.mxu0 %v1188
    %1570 = vmatpush.bf16.msra.mxu0 %v1186
    %1571 = vmatpush.bf16.msra.mxu0 %v1184
    %1572 = vmatpush.bf16.msra.mxu0 %v1182
    %1573 = vmatpush.bf16.msra.mxu0 %v1180
    %1574 = vmatpush.bf16.msra.mxu0 %v1178
    %1575 = vmatpush.bf16.msra.mxu0 %v1176
    %1576 = vmatmul.bf16.gmra.mxu0 %v346
    %v1577 = vpop.f32.mrf.mxu0
    %v1578 = vadd.f32 %v1564, %v1577
    %v1579 = vpop.f32.mrf.mxu0
    %v1580 = vadd.f32 %v1566, %v1579
    %1581 = vdwg.mxu0
    %1582 = vmatpush.bf16.msra.mxu0 %v999
    %1583 = vmatpush.bf16.msra.mxu0 %v997
    %1584 = vmatpush.bf16.msra.mxu0 %v995
    %1585 = vmatpush.bf16.msra.mxu0 %v993
    %1586 = vmatpush.bf16.msra.mxu0 %v991
    %1587 = vmatpush.bf16.msra.mxu0 %v989
    %1588 = vmatpush.bf16.msra.mxu0 %v987
    %1589 = vmatpush.bf16.msra.mxu0 %v985
    %1590 = vmatmul.bf16.gmra.mxu0 %v334
    %v1591 = vpop.f32.mrf.mxu0
    %v1592 = vadd.f32 %v291, %v1591
    %v1593 = vpop.f32.mrf.mxu0
    %v1594 = vadd.f32 %v291, %v1593
    %1595 = vdwg.mxu0
    %1596 = vmatpush.bf16.msra.mxu0 %v1015
    %1597 = vmatpush.bf16.msra.mxu0 %v1013
    %1598 = vmatpush.bf16.msra.mxu0 %v1011
    %1599 = vmatpush.bf16.msra.mxu0 %v1009
    %1600 = vmatpush.bf16.msra.mxu0 %v1007
    %1601 = vmatpush.bf16.msra.mxu0 %v1005
    %1602 = vmatpush.bf16.msra.mxu0 %v1003
    %1603 = vmatpush.bf16.msra.mxu0 %v1001
    %1604 = vmatmul.bf16.gmra.mxu0 %v335
    %v1605 = vpop.f32.mrf.mxu0
    %v1606 = vadd.f32 %v1592, %v1605
    %v1607 = vpop.f32.mrf.mxu0
    %v1608 = vadd.f32 %v1594, %v1607
    %1609 = vdwg.mxu0
    %1610 = vmatpush.bf16.msra.mxu0 %v1031
    %1611 = vmatpush.bf16.msra.mxu0 %v1029
    %1612 = vmatpush.bf16.msra.mxu0 %v1027
    %1613 = vmatpush.bf16.msra.mxu0 %v1025
    %1614 = vmatpush.bf16.msra.mxu0 %v1023
    %1615 = vmatpush.bf16.msra.mxu0 %v1021
    %1616 = vmatpush.bf16.msra.mxu0 %v1019
    %1617 = vmatpush.bf16.msra.mxu0 %v1017
    %1618 = vmatmul.bf16.gmra.mxu0 %v336
    %v1619 = vpop.f32.mrf.mxu0
    %v1620 = vadd.f32 %v1606, %v1619
    %v1621 = vpop.f32.mrf.mxu0
    %v1622 = vadd.f32 %v1608, %v1621
    %1623 = vdwg.mxu0
    %1624 = vmatpush.bf16.msra.mxu0 %v1047
    %1625 = vmatpush.bf16.msra.mxu0 %v1045
    %1626 = vmatpush.bf16.msra.mxu0 %v1043
    %1627 = vmatpush.bf16.msra.mxu0 %v1041
    %1628 = vmatpush.bf16.msra.mxu0 %v1039
    %1629 = vmatpush.bf16.msra.mxu0 %v1037
    %1630 = vmatpush.bf16.msra.mxu0 %v1035
    %1631 = vmatpush.bf16.msra.mxu0 %v1033
    %1632 = vmatmul.bf16.gmra.mxu0 %v337
    %v1633 = vpop.f32.mrf.mxu0
    %v1634 = vadd.f32 %v1620, %v1633
    %v1635 = vpop.f32.mrf.mxu0
    %v1636 = vadd.f32 %v1622, %v1635
    %1637 = vdwg.mxu0
    %1638 = vmatpush.bf16.msra.mxu0 %v1063
    %1639 = vmatpush.bf16.msra.mxu0 %v1061
    %1640 = vmatpush.bf16.msra.mxu0 %v1059
    %1641 = vmatpush.bf16.msra.mxu0 %v1057
    %1642 = vmatpush.bf16.msra.mxu0 %v1055
    %1643 = vmatpush.bf16.msra.mxu0 %v1053
    %1644 = vmatpush.bf16.msra.mxu0 %v1051
    %1645 = vmatpush.bf16.msra.mxu0 %v1049
    %1646 = vmatmul.bf16.gmra.mxu0 %v338
    %v1647 = vpop.f32.mrf.mxu0
    %v1648 = vadd.f32 %v1634, %v1647
    %v1649 = vpop.f32.mrf.mxu0
    %v1650 = vadd.f32 %v1636, %v1649
    %1651 = vdwg.mxu0
    %1652 = vmatpush.bf16.msra.mxu0 %v1079
    %1653 = vmatpush.bf16.msra.mxu0 %v1077
    %1654 = vmatpush.bf16.msra.mxu0 %v1075
    %1655 = vmatpush.bf16.msra.mxu0 %v1073
    %1656 = vmatpush.bf16.msra.mxu0 %v1071
    %1657 = vmatpush.bf16.msra.mxu0 %v1069
    %1658 = vmatpush.bf16.msra.mxu0 %v1067
    %1659 = vmatpush.bf16.msra.mxu0 %v1065
    %1660 = vmatmul.bf16.gmra.mxu0 %v339
    %v1661 = vpop.f32.mrf.mxu0
    %v1662 = vadd.f32 %v1648, %v1661
    %v1663 = vpop.f32.mrf.mxu0
    %v1664 = vadd.f32 %v1650, %v1663
    %1665 = vdwg.mxu0
    %1666 = vmatpush.bf16.msra.mxu0 %v1095
    %1667 = vmatpush.bf16.msra.mxu0 %v1093
    %1668 = vmatpush.bf16.msra.mxu0 %v1091
    %1669 = vmatpush.bf16.msra.mxu0 %v1089
    %1670 = vmatpush.bf16.msra.mxu0 %v1087
    %1671 = vmatpush.bf16.msra.mxu0 %v1085
    %1672 = vmatpush.bf16.msra.mxu0 %v1083
    %1673 = vmatpush.bf16.msra.mxu0 %v1081
    %1674 = vmatmul.bf16.gmra.mxu0 %v340
    %v1675 = vpop.f32.mrf.mxu0
    %v1676 = vadd.f32 %v1662, %v1675
    %v1677 = vpop.f32.mrf.mxu0
    %v1678 = vadd.f32 %v1664, %v1677
    %1679 = vdwg.mxu0
    %1680 = vmatpush.bf16.msra.mxu0 %v1111
    %1681 = vmatpush.bf16.msra.mxu0 %v1109
    %1682 = vmatpush.bf16.msra.mxu0 %v1107
    %1683 = vmatpush.bf16.msra.mxu0 %v1105
    %1684 = vmatpush.bf16.msra.mxu0 %v1103
    %1685 = vmatpush.bf16.msra.mxu0 %v1101
    %1686 = vmatpush.bf16.msra.mxu0 %v1099
    %1687 = vmatpush.bf16.msra.mxu0 %v1097
    %1688 = vmatmul.bf16.gmra.mxu0 %v341
    %v1689 = vpop.f32.mrf.mxu0
    %v1690 = vadd.f32 %v1676, %v1689
    %v1691 = vpop.f32.mrf.mxu0
    %v1692 = vadd.f32 %v1678, %v1691
    %1693 = vdwg.mxu0
    %1694 = vmatpush.bf16.msra.mxu0 %v1127
    %1695 = vmatpush.bf16.msra.mxu0 %v1125
    %1696 = vmatpush.bf16.msra.mxu0 %v1123
    %1697 = vmatpush.bf16.msra.mxu0 %v1121
    %1698 = vmatpush.bf16.msra.mxu0 %v1119
    %1699 = vmatpush.bf16.msra.mxu0 %v1117
    %1700 = vmatpush.bf16.msra.mxu0 %v1115
    %1701 = vmatpush.bf16.msra.mxu0 %v1113
    %1702 = vmatmul.bf16.gmra.mxu0 %v342
    %v1703 = vpop.f32.mrf.mxu0
    %v1704 = vadd.f32 %v1690, %v1703
    %v1705 = vpop.f32.mrf.mxu0
    %v1706 = vadd.f32 %v1692, %v1705
    %1707 = vdwg.mxu0
    %1708 = vmatpush.bf16.msra.mxu0 %v1143
    %1709 = vmatpush.bf16.msra.mxu0 %v1141
    %1710 = vmatpush.bf16.msra.mxu0 %v1139
    %1711 = vmatpush.bf16.msra.mxu0 %v1137
    %1712 = vmatpush.bf16.msra.mxu0 %v1135
    %1713 = vmatpush.bf16.msra.mxu0 %v1133
    %1714 = vmatpush.bf16.msra.mxu0 %v1131
    %1715 = vmatpush.bf16.msra.mxu0 %v1129
    %1716 = vmatmul.bf16.gmra.mxu0 %v343
    %v1717 = vpop.f32.mrf.mxu0
    %v1718 = vadd.f32 %v1704, %v1717
    %v1719 = vpop.f32.mrf.mxu0
    %v1720 = vadd.f32 %v1706, %v1719
    %1721 = vdwg.mxu0
    %1722 = vmatpush.bf16.msra.mxu0 %v1159
    %1723 = vmatpush.bf16.msra.mxu0 %v1157
    %1724 = vmatpush.bf16.msra.mxu0 %v1155
    %1725 = vmatpush.bf16.msra.mxu0 %v1153
    %1726 = vmatpush.bf16.msra.mxu0 %v1151
    %1727 = vmatpush.bf16.msra.mxu0 %v1149
    %1728 = vmatpush.bf16.msra.mxu0 %v1147
    %1729 = vmatpush.bf16.msra.mxu0 %v1145
    %1730 = vmatmul.bf16.gmra.mxu0 %v344
    %v1731 = vpop.f32.mrf.mxu0
    %v1732 = vadd.f32 %v1718, %v1731
    %v1733 = vpop.f32.mrf.mxu0
    %v1734 = vadd.f32 %v1720, %v1733
    %1735 = vdwg.mxu0
    %1736 = vmatpush.bf16.msra.mxu0 %v1175
    %1737 = vmatpush.bf16.msra.mxu0 %v1173
    %1738 = vmatpush.bf16.msra.mxu0 %v1171
    %1739 = vmatpush.bf16.msra.mxu0 %v1169
    %1740 = vmatpush.bf16.msra.mxu0 %v1167
    %1741 = vmatpush.bf16.msra.mxu0 %v1165
    %1742 = vmatpush.bf16.msra.mxu0 %v1163
    %1743 = vmatpush.bf16.msra.mxu0 %v1161
    %1744 = vmatmul.bf16.gmra.mxu0 %v345
    %v1745 = vpop.f32.mrf.mxu0
    %v1746 = vadd.f32 %v1732, %v1745
    %v1747 = vpop.f32.mrf.mxu0
    %v1748 = vadd.f32 %v1734, %v1747
    %1749 = vdwg.mxu0
    %1750 = vmatpush.bf16.msra.mxu0 %v1191
    %1751 = vmatpush.bf16.msra.mxu0 %v1189
    %1752 = vmatpush.bf16.msra.mxu0 %v1187
    %1753 = vmatpush.bf16.msra.mxu0 %v1185
    %1754 = vmatpush.bf16.msra.mxu0 %v1183
    %1755 = vmatpush.bf16.msra.mxu0 %v1181
    %1756 = vmatpush.bf16.msra.mxu0 %v1179
    %1757 = vmatpush.bf16.msra.mxu0 %v1177
    %1758 = vmatmul.bf16.gmra.mxu0 %v346
    %v1759 = vpop.f32.mrf.mxu0
    %v1760 = vadd.f32 %v1746, %v1759
    %v1761 = vpop.f32.mrf.mxu0
    %v1762 = vadd.f32 %v1748, %v1761
    %1763 = vdwg.mxu0
    %v1764 = vmax.f32 %v1578, 0.0
    %v1765 = vmax.f32 %v1760, 0.0
    %v1766 = vmax.f32 %v1580, 0.0
    %v1767 = vmax.f32 %v1762, 0.0
    %v1768 = vpack.c.bf16 %v1766, %v1764
    %v1769 = vpack.c.bf16 %v1767, %v1765
    %v1770 = vld [vmem:[%s3] sm:$0xff]
    %v1771 = vld [vmem:[%s3 + $0x8] sm:$0xff]
    %v1772 = vld [vmem:[%s3 + $0x10] sm:$0xff]
    %v1773 = vld [vmem:[%s3 + $0x18] sm:$0xff]
    %v1774 = vld [vmem:[%s3 + $0x20] sm:$0xff]
    %v1775 = vld [vmem:[%s3 + $0x28] sm:$0xff]
    %v1776 = vld [vmem:[%s3 + $0x30] sm:$0xff]
    %v1777 = vld [vmem:[%s3 + $0x38] sm:$0xff]
    %v1778 = vld [vmem:[%s3 + $0x40] sm:$0xff]
    %v1779 = vld [vmem:[%s3 + $0x48] sm:$0xff]
    %v1780 = vld [vmem:[%s3 + $0x50] sm:$0xff]
    %v1781 = vld [vmem:[%s3 + $0x58] sm:$0xff]
    %v1782 = vld [vmem:[%s3 + $0x60] sm:$0xff]
    %v1783 = vld [vmem:[%s3 + $0x68] sm:$0xff]
    %v1784 = vld [vmem:[%s3 + $0x70] sm:$0xff]
    %v1785 = vld [vmem:[%s3 + $0x78] sm:$0xff]
    %v1786 = vld [vmem:[%s3 + $0x80] sm:$0xff]
    %v1787 = vld [vmem:[%s3 + $0x88] sm:$0xff]
    %v1788 = vld [vmem:[%s3 + $0x90] sm:$0xff]
    %v1789 = vld [vmem:[%s3 + $0x98] sm:$0xff]
    %v1790 = vld [vmem:[%s3 + $0xa0] sm:$0xff]
    %v1791 = vld [vmem:[%s3 + $0xa8] sm:$0xff]
    %v1792 = vld [vmem:[%s3 + $0xb0] sm:$0xff]
    %v1793 = vld [vmem:[%s3 + $0xb8] sm:$0xff]
    %v1794 = vld [vmem:[%s3 + $0xc0] sm:$0xff]
    %v1795 = vld [vmem:[%s3 + $0xc8] sm:$0xff]
    %v1796 = vld [vmem:[%s3 + $0xd0] sm:$0xff]
    %v1797 = vld [vmem:[%s3 + $0xd8] sm:$0xff]
    %v1798 = vld [vmem:[%s3 + $0xe0] sm:$0xff]
    %v1799 = vld [vmem:[%s3 + $0xe8] sm:$0xff]
    %v1800 = vld [vmem:[%s3 + $0xf0] sm:$0xff]
    %v1801 = vld [vmem:[%s3 + $0xf8] sm:$0xff]
    %v1802 = vld [vmem:[%s3 + $0x100] sm:$0xff]
    %v1803 = vld [vmem:[%s3 + $0x108] sm:$0xff]
    %v1804 = vld [vmem:[%s3 + $0x110] sm:$0xff]
    %v1805 = vld [vmem:[%s3 + $0x118] sm:$0xff]
    %v1806 = vld [vmem:[%s3 + $0x120] sm:$0xff]
    %v1807 = vld [vmem:[%s3 + $0x128] sm:$0xff]
    %v1808 = vld [vmem:[%s3 + $0x130] sm:$0xff]
    %v1809 = vld [vmem:[%s3 + $0x138] sm:$0xff]
    %v1810 = vld [vmem:[%s3 + $0x140] sm:$0xff]
    %v1811 = vld [vmem:[%s3 + $0x148] sm:$0xff]
    %v1812 = vld [vmem:[%s3 + $0x150] sm:$0xff]
    %v1813 = vld [vmem:[%s3 + $0x158] sm:$0xff]
    %v1814 = vld [vmem:[%s3 + $0x160] sm:$0xff]
    %v1815 = vld [vmem:[%s3 + $0x168] sm:$0xff]
    %v1816 = vld [vmem:[%s3 + $0x170] sm:$0xff]
    %v1817 = vld [vmem:[%s3 + $0x178] sm:$0xff]
    %v1818 = vld [vmem:[%s3 + $0x180] sm:$0xff]
    %v1819 = vld [vmem:[%s3 + $0x188] sm:$0xff]
    %v1820 = vld [vmem:[%s3 + $0x190] sm:$0xff]
    %v1821 = vld [vmem:[%s3 + $0x198] sm:$0xff]
    %v1822 = vld [vmem:[%s3 + $0x1a0] sm:$0xff]
    %v1823 = vld [vmem:[%s3 + $0x1a8] sm:$0xff]
    %v1824 = vld [vmem:[%s3 + $0x1b0] sm:$0xff]
    %v1825 = vld [vmem:[%s3 + $0x1b8] sm:$0xff]
    %v1826 = vld [vmem:[%s3 + $0x1c0] sm:$0xff]
    %v1827 = vld [vmem:[%s3 + $0x1c8] sm:$0xff]
    %v1828 = vld [vmem:[%s3 + $0x1d0] sm:$0xff]
    %v1829 = vld [vmem:[%s3 + $0x1d8] sm:$0xff]
    %v1830 = vld [vmem:[%s3 + $0x1e0] sm:$0xff]
    %v1831 = vld [vmem:[%s3 + $0x1e8] sm:$0xff]
    %v1832 = vld [vmem:[%s3 + $0x1f0] sm:$0xff]
    %v1833 = vld [vmem:[%s3 + $0x1f8] sm:$0xff]
    %v1834 = vld [vmem:[%s3 + $0x200] sm:$0xff]
    %v1835 = vld [vmem:[%s3 + $0x208] sm:$0xff]
    %v1836 = vld [vmem:[%s3 + $0x210] sm:$0xff]
    %v1837 = vld [vmem:[%s3 + $0x218] sm:$0xff]
    %v1838 = vld [vmem:[%s3 + $0x220] sm:$0xff]
    %v1839 = vld [vmem:[%s3 + $0x228] sm:$0xff]
    %v1840 = vld [vmem:[%s3 + $0x230] sm:$0xff]
    %v1841 = vld [vmem:[%s3 + $0x238] sm:$0xff]
    %v1842 = vld [vmem:[%s3 + $0x240] sm:$0xff]
    %v1843 = vld [vmem:[%s3 + $0x248] sm:$0xff]
    %v1844 = vld [vmem:[%s3 + $0x250] sm:$0xff]
    %v1845 = vld [vmem:[%s3 + $0x258] sm:$0xff]
    %v1846 = vld [vmem:[%s3 + $0x260] sm:$0xff]
    %v1847 = vld [vmem:[%s3 + $0x268] sm:$0xff]
    %v1848 = vld [vmem:[%s3 + $0x270] sm:$0xff]
    %v1849 = vld [vmem:[%s3 + $0x278] sm:$0xff]
    %v1850 = vld [vmem:[%s3 + $0x280] sm:$0xff]
    %v1851 = vld [vmem:[%s3 + $0x288] sm:$0xff]
    %v1852 = vld [vmem:[%s3 + $0x290] sm:$0xff]
    %v1853 = vld [vmem:[%s3 + $0x298] sm:$0xff]
    %v1854 = vld [vmem:[%s3 + $0x2a0] sm:$0xff]
    %v1855 = vld [vmem:[%s3 + $0x2a8] sm:$0xff]
    %v1856 = vld [vmem:[%s3 + $0x2b0] sm:$0xff]
    %v1857 = vld [vmem:[%s3 + $0x2b8] sm:$0xff]
    %v1858 = vld [vmem:[%s3 + $0x2c0] sm:$0xff]
    %v1859 = vld [vmem:[%s3 + $0x2c8] sm:$0xff]
    %v1860 = vld [vmem:[%s3 + $0x2d0] sm:$0xff]
    %v1861 = vld [vmem:[%s3 + $0x2d8] sm:$0xff]
    %v1862 = vld [vmem:[%s3 + $0x2e0] sm:$0xff]
    %v1863 = vld [vmem:[%s3 + $0x2e8] sm:$0xff]
    %v1864 = vld [vmem:[%s3 + $0x2f0] sm:$0xff]
    %v1865 = vld [vmem:[%s3 + $0x2f8] sm:$0xff]
    %v1866 = vld [vmem:[%s3 + $0x300] sm:$0xff]
    %v1867 = vld [vmem:[%s3 + $0x308] sm:$0xff]
    %v1868 = vld [vmem:[%s3 + $0x310] sm:$0xff]
    %v1869 = vld [vmem:[%s3 + $0x318] sm:$0xff]
    %v1870 = vld [vmem:[%s3 + $0x320] sm:$0xff]
    %v1871 = vld [vmem:[%s3 + $0x328] sm:$0xff]
    %v1872 = vld [vmem:[%s3 + $0x330] sm:$0xff]
    %v1873 = vld [vmem:[%s3 + $0x338] sm:$0xff]
    %v1874 = vld [vmem:[%s3 + $0x340] sm:$0xff]
    %v1875 = vld [vmem:[%s3 + $0x348] sm:$0xff]
    %v1876 = vld [vmem:[%s3 + $0x350] sm:$0xff]
    %v1877 = vld [vmem:[%s3 + $0x358] sm:$0xff]
    %v1878 = vld [vmem:[%s3 + $0x360] sm:$0xff]
    %v1879 = vld [vmem:[%s3 + $0x368] sm:$0xff]
    %v1880 = vld [vmem:[%s3 + $0x370] sm:$0xff]
    %v1881 = vld [vmem:[%s3 + $0x378] sm:$0xff]
    %v1882 = vld [vmem:[%s3 + $0x380] sm:$0xff]
    %v1883 = vld [vmem:[%s3 + $0x388] sm:$0xff]
    %v1884 = vld [vmem:[%s3 + $0x390] sm:$0xff]
    %v1885 = vld [vmem:[%s3 + $0x398] sm:$0xff]
    %v1886 = vld [vmem:[%s3 + $0x3a0] sm:$0xff]
    %v1887 = vld [vmem:[%s3 + $0x3a8] sm:$0xff]
    %v1888 = vld [vmem:[%s3 + $0x3b0] sm:$0xff]
    %v1889 = vld [vmem:[%s3 + $0x3b8] sm:$0xff]
    %v1890 = vld [vmem:[%s3 + $0x3c0] sm:$0xff]
    %v1891 = vld [vmem:[%s3 + $0x3c8] sm:$0xff]
    %v1892 = vld [vmem:[%s3 + $0x3d0] sm:$0xff]
    %v1893 = vld [vmem:[%s3 + $0x3d8] sm:$0xff]
    %v1894 = vld [vmem:[%s3 + $0x3e0] sm:$0xff]
    %v1895 = vld [vmem:[%s3 + $0x3e8] sm:$0xff]
    %v1896 = vld [vmem:[%s3 + $0x3f0] sm:$0xff]
    %v1897 = vld [vmem:[%s3 + $0x3f8] sm:$0xff]
    %v1898 = vld [vmem:[%s4] sm:$0xff]
    %v1900 = vperm.slane %v1898, 0
    %v1901 = vperm.slane %v1898, 1
    %v1902 = vperm.slane %v1898, 2
    %v1903 = vperm.slane %v1898, 3
    %v1904 = vperm.slane %v1898, 4
    %v1905 = vperm.slane %v1898, 5
    %v1906 = vperm.slane %v1898, 6
    %v1907 = vperm.slane %v1898, 7
    %v2044 = vunpack.c.l.b16 %v1770
    %v2045 = vunpack.c.h.b16 %v1770
    %v2046 = vunpack.c.l.b16 %v1771
    %v2047 = vunpack.c.h.b16 %v1771
    %v2048 = vunpack.c.l.b16 %v1772
    %v2049 = vunpack.c.h.b16 %v1772
    %v2050 = vunpack.c.l.b16 %v1773
    %v2051 = vunpack.c.h.b16 %v1773
    %v2052 = vunpack.c.l.b16 %v1774
    %v2053 = vunpack.c.h.b16 %v1774
    %v2054 = vunpack.c.l.b16 %v1775
    %v2055 = vunpack.c.h.b16 %v1775
    %v2056 = vunpack.c.l.b16 %v1776
    %v2057 = vunpack.c.h.b16 %v1776
    %v2058 = vunpack.c.l.b16 %v1777
    %v2059 = vunpack.c.h.b16 %v1777
    %v2060 = vunpack.c.l.b16 %v1778
    %v2061 = vunpack.c.h.b16 %v1778
    %v2062 = vunpack.c.l.b16 %v1779
    %v2063 = vunpack.c.h.b16 %v1779
    %v2064 = vunpack.c.l.b16 %v1780
    %v2065 = vunpack.c.h.b16 %v1780
    %v2066 = vunpack.c.l.b16 %v1781
    %v2067 = vunpack.c.h.b16 %v1781
    %v2068 = vunpack.c.l.b16 %v1782
    %v2069 = vunpack.c.h.b16 %v1782
    %v2070 = vunpack.c.l.b16 %v1783
    %v2071 = vunpack.c.h.b16 %v1783
    %v2072 = vunpack.c.l.b16 %v1784
    %v2073 = vunpack.c.h.b16 %v1784
    %v2074 = vunpack.c.l.b16 %v1785
    %v2075 = vunpack.c.h.b16 %v1785
    %v2076 = vunpack.c.l.b16 %v1786
    %v2077 = vunpack.c.h.b16 %v1786
    %v2078 = vunpack.c.l.b16 %v1787
    %v2079 = vunpack.c.h.b16 %v1787
    %v2080 = vunpack.c.l.b16 %v1788
    %v2081 = vunpack.c.h.b16 %v1788
    %v2082 = vunpack.c.l.b16 %v1789
    %v2083 = vunpack.c.h.b16 %v1789
    %v2084 = vunpack.c.l.b16 %v1790
    %v2085 = vunpack.c.h.b16 %v1790
    %v2086 = vunpack.c.l.b16 %v1791
    %v2087 = vunpack.c.h.b16 %v1791
    %v2088 = vunpack.c.l.b16 %v1792
    %v2089 = vunpack.c.h.b16 %v1792
    %v2090 = vunpack.c.l.b16 %v1793
    %v2091 = vunpack.c.h.b16 %v1793
    %v2092 = vunpack.c.l.b16 %v1794
    %v2093 = vunpack.c.h.b16 %v1794
    %v2094 = vunpack.c.l.b16 %v1795
    %v2095 = vunpack.c.h.b16 %v1795
    %v2096 = vunpack.c.l.b16 %v1796
    %v2097 = vunpack.c.h.b16 %v1796
    %v2098 = vunpack.c.l.b16 %v1797
    %v2099 = vunpack.c.h.b16 %v1797
    %v2100 = vunpack.c.l.b16 %v1798
    %v2101 = vunpack.c.h.b16 %v1798
    %v2102 = vunpack.c.l.b16 %v1799
    %v2103 = vunpack.c.h.b16 %v1799
    %v2104 = vunpack.c.l.b16 %v1800
    %v2105 = vunpack.c.h.b16 %v1800
    %v2106 = vunpack.c.l.b16 %v1801
    %v2107 = vunpack.c.h.b16 %v1801
    %v2108 = vunpack.c.l.b16 %v1802
    %v2109 = vunpack.c.h.b16 %v1802
    %v2110 = vunpack.c.l.b16 %v1803
    %v2111 = vunpack.c.h.b16 %v1803
    %v2112 = vunpack.c.l.b16 %v1804
    %v2113 = vunpack.c.h.b16 %v1804
    %v2114 = vunpack.c.l.b16 %v1805
    %v2115 = vunpack.c.h.b16 %v1805
    %v2116 = vunpack.c.l.b16 %v1806
    %v2117 = vunpack.c.h.b16 %v1806
    %v2118 = vunpack.c.l.b16 %v1807
    %v2119 = vunpack.c.h.b16 %v1807
    %v2120 = vunpack.c.l.b16 %v1808
    %v2121 = vunpack.c.h.b16 %v1808
    %v2122 = vunpack.c.l.b16 %v1809
    %v2123 = vunpack.c.h.b16 %v1809
    %v2124 = vunpack.c.l.b16 %v1810
    %v2125 = vunpack.c.h.b16 %v1810
    %v2126 = vunpack.c.l.b16 %v1811
    %v2127 = vunpack.c.h.b16 %v1811
    %v2128 = vunpack.c.l.b16 %v1812
    %v2129 = vunpack.c.h.b16 %v1812
    %v2130 = vunpack.c.l.b16 %v1813
    %v2131 = vunpack.c.h.b16 %v1813
    %v2132 = vunpack.c.l.b16 %v1814
    %v2133 = vunpack.c.h.b16 %v1814
    %v2134 = vunpack.c.l.b16 %v1815
    %v2135 = vunpack.c.h.b16 %v1815
    %v2136 = vunpack.c.l.b16 %v1816
    %v2137 = vunpack.c.h.b16 %v1816
    %v2138 = vunpack.c.l.b16 %v1817
    %v2139 = vunpack.c.h.b16 %v1817
    %v2140 = vunpack.c.l.b16 %v1818
    %v2141 = vunpack.c.h.b16 %v1818
    %v2142 = vunpack.c.l.b16 %v1819
    %v2143 = vunpack.c.h.b16 %v1819
    %v2144 = vunpack.c.l.b16 %v1820
    %v2145 = vunpack.c.h.b16 %v1820
    %v2146 = vunpack.c.l.b16 %v1821
    %v2147 = vunpack.c.h.b16 %v1821
    %v2148 = vunpack.c.l.b16 %v1822
    %v2149 = vunpack.c.h.b16 %v1822
    %v2150 = vunpack.c.l.b16 %v1823
    %v2151 = vunpack.c.h.b16 %v1823
    %v2152 = vunpack.c.l.b16 %v1824
    %v2153 = vunpack.c.h.b16 %v1824
    %v2154 = vunpack.c.l.b16 %v1825
    %v2155 = vunpack.c.h.b16 %v1825
    %v2156 = vunpack.c.l.b16 %v1826
    %v2157 = vunpack.c.h.b16 %v1826
    %v2158 = vunpack.c.l.b16 %v1827
    %v2159 = vunpack.c.h.b16 %v1827
    %v2160 = vunpack.c.l.b16 %v1828
    %v2161 = vunpack.c.h.b16 %v1828
    %v2162 = vunpack.c.l.b16 %v1829
    %v2163 = vunpack.c.h.b16 %v1829
    %v2164 = vunpack.c.l.b16 %v1830
    %v2165 = vunpack.c.h.b16 %v1830
    %v2166 = vunpack.c.l.b16 %v1831
    %v2167 = vunpack.c.h.b16 %v1831
    %v2168 = vunpack.c.l.b16 %v1832
    %v2169 = vunpack.c.h.b16 %v1832
    %v2170 = vunpack.c.l.b16 %v1833
    %v2171 = vunpack.c.h.b16 %v1833
    %v2172 = vunpack.c.l.b16 %v1834
    %v2173 = vunpack.c.h.b16 %v1834
    %v2174 = vunpack.c.l.b16 %v1835
    %v2175 = vunpack.c.h.b16 %v1835
    %v2176 = vunpack.c.l.b16 %v1836
    %v2177 = vunpack.c.h.b16 %v1836
    %v2178 = vunpack.c.l.b16 %v1837
    %v2179 = vunpack.c.h.b16 %v1837
    %v2180 = vunpack.c.l.b16 %v1838
    %v2181 = vunpack.c.h.b16 %v1838
    %v2182 = vunpack.c.l.b16 %v1839
    %v2183 = vunpack.c.h.b16 %v1839
    %v2184 = vunpack.c.l.b16 %v1840
    %v2185 = vunpack.c.h.b16 %v1840
    %v2186 = vunpack.c.l.b16 %v1841
    %v2187 = vunpack.c.h.b16 %v1841
    %v2188 = vunpack.c.l.b16 %v1842
    %v2189 = vunpack.c.h.b16 %v1842
    %v2190 = vunpack.c.l.b16 %v1843
    %v2191 = vunpack.c.h.b16 %v1843
    %v2192 = vunpack.c.l.b16 %v1844
    %v2193 = vunpack.c.h.b16 %v1844
    %v2194 = vunpack.c.l.b16 %v1845
    %v2195 = vunpack.c.h.b16 %v1845
    %v2196 = vunpack.c.l.b16 %v1846
    %v2197 = vunpack.c.h.b16 %v1846
    %v2198 = vunpack.c.l.b16 %v1847
    %v2199 = vunpack.c.h.b16 %v1847
    %v2200 = vunpack.c.l.b16 %v1848
    %v2201 = vunpack.c.h.b16 %v1848
    %v2202 = vunpack.c.l.b16 %v1849
    %v2203 = vunpack.c.h.b16 %v1849
    %v2204 = vunpack.c.l.b16 %v1850
    %v2205 = vunpack.c.h.b16 %v1850
    %v2206 = vunpack.c.l.b16 %v1851
    %v2207 = vunpack.c.h.b16 %v1851
    %v2208 = vunpack.c.l.b16 %v1852
    %v2209 = vunpack.c.h.b16 %v1852
    %v2210 = vunpack.c.l.b16 %v1853
    %v2211 = vunpack.c.h.b16 %v1853
    %v2212 = vunpack.c.l.b16 %v1854
    %v2213 = vunpack.c.h.b16 %v1854
    %v2214 = vunpack.c.l.b16 %v1855
    %v2215 = vunpack.c.h.b16 %v1855
    %v2216 = vunpack.c.l.b16 %v1856
    %v2217 = vunpack.c.h.b16 %v1856
    %v2218 = vunpack.c.l.b16 %v1857
    %v2219 = vunpack.c.h.b16 %v1857
    %v2220 = vunpack.c.l.b16 %v1858
    %v2221 = vunpack.c.h.b16 %v1858
    %v2222 = vunpack.c.l.b16 %v1859
    %v2223 = vunpack.c.h.b16 %v1859
    %v2224 = vunpack.c.l.b16 %v1860
    %v2225 = vunpack.c.h.b16 %v1860
    %v2226 = vunpack.c.l.b16 %v1861
    %v2227 = vunpack.c.h.b16 %v1861
    %v2228 = vunpack.c.l.b16 %v1862
    %v2229 = vunpack.c.h.b16 %v1862
    %v2230 = vunpack.c.l.b16 %v1863
    %v2231 = vunpack.c.h.b16 %v1863
    %v2232 = vunpack.c.l.b16 %v1864
    %v2233 = vunpack.c.h.b16 %v1864
    %v2234 = vunpack.c.l.b16 %v1865
    %v2235 = vunpack.c.h.b16 %v1865
    %v2236 = vunpack.c.l.b16 %v1866
    %v2237 = vunpack.c.h.b16 %v1866
    %v2238 = vunpack.c.l.b16 %v1867
    %v2239 = vunpack.c.h.b16 %v1867
    %v2240 = vunpack.c.l.b16 %v1868
    %v2241 = vunpack.c.h.b16 %v1868
    %v2242 = vunpack.c.l.b16 %v1869
    %v2243 = vunpack.c.h.b16 %v1869
    %v2244 = vunpack.c.l.b16 %v1870
    %v2245 = vunpack.c.h.b16 %v1870
    %v2246 = vunpack.c.l.b16 %v1871
    %v2247 = vunpack.c.h.b16 %v1871
    %v2248 = vunpack.c.l.b16 %v1872
    %v2249 = vunpack.c.h.b16 %v1872
    %v2250 = vunpack.c.l.b16 %v1873
    %v2251 = vunpack.c.h.b16 %v1873
    %v2252 = vunpack.c.l.b16 %v1874
    %v2253 = vunpack.c.h.b16 %v1874
    %v2254 = vunpack.c.l.b16 %v1875
    %v2255 = vunpack.c.h.b16 %v1875
    %v2256 = vunpack.c.l.b16 %v1876
    %v2257 = vunpack.c.h.b16 %v1876
    %v2258 = vunpack.c.l.b16 %v1877
    %v2259 = vunpack.c.h.b16 %v1877
    %v2260 = vunpack.c.l.b16 %v1878
    %v2261 = vunpack.c.h.b16 %v1878
    %v2262 = vunpack.c.l.b16 %v1879
    %v2263 = vunpack.c.h.b16 %v1879
    %v2264 = vunpack.c.l.b16 %v1880
    %v2265 = vunpack.c.h.b16 %v1880
    %v2266 = vunpack.c.l.b16 %v1881
    %v2267 = vunpack.c.h.b16 %v1881
    %v2268 = vunpack.c.l.b16 %v1882
    %v2269 = vunpack.c.h.b16 %v1882
    %v2270 = vunpack.c.l.b16 %v1883
    %v2271 = vunpack.c.h.b16 %v1883
    %v2272 = vunpack.c.l.b16 %v1884
    %v2273 = vunpack.c.h.b16 %v1884
    %v2274 = vunpack.c.l.b16 %v1885
    %v2275 = vunpack.c.h.b16 %v1885
    %v2276 = vunpack.c.l.b16 %v1886
    %v2277 = vunpack.c.h.b16 %v1886
    %v2278 = vunpack.c.l.b16 %v1887
    %v2279 = vunpack.c.h.b16 %v1887
    %v2280 = vunpack.c.l.b16 %v1888
    %v2281 = vunpack.c.h.b16 %v1888
    %v2282 = vunpack.c.l.b16 %v1889
    %v2283 = vunpack.c.h.b16 %v1889
    %v2284 = vunpack.c.l.b16 %v1890
    %v2285 = vunpack.c.h.b16 %v1890
    %v2286 = vunpack.c.l.b16 %v1891
    %v2287 = vunpack.c.h.b16 %v1891
    %v2288 = vunpack.c.l.b16 %v1892
    %v2289 = vunpack.c.h.b16 %v1892
    %v2290 = vunpack.c.l.b16 %v1893
    %v2291 = vunpack.c.h.b16 %v1893
    %v2292 = vunpack.c.l.b16 %v1894
    %v2293 = vunpack.c.h.b16 %v1894
    %v2294 = vunpack.c.l.b16 %v1895
    %v2295 = vunpack.c.h.b16 %v1895
    %v2296 = vunpack.c.l.b16 %v1896
    %v2297 = vunpack.c.h.b16 %v1896
    %v2298 = vunpack.c.l.b16 %v1897
    %v2299 = vunpack.c.h.b16 %v1897
    %v2300 = vpack.c.b16 %v2052, %v2044
    %v2301 = vpack.c.b16 %v2053, %v2045
    %v2302 = vpack.c.b16 %v2054, %v2046
    %v2303 = vpack.c.b16 %v2055, %v2047
    %v2304 = vpack.c.b16 %v2056, %v2048
    %v2305 = vpack.c.b16 %v2057, %v2049
    %v2306 = vpack.c.b16 %v2058, %v2050
    %v2307 = vpack.c.b16 %v2059, %v2051
    %v2308 = vpack.c.b16 %v2068, %v2060
    %v2309 = vpack.c.b16 %v2069, %v2061
    %v2310 = vpack.c.b16 %v2070, %v2062
    %v2311 = vpack.c.b16 %v2071, %v2063
    %v2312 = vpack.c.b16 %v2072, %v2064
    %v2313 = vpack.c.b16 %v2073, %v2065
    %v2314 = vpack.c.b16 %v2074, %v2066
    %v2315 = vpack.c.b16 %v2075, %v2067
    %v2316 = vpack.c.b16 %v2084, %v2076
    %v2317 = vpack.c.b16 %v2085, %v2077
    %v2318 = vpack.c.b16 %v2086, %v2078
    %v2319 = vpack.c.b16 %v2087, %v2079
    %v2320 = vpack.c.b16 %v2088, %v2080
    %v2321 = vpack.c.b16 %v2089, %v2081
    %v2322 = vpack.c.b16 %v2090, %v2082
    %v2323 = vpack.c.b16 %v2091, %v2083
    %v2324 = vpack.c.b16 %v2100, %v2092
    %v2325 = vpack.c.b16 %v2101, %v2093
    %v2326 = vpack.c.b16 %v2102, %v2094
    %v2327 = vpack.c.b16 %v2103, %v2095
    %v2328 = vpack.c.b16 %v2104, %v2096
    %v2329 = vpack.c.b16 %v2105, %v2097
    %v2330 = vpack.c.b16 %v2106, %v2098
    %v2331 = vpack.c.b16 %v2107, %v2099
    %v2332 = vpack.c.b16 %v2116, %v2108
    %v2333 = vpack.c.b16 %v2117, %v2109
    %v2334 = vpack.c.b16 %v2118, %v2110
    %v2335 = vpack.c.b16 %v2119, %v2111
    %v2336 = vpack.c.b16 %v2120, %v2112
    %v2337 = vpack.c.b16 %v2121, %v2113
    %v2338 = vpack.c.b16 %v2122, %v2114
    %v2339 = vpack.c.b16 %v2123, %v2115
    %v2340 = vpack.c.b16 %v2132, %v2124
    %v2341 = vpack.c.b16 %v2133, %v2125
    %v2342 = vpack.c.b16 %v2134, %v2126
    %v2343 = vpack.c.b16 %v2135, %v2127
    %v2344 = vpack.c.b16 %v2136, %v2128
    %v2345 = vpack.c.b16 %v2137, %v2129
    %v2346 = vpack.c.b16 %v2138, %v2130
    %v2347 = vpack.c.b16 %v2139, %v2131
    %v2348 = vpack.c.b16 %v2148, %v2140
    %v2349 = vpack.c.b16 %v2149, %v2141
    %v2350 = vpack.c.b16 %v2150, %v2142
    %v2351 = vpack.c.b16 %v2151, %v2143
    %v2352 = vpack.c.b16 %v2152, %v2144
    %v2353 = vpack.c.b16 %v2153, %v2145
    %v2354 = vpack.c.b16 %v2154, %v2146
    %v2355 = vpack.c.b16 %v2155, %v2147
    %v2356 = vpack.c.b16 %v2164, %v2156
    %v2357 = vpack.c.b16 %v2165, %v2157
    %v2358 = vpack.c.b16 %v2166, %v2158
    %v2359 = vpack.c.b16 %v2167, %v2159
    %v2360 = vpack.c.b16 %v2168, %v2160
    %v2361 = vpack.c.b16 %v2169, %v2161
    %v2362 = vpack.c.b16 %v2170, %v2162
    %v2363 = vpack.c.b16 %v2171, %v2163
    %v2364 = vpack.c.b16 %v2180, %v2172
    %v2365 = vpack.c.b16 %v2181, %v2173
    %v2366 = vpack.c.b16 %v2182, %v2174
    %v2367 = vpack.c.b16 %v2183, %v2175
    %v2368 = vpack.c.b16 %v2184, %v2176
    %v2369 = vpack.c.b16 %v2185, %v2177
    %v2370 = vpack.c.b16 %v2186, %v2178
    %v2371 = vpack.c.b16 %v2187, %v2179
    %v2372 = vpack.c.b16 %v2196, %v2188
    %v2373 = vpack.c.b16 %v2197, %v2189
    %v2374 = vpack.c.b16 %v2198, %v2190
    %v2375 = vpack.c.b16 %v2199, %v2191
    %v2376 = vpack.c.b16 %v2200, %v2192
    %v2377 = vpack.c.b16 %v2201, %v2193
    %v2378 = vpack.c.b16 %v2202, %v2194
    %v2379 = vpack.c.b16 %v2203, %v2195
    %v2380 = vpack.c.b16 %v2212, %v2204
    %v2381 = vpack.c.b16 %v2213, %v2205
    %v2382 = vpack.c.b16 %v2214, %v2206
    %v2383 = vpack.c.b16 %v2215, %v2207
    %v2384 = vpack.c.b16 %v2216, %v2208
    %v2385 = vpack.c.b16 %v2217, %v2209
    %v2386 = vpack.c.b16 %v2218, %v2210
    %v2387 = vpack.c.b16 %v2219, %v2211
    %v2388 = vpack.c.b16 %v2228, %v2220
    %v2389 = vpack.c.b16 %v2229, %v2221
    %v2390 = vpack.c.b16 %v2230, %v2222
    %v2391 = vpack.c.b16 %v2231, %v2223
    %v2392 = vpack.c.b16 %v2232, %v2224
    %v2393 = vpack.c.b16 %v2233, %v2225
    %v2394 = vpack.c.b16 %v2234, %v2226
    %v2395 = vpack.c.b16 %v2235, %v2227
    %v2396 = vpack.c.b16 %v2244, %v2236
    %v2397 = vpack.c.b16 %v2245, %v2237
    %v2398 = vpack.c.b16 %v2246, %v2238
    %v2399 = vpack.c.b16 %v2247, %v2239
    %v2400 = vpack.c.b16 %v2248, %v2240
    %v2401 = vpack.c.b16 %v2249, %v2241
    %v2402 = vpack.c.b16 %v2250, %v2242
    %v2403 = vpack.c.b16 %v2251, %v2243
    %v2404 = vpack.c.b16 %v2260, %v2252
    %v2405 = vpack.c.b16 %v2261, %v2253
    %v2406 = vpack.c.b16 %v2262, %v2254
    %v2407 = vpack.c.b16 %v2263, %v2255
    %v2408 = vpack.c.b16 %v2264, %v2256
    %v2409 = vpack.c.b16 %v2265, %v2257
    %v2410 = vpack.c.b16 %v2266, %v2258
    %v2411 = vpack.c.b16 %v2267, %v2259
    %v2412 = vpack.c.b16 %v2276, %v2268
    %v2413 = vpack.c.b16 %v2277, %v2269
    %v2414 = vpack.c.b16 %v2278, %v2270
    %v2415 = vpack.c.b16 %v2279, %v2271
    %v2416 = vpack.c.b16 %v2280, %v2272
    %v2417 = vpack.c.b16 %v2281, %v2273
    %v2418 = vpack.c.b16 %v2282, %v2274
    %v2419 = vpack.c.b16 %v2283, %v2275
    %v2420 = vpack.c.b16 %v2292, %v2284
    %v2421 = vpack.c.b16 %v2293, %v2285
    %v2422 = vpack.c.b16 %v2294, %v2286
    %v2423 = vpack.c.b16 %v2295, %v2287
    %v2424 = vpack.c.b16 %v2296, %v2288
    %v2425 = vpack.c.b16 %v2297, %v2289
    %v2426 = vpack.c.b16 %v2298, %v2290
    %v2427 = vpack.c.b16 %v2299, %v2291
    %2556 = vmatpush.bf16.msra.mxu0 %v2356
    %2557 = vmatpush.bf16.msra.mxu0 %v2348
    %2558 = vmatpush.bf16.msra.mxu0 %v2340
    %2559 = vmatpush.bf16.msra.mxu0 %v2332
    %2560 = vmatpush.bf16.msra.mxu0 %v2324
    %2561 = vmatpush.bf16.msra.mxu0 %v2316
    %2562 = vmatpush.bf16.msra.mxu0 %v2308
    %2563 = vmatpush.bf16.msra.mxu0 %v2300
    %2564 = vmatmul.bf16.gmra.mxu0 %v1768
    %v2565 = vpop.f32.mrf.mxu0
    %v2566 = vadd.f32 %v1900, %v2565
    %v2567 = vpop.f32.mrf.mxu0
    %v2568 = vadd.f32 %v1900, %v2567
    %2569 = vdwg.mxu0
    %2570 = vmatpush.bf16.msra.mxu0 %v2420
    %2571 = vmatpush.bf16.msra.mxu0 %v2412
    %2572 = vmatpush.bf16.msra.mxu0 %v2404
    %2573 = vmatpush.bf16.msra.mxu0 %v2396
    %2574 = vmatpush.bf16.msra.mxu0 %v2388
    %2575 = vmatpush.bf16.msra.mxu0 %v2380
    %2576 = vmatpush.bf16.msra.mxu0 %v2372
    %2577 = vmatpush.bf16.msra.mxu0 %v2364
    %2578 = vmatmul.bf16.gmra.mxu0 %v1769
    %v2579 = vpop.f32.mrf.mxu0
    %v2580 = vadd.f32 %v2566, %v2579
    %v2581 = vpop.f32.mrf.mxu0
    %v2582 = vadd.f32 %v2568, %v2581
    %2583 = vdwg.mxu0
    %2584 = vmatpush.bf16.msra.mxu0 %v2357
    %2585 = vmatpush.bf16.msra.mxu0 %v2349
    %2586 = vmatpush.bf16.msra.mxu0 %v2341
    %2587 = vmatpush.bf16.msra.mxu0 %v2333
    %2588 = vmatpush.bf16.msra.mxu0 %v2325
    %2589 = vmatpush.bf16.msra.mxu0 %v2317
    %2590 = vmatpush.bf16.msra.mxu0 %v2309
    %2591 = vmatpush.bf16.msra.mxu0 %v2301
    %2592 = vmatmul.bf16.gmra.mxu0 %v1768
    %v2593 = vpop.f32.mrf.mxu0
    %v2594 = vadd.f32 %v1901, %v2593
    %v2595 = vpop.f32.mrf.mxu0
    %v2596 = vadd.f32 %v1901, %v2595
    %2597 = vdwg.mxu0
    %2598 = vmatpush.bf16.msra.mxu0 %v2421
    %2599 = vmatpush.bf16.msra.mxu0 %v2413
    %2600 = vmatpush.bf16.msra.mxu0 %v2405
    %2601 = vmatpush.bf16.msra.mxu0 %v2397
    %2602 = vmatpush.bf16.msra.mxu0 %v2389
    %2603 = vmatpush.bf16.msra.mxu0 %v2381
    %2604 = vmatpush.bf16.msra.mxu0 %v2373
    %2605 = vmatpush.bf16.msra.mxu0 %v2365
    %2606 = vmatmul.bf16.gmra.mxu0 %v1769
    %v2607 = vpop.f32.mrf.mxu0
    %v2608 = vadd.f32 %v2594, %v2607
    %v2609 = vpop.f32.mrf.mxu0
    %v2610 = vadd.f32 %v2596, %v2609
    %2611 = vdwg.mxu0
    %2612 = vmatpush.bf16.msra.mxu0 %v2358
    %2613 = vmatpush.bf16.msra.mxu0 %v2350
    %2614 = vmatpush.bf16.msra.mxu0 %v2342
    %2615 = vmatpush.bf16.msra.mxu0 %v2334
    %2616 = vmatpush.bf16.msra.mxu0 %v2326
    %2617 = vmatpush.bf16.msra.mxu0 %v2318
    %2618 = vmatpush.bf16.msra.mxu0 %v2310
    %2619 = vmatpush.bf16.msra.mxu0 %v2302
    %2620 = vmatmul.bf16.gmra.mxu0 %v1768
    %v2621 = vpop.f32.mrf.mxu0
    %v2622 = vadd.f32 %v1902, %v2621
    %v2623 = vpop.f32.mrf.mxu0
    %v2624 = vadd.f32 %v1902, %v2623
    %2625 = vdwg.mxu0
    %2626 = vmatpush.bf16.msra.mxu0 %v2422
    %2627 = vmatpush.bf16.msra.mxu0 %v2414
    %2628 = vmatpush.bf16.msra.mxu0 %v2406
    %2629 = vmatpush.bf16.msra.mxu0 %v2398
    %2630 = vmatpush.bf16.msra.mxu0 %v2390
    %2631 = vmatpush.bf16.msra.mxu0 %v2382
    %2632 = vmatpush.bf16.msra.mxu0 %v2374
    %2633 = vmatpush.bf16.msra.mxu0 %v2366
    %2634 = vmatmul.bf16.gmra.mxu0 %v1769
    %v2635 = vpop.f32.mrf.mxu0
    %v2636 = vadd.f32 %v2622, %v2635
    %v2637 = vpop.f32.mrf.mxu0
    %v2638 = vadd.f32 %v2624, %v2637
    %2639 = vdwg.mxu0
    %2640 = vmatpush.bf16.msra.mxu0 %v2359
    %2641 = vmatpush.bf16.msra.mxu0 %v2351
    %2642 = vmatpush.bf16.msra.mxu0 %v2343
    %2643 = vmatpush.bf16.msra.mxu0 %v2335
    %2644 = vmatpush.bf16.msra.mxu0 %v2327
    %2645 = vmatpush.bf16.msra.mxu0 %v2319
    %2646 = vmatpush.bf16.msra.mxu0 %v2311
    %2647 = vmatpush.bf16.msra.mxu0 %v2303
    %2648 = vmatmul.bf16.gmra.mxu0 %v1768
    %v2649 = vpop.f32.mrf.mxu0
    %v2650 = vadd.f32 %v1903, %v2649
    %v2651 = vpop.f32.mrf.mxu0
    %v2652 = vadd.f32 %v1903, %v2651
    %2653 = vdwg.mxu0
    %2654 = vmatpush.bf16.msra.mxu0 %v2423
    %2655 = vmatpush.bf16.msra.mxu0 %v2415
    %2656 = vmatpush.bf16.msra.mxu0 %v2407
    %2657 = vmatpush.bf16.msra.mxu0 %v2399
    %2658 = vmatpush.bf16.msra.mxu0 %v2391
    %2659 = vmatpush.bf16.msra.mxu0 %v2383
    %2660 = vmatpush.bf16.msra.mxu0 %v2375
    %2661 = vmatpush.bf16.msra.mxu0 %v2367
    %2662 = vmatmul.bf16.gmra.mxu0 %v1769
    %v2663 = vpop.f32.mrf.mxu0
    %v2664 = vadd.f32 %v2650, %v2663
    %v2665 = vpop.f32.mrf.mxu0
    %v2666 = vadd.f32 %v2652, %v2665
    %2667 = vdwg.mxu0
    %2668 = vmatpush.bf16.msra.mxu0 %v2360
    %2669 = vmatpush.bf16.msra.mxu0 %v2352
    %2670 = vmatpush.bf16.msra.mxu0 %v2344
    %2671 = vmatpush.bf16.msra.mxu0 %v2336
    %2672 = vmatpush.bf16.msra.mxu0 %v2328
    %2673 = vmatpush.bf16.msra.mxu0 %v2320
    %2674 = vmatpush.bf16.msra.mxu0 %v2312
    %2675 = vmatpush.bf16.msra.mxu0 %v2304
    %2676 = vmatmul.bf16.gmra.mxu0 %v1768
    %v2677 = vpop.f32.mrf.mxu0
    %v2678 = vadd.f32 %v1904, %v2677
    %v2679 = vpop.f32.mrf.mxu0
    %v2680 = vadd.f32 %v1904, %v2679
    %2681 = vdwg.mxu0
    %2682 = vmatpush.bf16.msra.mxu0 %v2424
    %2683 = vmatpush.bf16.msra.mxu0 %v2416
    %2684 = vmatpush.bf16.msra.mxu0 %v2408
    %2685 = vmatpush.bf16.msra.mxu0 %v2400
    %2686 = vmatpush.bf16.msra.mxu0 %v2392
    %2687 = vmatpush.bf16.msra.mxu0 %v2384
    %2688 = vmatpush.bf16.msra.mxu0 %v2376
    %2689 = vmatpush.bf16.msra.mxu0 %v2368
    %2690 = vmatmul.bf16.gmra.mxu0 %v1769
    %v2691 = vpop.f32.mrf.mxu0
    %v2692 = vadd.f32 %v2678, %v2691
    %v2693 = vpop.f32.mrf.mxu0
    %v2694 = vadd.f32 %v2680, %v2693
    %2695 = vdwg.mxu0
    %2696 = vmatpush.bf16.msra.mxu0 %v2361
    %2697 = vmatpush.bf16.msra.mxu0 %v2353
    %2698 = vmatpush.bf16.msra.mxu0 %v2345
    %2699 = vmatpush.bf16.msra.mxu0 %v2337
    %2700 = vmatpush.bf16.msra.mxu0 %v2329
    %2701 = vmatpush.bf16.msra.mxu0 %v2321
    %2702 = vmatpush.bf16.msra.mxu0 %v2313
    %2703 = vmatpush.bf16.msra.mxu0 %v2305
    %2704 = vmatmul.bf16.gmra.mxu0 %v1768
    %v2705 = vpop.f32.mrf.mxu0
    %v2706 = vadd.f32 %v1905, %v2705
    %v2707 = vpop.f32.mrf.mxu0
    %v2708 = vadd.f32 %v1905, %v2707
    %2709 = vdwg.mxu0
    %2710 = vmatpush.bf16.msra.mxu0 %v2425
    %2711 = vmatpush.bf16.msra.mxu0 %v2417
    %2712 = vmatpush.bf16.msra.mxu0 %v2409
    %2713 = vmatpush.bf16.msra.mxu0 %v2401
    %2714 = vmatpush.bf16.msra.mxu0 %v2393
    %2715 = vmatpush.bf16.msra.mxu0 %v2385
    %2716 = vmatpush.bf16.msra.mxu0 %v2377
    %2717 = vmatpush.bf16.msra.mxu0 %v2369
    %2718 = vmatmul.bf16.gmra.mxu0 %v1769
    %v2719 = vpop.f32.mrf.mxu0
    %v2720 = vadd.f32 %v2706, %v2719
    %v2721 = vpop.f32.mrf.mxu0
    %v2722 = vadd.f32 %v2708, %v2721
    %2723 = vdwg.mxu0
    %2724 = vmatpush.bf16.msra.mxu0 %v2362
    %2725 = vmatpush.bf16.msra.mxu0 %v2354
    %2726 = vmatpush.bf16.msra.mxu0 %v2346
    %2727 = vmatpush.bf16.msra.mxu0 %v2338
    %2728 = vmatpush.bf16.msra.mxu0 %v2330
    %2729 = vmatpush.bf16.msra.mxu0 %v2322
    %2730 = vmatpush.bf16.msra.mxu0 %v2314
    %2731 = vmatpush.bf16.msra.mxu0 %v2306
    %2732 = vmatmul.bf16.gmra.mxu0 %v1768
    %v2733 = vpop.f32.mrf.mxu0
    %v2734 = vadd.f32 %v1906, %v2733
    %v2735 = vpop.f32.mrf.mxu0
    %v2736 = vadd.f32 %v1906, %v2735
    %2737 = vdwg.mxu0
    %2738 = vmatpush.bf16.msra.mxu0 %v2426
    %2739 = vmatpush.bf16.msra.mxu0 %v2418
    %2740 = vmatpush.bf16.msra.mxu0 %v2410
    %2741 = vmatpush.bf16.msra.mxu0 %v2402
    %2742 = vmatpush.bf16.msra.mxu0 %v2394
    %2743 = vmatpush.bf16.msra.mxu0 %v2386
    %2744 = vmatpush.bf16.msra.mxu0 %v2378
    %2745 = vmatpush.bf16.msra.mxu0 %v2370
    %2746 = vmatmul.bf16.gmra.mxu0 %v1769
    %v2747 = vpop.f32.mrf.mxu0
    %v2748 = vadd.f32 %v2734, %v2747
    %v2749 = vpop.f32.mrf.mxu0
    %v2750 = vadd.f32 %v2736, %v2749
    %2751 = vdwg.mxu0
    %2752 = vmatpush.bf16.msra.mxu0 %v2363
    %2753 = vmatpush.bf16.msra.mxu0 %v2355
    %2754 = vmatpush.bf16.msra.mxu0 %v2347
    %2755 = vmatpush.bf16.msra.mxu0 %v2339
    %2756 = vmatpush.bf16.msra.mxu0 %v2331
    %2757 = vmatpush.bf16.msra.mxu0 %v2323
    %2758 = vmatpush.bf16.msra.mxu0 %v2315
    %2759 = vmatpush.bf16.msra.mxu0 %v2307
    %2760 = vmatmul.bf16.gmra.mxu0 %v1768
    %v2761 = vpop.f32.mrf.mxu0
    %v2762 = vadd.f32 %v1907, %v2761
    %v2763 = vpop.f32.mrf.mxu0
    %v2764 = vadd.f32 %v1907, %v2763
    %2765 = vdwg.mxu0
    %2766 = vmatpush.bf16.msra.mxu0 %v2427
    %2767 = vmatpush.bf16.msra.mxu0 %v2419
    %2768 = vmatpush.bf16.msra.mxu0 %v2411
    %2769 = vmatpush.bf16.msra.mxu0 %v2403
    %2770 = vmatpush.bf16.msra.mxu0 %v2395
    %2771 = vmatpush.bf16.msra.mxu0 %v2387
    %2772 = vmatpush.bf16.msra.mxu0 %v2379
    %2773 = vmatpush.bf16.msra.mxu0 %v2371
    %2774 = vmatmul.bf16.gmra.mxu0 %v1769
    %v2775 = vpop.f32.mrf.mxu0
    %v2776 = vadd.f32 %v2762, %v2775
    %v2777 = vpop.f32.mrf.mxu0
    %v2778 = vadd.f32 %v2764, %v2777
    %2779 = vdwg.mxu0
    %v2780 = vmax.f32 %v2580, 0.0
    %v2781 = vmax.f32 %v2608, 0.0
    %v2782 = vmax.f32 %v2636, 0.0
    %v2783 = vmax.f32 %v2664, 0.0
    %v2784 = vmax.f32 %v2692, 0.0
    %v2785 = vmax.f32 %v2720, 0.0
    %v2786 = vmax.f32 %v2748, 0.0
    %v2787 = vmax.f32 %v2776, 0.0
    %v2788 = vmax.f32 %v2582, 0.0
    %v2789 = vmax.f32 %v2610, 0.0
    %v2790 = vmax.f32 %v2638, 0.0
    %v2791 = vmax.f32 %v2666, 0.0
    %v2792 = vmax.f32 %v2694, 0.0
    %v2793 = vmax.f32 %v2722, 0.0
    %v2794 = vmax.f32 %v2750, 0.0
    %v2795 = vmax.f32 %v2778, 0.0
    %v2796 = vpack.c.bf16 %v2788, %v2780
    %v2797 = vpack.c.bf16 %v2789, %v2781
    %v2798 = vpack.c.bf16 %v2790, %v2782
    %v2799 = vpack.c.bf16 %v2791, %v2783
    %v2800 = vpack.c.bf16 %v2792, %v2784
    %v2801 = vpack.c.bf16 %v2793, %v2785
    %v2802 = vpack.c.bf16 %v2794, %v2786
    %v2803 = vpack.c.bf16 %v2795, %v2787
    %v2804 = vld [vmem:[%s5] sm:$0xff]
    %v2805 = vld [vmem:[%s5 + $0x8] sm:$0xff]
    %v2806 = vld [vmem:[%s5 + $0x10] sm:$0xff]
    %v2807 = vld [vmem:[%s5 + $0x18] sm:$0xff]
    %v2808 = vld [vmem:[%s5 + $0x20] sm:$0xff]
    %v2809 = vld [vmem:[%s5 + $0x28] sm:$0xff]
    %v2810 = vld [vmem:[%s5 + $0x30] sm:$0xff]
    %v2811 = vld [vmem:[%s5 + $0x38] sm:$0xff]
    %v2812 = vld [vmem:[%s5 + $0x40] sm:$0xff]
    %v2813 = vld [vmem:[%s5 + $0x48] sm:$0xff]
    %v2814 = vld [vmem:[%s5 + $0x50] sm:$0xff]
    %v2815 = vld [vmem:[%s5 + $0x58] sm:$0xff]
    %v2816 = vld [vmem:[%s5 + $0x60] sm:$0xff]
    %v2817 = vld [vmem:[%s5 + $0x68] sm:$0xff]
    %v2818 = vld [vmem:[%s5 + $0x70] sm:$0xff]
    %v2819 = vld [vmem:[%s5 + $0x78] sm:$0xff]
    %v2820 = vld [vmem:[%s5 + $0x80] sm:$0xff]
    %v2821 = vld [vmem:[%s5 + $0x88] sm:$0xff]
    %v2822 = vld [vmem:[%s5 + $0x90] sm:$0xff]
    %v2823 = vld [vmem:[%s5 + $0x98] sm:$0xff]
    %v2824 = vld [vmem:[%s5 + $0xa0] sm:$0xff]
    %v2825 = vld [vmem:[%s5 + $0xa8] sm:$0xff]
    %v2826 = vld [vmem:[%s5 + $0xb0] sm:$0xff]
    %v2827 = vld [vmem:[%s5 + $0xb8] sm:$0xff]
    %v2828 = vld [vmem:[%s5 + $0xc0] sm:$0xff]
    %v2829 = vld [vmem:[%s5 + $0xc8] sm:$0xff]
    %v2830 = vld [vmem:[%s5 + $0xd0] sm:$0xff]
    %v2831 = vld [vmem:[%s5 + $0xd8] sm:$0xff]
    %v2832 = vld [vmem:[%s5 + $0xe0] sm:$0xff]
    %v2833 = vld [vmem:[%s5 + $0xe8] sm:$0xff]
    %v2834 = vld [vmem:[%s5 + $0xf0] sm:$0xff]
    %v2835 = vld [vmem:[%s5 + $0xf8] sm:$0xff]
    %v2836 = vld [vmem:[%s5 + $0x100] sm:$0xff]
    %v2837 = vld [vmem:[%s5 + $0x108] sm:$0xff]
    %v2838 = vld [vmem:[%s5 + $0x110] sm:$0xff]
    %v2839 = vld [vmem:[%s5 + $0x118] sm:$0xff]
    %v2840 = vld [vmem:[%s5 + $0x120] sm:$0xff]
    %v2841 = vld [vmem:[%s5 + $0x128] sm:$0xff]
    %v2842 = vld [vmem:[%s5 + $0x130] sm:$0xff]
    %v2843 = vld [vmem:[%s5 + $0x138] sm:$0xff]
    %v2844 = vld [vmem:[%s5 + $0x140] sm:$0xff]
    %v2845 = vld [vmem:[%s5 + $0x148] sm:$0xff]
    %v2846 = vld [vmem:[%s5 + $0x150] sm:$0xff]
    %v2847 = vld [vmem:[%s5 + $0x158] sm:$0xff]
    %v2848 = vld [vmem:[%s5 + $0x160] sm:$0xff]
    %v2849 = vld [vmem:[%s5 + $0x168] sm:$0xff]
    %v2850 = vld [vmem:[%s5 + $0x170] sm:$0xff]
    %v2851 = vld [vmem:[%s5 + $0x178] sm:$0xff]
    %v2852 = vld [vmem:[%s5 + $0x180] sm:$0xff]
    %v2853 = vld [vmem:[%s5 + $0x188] sm:$0xff]
    %v2854 = vld [vmem:[%s5 + $0x190] sm:$0xff]
    %v2855 = vld [vmem:[%s5 + $0x198] sm:$0xff]
    %v2856 = vld [vmem:[%s5 + $0x1a0] sm:$0xff]
    %v2857 = vld [vmem:[%s5 + $0x1a8] sm:$0xff]
    %v2858 = vld [vmem:[%s5 + $0x1b0] sm:$0xff]
    %v2859 = vld [vmem:[%s5 + $0x1b8] sm:$0xff]
    %v2860 = vld [vmem:[%s5 + $0x1c0] sm:$0xff]
    %v2861 = vld [vmem:[%s5 + $0x1c8] sm:$0xff]
    %v2862 = vld [vmem:[%s5 + $0x1d0] sm:$0xff]
    %v2863 = vld [vmem:[%s5 + $0x1d8] sm:$0xff]
    %v2864 = vld [vmem:[%s5 + $0x1e0] sm:$0xff]
    %v2865 = vld [vmem:[%s5 + $0x1e8] sm:$0xff]
    %v2866 = vld [vmem:[%s5 + $0x1f0] sm:$0xff]
    %v2867 = vld [vmem:[%s5 + $0x1f8] sm:$0xff]
    %v2868 = vld [vmem:[%s5 + $0x200] sm:$0xff]
    %v2869 = vld [vmem:[%s5 + $0x208] sm:$0xff]
    %v2870 = vld [vmem:[%s5 + $0x210] sm:$0xff]
    %v2871 = vld [vmem:[%s5 + $0x218] sm:$0xff]
    %v2872 = vld [vmem:[%s5 + $0x220] sm:$0xff]
    %v2873 = vld [vmem:[%s5 + $0x228] sm:$0xff]
    %v2874 = vld [vmem:[%s5 + $0x230] sm:$0xff]
    %v2875 = vld [vmem:[%s5 + $0x238] sm:$0xff]
    %v2876 = vld [vmem:[%s5 + $0x240] sm:$0xff]
    %v2877 = vld [vmem:[%s5 + $0x248] sm:$0xff]
    %v2878 = vld [vmem:[%s5 + $0x250] sm:$0xff]
    %v2879 = vld [vmem:[%s5 + $0x258] sm:$0xff]
    %v2880 = vld [vmem:[%s5 + $0x260] sm:$0xff]
    %v2881 = vld [vmem:[%s5 + $0x268] sm:$0xff]
    %v2882 = vld [vmem:[%s5 + $0x270] sm:$0xff]
    %v2883 = vld [vmem:[%s5 + $0x278] sm:$0xff]
    %v2884 = vld [vmem:[%s5 + $0x280] sm:$0xff]
    %v2885 = vld [vmem:[%s5 + $0x288] sm:$0xff]
    %v2886 = vld [vmem:[%s5 + $0x290] sm:$0xff]
    %v2887 = vld [vmem:[%s5 + $0x298] sm:$0xff]
    %v2888 = vld [vmem:[%s5 + $0x2a0] sm:$0xff]
    %v2889 = vld [vmem:[%s5 + $0x2a8] sm:$0xff]
    %v2890 = vld [vmem:[%s5 + $0x2b0] sm:$0xff]
    %v2891 = vld [vmem:[%s5 + $0x2b8] sm:$0xff]
    %v2892 = vld [vmem:[%s5 + $0x2c0] sm:$0xff]
    %v2893 = vld [vmem:[%s5 + $0x2c8] sm:$0xff]
    %v2894 = vld [vmem:[%s5 + $0x2d0] sm:$0xff]
    %v2895 = vld [vmem:[%s5 + $0x2d8] sm:$0xff]
    %v2896 = vld [vmem:[%s5 + $0x2e0] sm:$0xff]
    %v2897 = vld [vmem:[%s5 + $0x2e8] sm:$0xff]
    %v2898 = vld [vmem:[%s5 + $0x2f0] sm:$0xff]
    %v2899 = vld [vmem:[%s5 + $0x2f8] sm:$0xff]
    %v2900 = vld [vmem:[%s5 + $0x300] sm:$0xff]
    %v2901 = vld [vmem:[%s5 + $0x308] sm:$0xff]
    %v2902 = vld [vmem:[%s5 + $0x310] sm:$0xff]
    %v2903 = vld [vmem:[%s5 + $0x318] sm:$0xff]
    %v2904 = vld [vmem:[%s5 + $0x320] sm:$0xff]
    %v2905 = vld [vmem:[%s5 + $0x328] sm:$0xff]
    %v2906 = vld [vmem:[%s5 + $0x330] sm:$0xff]
    %v2907 = vld [vmem:[%s5 + $0x338] sm:$0xff]
    %v2908 = vld [vmem:[%s5 + $0x340] sm:$0xff]
    %v2909 = vld [vmem:[%s5 + $0x348] sm:$0xff]
    %v2910 = vld [vmem:[%s5 + $0x350] sm:$0xff]
    %v2911 = vld [vmem:[%s5 + $0x358] sm:$0xff]
    %v2912 = vld [vmem:[%s5 + $0x360] sm:$0xff]
    %v2913 = vld [vmem:[%s5 + $0x368] sm:$0xff]
    %v2914 = vld [vmem:[%s5 + $0x370] sm:$0xff]
    %v2915 = vld [vmem:[%s5 + $0x378] sm:$0xff]
    %v2916 = vld [vmem:[%s5 + $0x380] sm:$0xff]
    %v2917 = vld [vmem:[%s5 + $0x388] sm:$0xff]
    %v2918 = vld [vmem:[%s5 + $0x390] sm:$0xff]
    %v2919 = vld [vmem:[%s5 + $0x398] sm:$0xff]
    %v2920 = vld [vmem:[%s5 + $0x3a0] sm:$0xff]
    %v2921 = vld [vmem:[%s5 + $0x3a8] sm:$0xff]
    %v2922 = vld [vmem:[%s5 + $0x3b0] sm:$0xff]
    %v2923 = vld [vmem:[%s5 + $0x3b8] sm:$0xff]
    %v2924 = vld [vmem:[%s5 + $0x3c0] sm:$0xff]
    %v2925 = vld [vmem:[%s5 + $0x3c8] sm:$0xff]
    %v2926 = vld [vmem:[%s5 + $0x3d0] sm:$0xff]
    %v2927 = vld [vmem:[%s5 + $0x3d8] sm:$0xff]
    %v2928 = vld [vmem:[%s5 + $0x3e0] sm:$0xff]
    %v2929 = vld [vmem:[%s5 + $0x3e8] sm:$0xff]
    %v2930 = vld [vmem:[%s5 + $0x3f0] sm:$0xff]
    %v2931 = vld [vmem:[%s5 + $0x3f8] sm:$0xff]
    %v2932 = vld [vmem:[%s6] sm:$0x3]
    %v2934 = vperm.slane %v2932, 0
    %v2935 = vperm.slane %v2932, 1
    %v3066 = vunpack.c.l.b16 %v2804
    %v3067 = vunpack.c.h.b16 %v2804
    %v3068 = vunpack.c.l.b16 %v2805
    %v3069 = vunpack.c.h.b16 %v2805
    %v3070 = vunpack.c.l.b16 %v2806
    %v3071 = vunpack.c.h.b16 %v2806
    %v3072 = vunpack.c.l.b16 %v2807
    %v3073 = vunpack.c.h.b16 %v2807
    %v3074 = vunpack.c.l.b16 %v2808
    %v3075 = vunpack.c.h.b16 %v2808
    %v3076 = vunpack.c.l.b16 %v2809
    %v3077 = vunpack.c.h.b16 %v2809
    %v3078 = vunpack.c.l.b16 %v2810
    %v3079 = vunpack.c.h.b16 %v2810
    %v3080 = vunpack.c.l.b16 %v2811
    %v3081 = vunpack.c.h.b16 %v2811
    %v3082 = vunpack.c.l.b16 %v2812
    %v3083 = vunpack.c.h.b16 %v2812
    %v3084 = vunpack.c.l.b16 %v2813
    %v3085 = vunpack.c.h.b16 %v2813
    %v3086 = vunpack.c.l.b16 %v2814
    %v3087 = vunpack.c.h.b16 %v2814
    %v3088 = vunpack.c.l.b16 %v2815
    %v3089 = vunpack.c.h.b16 %v2815
    %v3090 = vunpack.c.l.b16 %v2816
    %v3091 = vunpack.c.h.b16 %v2816
    %v3092 = vunpack.c.l.b16 %v2817
    %v3093 = vunpack.c.h.b16 %v2817
    %v3094 = vunpack.c.l.b16 %v2818
    %v3095 = vunpack.c.h.b16 %v2818
    %v3096 = vunpack.c.l.b16 %v2819
    %v3097 = vunpack.c.h.b16 %v2819
    %v3098 = vunpack.c.l.b16 %v2820
    %v3099 = vunpack.c.h.b16 %v2820
    %v3100 = vunpack.c.l.b16 %v2821
    %v3101 = vunpack.c.h.b16 %v2821
    %v3102 = vunpack.c.l.b16 %v2822
    %v3103 = vunpack.c.h.b16 %v2822
    %v3104 = vunpack.c.l.b16 %v2823
    %v3105 = vunpack.c.h.b16 %v2823
    %v3106 = vunpack.c.l.b16 %v2824
    %v3107 = vunpack.c.h.b16 %v2824
    %v3108 = vunpack.c.l.b16 %v2825
    %v3109 = vunpack.c.h.b16 %v2825
    %v3110 = vunpack.c.l.b16 %v2826
    %v3111 = vunpack.c.h.b16 %v2826
    %v3112 = vunpack.c.l.b16 %v2827
    %v3113 = vunpack.c.h.b16 %v2827
    %v3114 = vunpack.c.l.b16 %v2828
    %v3115 = vunpack.c.h.b16 %v2828
    %v3116 = vunpack.c.l.b16 %v2829
    %v3117 = vunpack.c.h.b16 %v2829
    %v3118 = vunpack.c.l.b16 %v2830
    %v3119 = vunpack.c.h.b16 %v2830
    %v3120 = vunpack.c.l.b16 %v2831
    %v3121 = vunpack.c.h.b16 %v2831
    %v3122 = vunpack.c.l.b16 %v2832
    %v3123 = vunpack.c.h.b16 %v2832
    %v3124 = vunpack.c.l.b16 %v2833
    %v3125 = vunpack.c.h.b16 %v2833
    %v3126 = vunpack.c.l.b16 %v2834
    %v3127 = vunpack.c.h.b16 %v2834
    %v3128 = vunpack.c.l.b16 %v2835
    %v3129 = vunpack.c.h.b16 %v2835
    %v3130 = vunpack.c.l.b16 %v2836
    %v3131 = vunpack.c.h.b16 %v2836
    %v3132 = vunpack.c.l.b16 %v2837
    %v3133 = vunpack.c.h.b16 %v2837
    %v3134 = vunpack.c.l.b16 %v2838
    %v3135 = vunpack.c.h.b16 %v2838
    %v3136 = vunpack.c.l.b16 %v2839
    %v3137 = vunpack.c.h.b16 %v2839
    %v3138 = vunpack.c.l.b16 %v2840
    %v3139 = vunpack.c.h.b16 %v2840
    %v3140 = vunpack.c.l.b16 %v2841
    %v3141 = vunpack.c.h.b16 %v2841
    %v3142 = vunpack.c.l.b16 %v2842
    %v3143 = vunpack.c.h.b16 %v2842
    %v3144 = vunpack.c.l.b16 %v2843
    %v3145 = vunpack.c.h.b16 %v2843
    %v3146 = vunpack.c.l.b16 %v2844
    %v3147 = vunpack.c.h.b16 %v2844
    %v3148 = vunpack.c.l.b16 %v2845
    %v3149 = vunpack.c.h.b16 %v2845
    %v3150 = vunpack.c.l.b16 %v2846
    %v3151 = vunpack.c.h.b16 %v2846
    %v3152 = vunpack.c.l.b16 %v2847
    %v3153 = vunpack.c.h.b16 %v2847
    %v3154 = vunpack.c.l.b16 %v2848
    %v3155 = vunpack.c.h.b16 %v2848
    %v3156 = vunpack.c.l.b16 %v2849
    %v3157 = vunpack.c.h.b16 %v2849
    %v3158 = vunpack.c.l.b16 %v2850
    %v3159 = vunpack.c.h.b16 %v2850
    %v3160 = vunpack.c.l.b16 %v2851
    %v3161 = vunpack.c.h.b16 %v2851
    %v3162 = vunpack.c.l.b16 %v2852
    %v3163 = vunpack.c.h.b16 %v2852
    %v3164 = vunpack.c.l.b16 %v2853
    %v3165 = vunpack.c.h.b16 %v2853
    %v3166 = vunpack.c.l.b16 %v2854
    %v3167 = vunpack.c.h.b16 %v2854
    %v3168 = vunpack.c.l.b16 %v2855
    %v3169 = vunpack.c.h.b16 %v2855
    %v3170 = vunpack.c.l.b16 %v2856
    %v3171 = vunpack.c.h.b16 %v2856
    %v3172 = vunpack.c.l.b16 %v2857
    %v3173 = vunpack.c.h.b16 %v2857
    %v3174 = vunpack.c.l.b16 %v2858
    %v3175 = vunpack.c.h.b16 %v2858
    %v3176 = vunpack.c.l.b16 %v2859
    %v3177 = vunpack.c.h.b16 %v2859
    %v3178 = vunpack.c.l.b16 %v2860
    %v3179 = vunpack.c.h.b16 %v2860
    %v3180 = vunpack.c.l.b16 %v2861
    %v3181 = vunpack.c.h.b16 %v2861
    %v3182 = vunpack.c.l.b16 %v2862
    %v3183 = vunpack.c.h.b16 %v2862
    %v3184 = vunpack.c.l.b16 %v2863
    %v3185 = vunpack.c.h.b16 %v2863
    %v3186 = vunpack.c.l.b16 %v2864
    %v3187 = vunpack.c.h.b16 %v2864
    %v3188 = vunpack.c.l.b16 %v2865
    %v3189 = vunpack.c.h.b16 %v2865
    %v3190 = vunpack.c.l.b16 %v2866
    %v3191 = vunpack.c.h.b16 %v2866
    %v3192 = vunpack.c.l.b16 %v2867
    %v3193 = vunpack.c.h.b16 %v2867
    %v3194 = vunpack.c.l.b16 %v2868
    %v3195 = vunpack.c.h.b16 %v2868
    %v3196 = vunpack.c.l.b16 %v2869
    %v3197 = vunpack.c.h.b16 %v2869
    %v3198 = vunpack.c.l.b16 %v2870
    %v3199 = vunpack.c.h.b16 %v2870
    %v3200 = vunpack.c.l.b16 %v2871
    %v3201 = vunpack.c.h.b16 %v2871
    %v3202 = vunpack.c.l.b16 %v2872
    %v3203 = vunpack.c.h.b16 %v2872
    %v3204 = vunpack.c.l.b16 %v2873
    %v3205 = vunpack.c.h.b16 %v2873
    %v3206 = vunpack.c.l.b16 %v2874
    %v3207 = vunpack.c.h.b16 %v2874
    %v3208 = vunpack.c.l.b16 %v2875
    %v3209 = vunpack.c.h.b16 %v2875
    %v3210 = vunpack.c.l.b16 %v2876
    %v3211 = vunpack.c.h.b16 %v2876
    %v3212 = vunpack.c.l.b16 %v2877
    %v3213 = vunpack.c.h.b16 %v2877
    %v3214 = vunpack.c.l.b16 %v2878
    %v3215 = vunpack.c.h.b16 %v2878
    %v3216 = vunpack.c.l.b16 %v2879
    %v3217 = vunpack.c.h.b16 %v2879
    %v3218 = vunpack.c.l.b16 %v2880
    %v3219 = vunpack.c.h.b16 %v2880
    %v3220 = vunpack.c.l.b16 %v2881
    %v3221 = vunpack.c.h.b16 %v2881
    %v3222 = vunpack.c.l.b16 %v2882
    %v3223 = vunpack.c.h.b16 %v2882
    %v3224 = vunpack.c.l.b16 %v2883
    %v3225 = vunpack.c.h.b16 %v2883
    %v3226 = vunpack.c.l.b16 %v2884
    %v3227 = vunpack.c.h.b16 %v2884
    %v3228 = vunpack.c.l.b16 %v2885
    %v3229 = vunpack.c.h.b16 %v2885
    %v3230 = vunpack.c.l.b16 %v2886
    %v3231 = vunpack.c.h.b16 %v2886
    %v3232 = vunpack.c.l.b16 %v2887
    %v3233 = vunpack.c.h.b16 %v2887
    %v3234 = vunpack.c.l.b16 %v2888
    %v3235 = vunpack.c.h.b16 %v2888
    %v3236 = vunpack.c.l.b16 %v2889
    %v3237 = vunpack.c.h.b16 %v2889
    %v3238 = vunpack.c.l.b16 %v2890
    %v3239 = vunpack.c.h.b16 %v2890
    %v3240 = vunpack.c.l.b16 %v2891
    %v3241 = vunpack.c.h.b16 %v2891
    %v3242 = vunpack.c.l.b16 %v2892
    %v3243 = vunpack.c.h.b16 %v2892
    %v3244 = vunpack.c.l.b16 %v2893
    %v3245 = vunpack.c.h.b16 %v2893
    %v3246 = vunpack.c.l.b16 %v2894
    %v3247 = vunpack.c.h.b16 %v2894
    %v3248 = vunpack.c.l.b16 %v2895
    %v3249 = vunpack.c.h.b16 %v2895
    %v3250 = vunpack.c.l.b16 %v2896
    %v3251 = vunpack.c.h.b16 %v2896
    %v3252 = vunpack.c.l.b16 %v2897
    %v3253 = vunpack.c.h.b16 %v2897
    %v3254 = vunpack.c.l.b16 %v2898
    %v3255 = vunpack.c.h.b16 %v2898
    %v3256 = vunpack.c.l.b16 %v2899
    %v3257 = vunpack.c.h.b16 %v2899
    %v3258 = vunpack.c.l.b16 %v2900
    %v3259 = vunpack.c.h.b16 %v2900
    %v3260 = vunpack.c.l.b16 %v2901
    %v3261 = vunpack.c.h.b16 %v2901
    %v3262 = vunpack.c.l.b16 %v2902
    %v3263 = vunpack.c.h.b16 %v2902
    %v3264 = vunpack.c.l.b16 %v2903
    %v3265 = vunpack.c.h.b16 %v2903
    %v3266 = vunpack.c.l.b16 %v2904
    %v3267 = vunpack.c.h.b16 %v2904
    %v3268 = vunpack.c.l.b16 %v2905
    %v3269 = vunpack.c.h.b16 %v2905
    %v3270 = vunpack.c.l.b16 %v2906
    %v3271 = vunpack.c.h.b16 %v2906
    %v3272 = vunpack.c.l.b16 %v2907
    %v3273 = vunpack.c.h.b16 %v2907
    %v3274 = vunpack.c.l.b16 %v2908
    %v3275 = vunpack.c.h.b16 %v2908
    %v3276 = vunpack.c.l.b16 %v2909
    %v3277 = vunpack.c.h.b16 %v2909
    %v3278 = vunpack.c.l.b16 %v2910
    %v3279 = vunpack.c.h.b16 %v2910
    %v3280 = vunpack.c.l.b16 %v2911
    %v3281 = vunpack.c.h.b16 %v2911
    %v3282 = vunpack.c.l.b16 %v2912
    %v3283 = vunpack.c.h.b16 %v2912
    %v3284 = vunpack.c.l.b16 %v2913
    %v3285 = vunpack.c.h.b16 %v2913
    %v3286 = vunpack.c.l.b16 %v2914
    %v3287 = vunpack.c.h.b16 %v2914
    %v3288 = vunpack.c.l.b16 %v2915
    %v3289 = vunpack.c.h.b16 %v2915
    %v3290 = vunpack.c.l.b16 %v2916
    %v3291 = vunpack.c.h.b16 %v2916
    %v3292 = vunpack.c.l.b16 %v2917
    %v3293 = vunpack.c.h.b16 %v2917
    %v3294 = vunpack.c.l.b16 %v2918
    %v3295 = vunpack.c.h.b16 %v2918
    %v3296 = vunpack.c.l.b16 %v2919
    %v3297 = vunpack.c.h.b16 %v2919
    %v3298 = vunpack.c.l.b16 %v2920
    %v3299 = vunpack.c.h.b16 %v2920
    %v3300 = vunpack.c.l.b16 %v2921
    %v3301 = vunpack.c.h.b16 %v2921
    %v3302 = vunpack.c.l.b16 %v2922
    %v3303 = vunpack.c.h.b16 %v2922
    %v3304 = vunpack.c.l.b16 %v2923
    %v3305 = vunpack.c.h.b16 %v2923
    %v3306 = vunpack.c.l.b16 %v2924
    %v3307 = vunpack.c.h.b16 %v2924
    %v3308 = vunpack.c.l.b16 %v2925
    %v3309 = vunpack.c.h.b16 %v2925
    %v3310 = vunpack.c.l.b16 %v2926
    %v3311 = vunpack.c.h.b16 %v2926
    %v3312 = vunpack.c.l.b16 %v2927
    %v3313 = vunpack.c.h.b16 %v2927
    %v3314 = vunpack.c.l.b16 %v2928
    %v3315 = vunpack.c.h.b16 %v2928
    %v3316 = vunpack.c.l.b16 %v2929
    %v3317 = vunpack.c.h.b16 %v2929
    %v3318 = vunpack.c.l.b16 %v2930
    %v3319 = vunpack.c.h.b16 %v2930
    %v3320 = vunpack.c.l.b16 %v2931
    %v3321 = vunpack.c.h.b16 %v2931
    %v3322 = vpack.c.b16 %v3068, %v3066
    %v3323 = vpack.c.b16 %v3069, %v3067
    %v3324 = vpack.c.b16 %v3072, %v3070
    %v3325 = vpack.c.b16 %v3073, %v3071
    %v3326 = vpack.c.b16 %v3076, %v3074
    %v3327 = vpack.c.b16 %v3077, %v3075
    %v3328 = vpack.c.b16 %v3080, %v3078
    %v3329 = vpack.c.b16 %v3081, %v3079
    %v3330 = vpack.c.b16 %v3084, %v3082
    %v3331 = vpack.c.b16 %v3085, %v3083
    %v3332 = vpack.c.b16 %v3088, %v3086
    %v3333 = vpack.c.b16 %v3089, %v3087
    %v3334 = vpack.c.b16 %v3092, %v3090
    %v3335 = vpack.c.b16 %v3093, %v3091
    %v3336 = vpack.c.b16 %v3096, %v3094
    %v3337 = vpack.c.b16 %v3097, %v3095
    %v3338 = vpack.c.b16 %v3100, %v3098
    %v3339 = vpack.c.b16 %v3101, %v3099
    %v3340 = vpack.c.b16 %v3104, %v3102
    %v3341 = vpack.c.b16 %v3105, %v3103
    %v3342 = vpack.c.b16 %v3108, %v3106
    %v3343 = vpack.c.b16 %v3109, %v3107
    %v3344 = vpack.c.b16 %v3112, %v3110
    %v3345 = vpack.c.b16 %v3113, %v3111
    %v3346 = vpack.c.b16 %v3116, %v3114
    %v3347 = vpack.c.b16 %v3117, %v3115
    %v3348 = vpack.c.b16 %v3120, %v3118
    %v3349 = vpack.c.b16 %v3121, %v3119
    %v3350 = vpack.c.b16 %v3124, %v3122
    %v3351 = vpack.c.b16 %v3125, %v3123
    %v3352 = vpack.c.b16 %v3128, %v3126
    %v3353 = vpack.c.b16 %v3129, %v3127
    %v3354 = vpack.c.b16 %v3132, %v3130
    %v3355 = vpack.c.b16 %v3133, %v3131
    %v3356 = vpack.c.b16 %v3136, %v3134
    %v3357 = vpack.c.b16 %v3137, %v3135
    %v3358 = vpack.c.b16 %v3140, %v3138
    %v3359 = vpack.c.b16 %v3141, %v3139
    %v3360 = vpack.c.b16 %v3144, %v3142
    %v3361 = vpack.c.b16 %v3145, %v3143
    %v3362 = vpack.c.b16 %v3148, %v3146
    %v3363 = vpack.c.b16 %v3149, %v3147
    %v3364 = vpack.c.b16 %v3152, %v3150
    %v3365 = vpack.c.b16 %v3153, %v3151
    %v3366 = vpack.c.b16 %v3156, %v3154
    %v3367 = vpack.c.b16 %v3157, %v3155
    %v3368 = vpack.c.b16 %v3160, %v3158
    %v3369 = vpack.c.b16 %v3161, %v3159
    %v3370 = vpack.c.b16 %v3164, %v3162
    %v3371 = vpack.c.b16 %v3165, %v3163
    %v3372 = vpack.c.b16 %v3168, %v3166
    %v3373 = vpack.c.b16 %v3169, %v3167
    %v3374 = vpack.c.b16 %v3172, %v3170
    %v3375 = vpack.c.b16 %v3173, %v3171
    %v3376 = vpack.c.b16 %v3176, %v3174
    %v3377 = vpack.c.b16 %v3177, %v3175
    %v3378 = vpack.c.b16 %v3180, %v3178
    %v3379 = vpack.c.b16 %v3181, %v3179
    %v3380 = vpack.c.b16 %v3184, %v3182
    %v3381 = vpack.c.b16 %v3185, %v3183
    %v3382 = vpack.c.b16 %v3188, %v3186
    %v3383 = vpack.c.b16 %v3189, %v3187
    %v3384 = vpack.c.b16 %v3192, %v3190
    %v3385 = vpack.c.b16 %v3193, %v3191
    %v3386 = vpack.c.b16 %v3196, %v3194
    %v3387 = vpack.c.b16 %v3197, %v3195
    %v3388 = vpack.c.b16 %v3200, %v3198
    %v3389 = vpack.c.b16 %v3201, %v3199
    %v3390 = vpack.c.b16 %v3204, %v3202
    %v3391 = vpack.c.b16 %v3205, %v3203
    %v3392 = vpack.c.b16 %v3208, %v3206
    %v3393 = vpack.c.b16 %v3209, %v3207
    %v3394 = vpack.c.b16 %v3212, %v3210
    %v3395 = vpack.c.b16 %v3213, %v3211
    %v3396 = vpack.c.b16 %v3216, %v3214
    %v3397 = vpack.c.b16 %v3217, %v3215
    %v3398 = vpack.c.b16 %v3220, %v3218
    %v3399 = vpack.c.b16 %v3221, %v3219
    %v3400 = vpack.c.b16 %v3224, %v3222
    %v3401 = vpack.c.b16 %v3225, %v3223
    %v3402 = vpack.c.b16 %v3228, %v3226
    %v3403 = vpack.c.b16 %v3229, %v3227
    %v3404 = vpack.c.b16 %v3232, %v3230
    %v3405 = vpack.c.b16 %v3233, %v3231
    %v3406 = vpack.c.b16 %v3236, %v3234
    %v3407 = vpack.c.b16 %v3237, %v3235
    %v3408 = vpack.c.b16 %v3240, %v3238
    %v3409 = vpack.c.b16 %v3241, %v3239
    %v3410 = vpack.c.b16 %v3244, %v3242
    %v3411 = vpack.c.b16 %v3245, %v3243
    %v3412 = vpack.c.b16 %v3248, %v3246
    %v3413 = vpack.c.b16 %v3249, %v3247
    %v3414 = vpack.c.b16 %v3252, %v3250
    %v3415 = vpack.c.b16 %v3253, %v3251
    %v3416 = vpack.c.b16 %v3256, %v3254
    %v3417 = vpack.c.b16 %v3257, %v3255
    %v3418 = vpack.c.b16 %v3260, %v3258
    %v3419 = vpack.c.b16 %v3261, %v3259
    %v3420 = vpack.c.b16 %v3264, %v3262
    %v3421 = vpack.c.b16 %v3265, %v3263
    %v3422 = vpack.c.b16 %v3268, %v3266
    %v3423 = vpack.c.b16 %v3269, %v3267
    %v3424 = vpack.c.b16 %v3272, %v3270
    %v3425 = vpack.c.b16 %v3273, %v3271
    %v3426 = vpack.c.b16 %v3276, %v3274
    %v3427 = vpack.c.b16 %v3277, %v3275
    %v3428 = vpack.c.b16 %v3280, %v3278
    %v3429 = vpack.c.b16 %v3281, %v3279
    %v3430 = vpack.c.b16 %v3284, %v3282
    %v3431 = vpack.c.b16 %v3285, %v3283
    %v3432 = vpack.c.b16 %v3288, %v3286
    %v3433 = vpack.c.b16 %v3289, %v3287
    %v3434 = vpack.c.b16 %v3292, %v3290
    %v3435 = vpack.c.b16 %v3293, %v3291
    %v3436 = vpack.c.b16 %v3296, %v3294
    %v3437 = vpack.c.b16 %v3297, %v3295
    %v3438 = vpack.c.b16 %v3300, %v3298
    %v3439 = vpack.c.b16 %v3301, %v3299
    %v3440 = vpack.c.b16 %v3304, %v3302
    %v3441 = vpack.c.b16 %v3305, %v3303
    %v3442 = vpack.c.b16 %v3308, %v3306
    %v3443 = vpack.c.b16 %v3309, %v3307
    %v3444 = vpack.c.b16 %v3312, %v3310
    %v3445 = vpack.c.b16 %v3313, %v3311
    %v3446 = vpack.c.b16 %v3316, %v3314
    %v3447 = vpack.c.b16 %v3317, %v3315
    %v3448 = vpack.c.b16 %v3320, %v3318
    %v3449 = vpack.c.b16 %v3321, %v3319
    %3578 = vmatpush.bf16.msra.mxu0 %v3336
    %3579 = vmatpush.bf16.msra.mxu0 %v3334
    %3580 = vmatpush.bf16.msra.mxu0 %v3332
    %3581 = vmatpush.bf16.msra.mxu0 %v3330
    %3582 = vmatpush.bf16.msra.mxu0 %v3328
    %3583 = vmatpush.bf16.msra.mxu0 %v3326
    %3584 = vmatpush.bf16.msra.mxu0 %v3324
    %3585 = vmatpush.bf16.msra.mxu0 %v3322
    %3586 = vmatmul.bf16.gmra.mxu0 %v2796
    %v3587 = vpop.f32.mrf.mxu0
    %v3588 = vadd.f32 %v2934, %v3587
    %v3589 = vpop.f32.mrf.mxu0
    %v3590 = vadd.f32 %v2934, %v3589
    %3591 = vdwg.mxu0
    %3592 = vmatpush.bf16.msra.mxu0 %v3352
    %3593 = vmatpush.bf16.msra.mxu0 %v3350
    %3594 = vmatpush.bf16.msra.mxu0 %v3348
    %3595 = vmatpush.bf16.msra.mxu0 %v3346
    %3596 = vmatpush.bf16.msra.mxu0 %v3344
    %3597 = vmatpush.bf16.msra.mxu0 %v3342
    %3598 = vmatpush.bf16.msra.mxu0 %v3340
    %3599 = vmatpush.bf16.msra.mxu0 %v3338
    %3600 = vmatmul.bf16.gmra.mxu0 %v2797
    %v3601 = vpop.f32.mrf.mxu0
    %v3602 = vadd.f32 %v3588, %v3601
    %v3603 = vpop.f32.mrf.mxu0
    %v3604 = vadd.f32 %v3590, %v3603
    %3605 = vdwg.mxu0
    %3606 = vmatpush.bf16.msra.mxu0 %v3368
    %3607 = vmatpush.bf16.msra.mxu0 %v3366
    %3608 = vmatpush.bf16.msra.mxu0 %v3364
    %3609 = vmatpush.bf16.msra.mxu0 %v3362
    %3610 = vmatpush.bf16.msra.mxu0 %v3360
    %3611 = vmatpush.bf16.msra.mxu0 %v3358
    %3612 = vmatpush.bf16.msra.mxu0 %v3356
    %3613 = vmatpush.bf16.msra.mxu0 %v3354
    %3614 = vmatmul.bf16.gmra.mxu0 %v2798
    %v3615 = vpop.f32.mrf.mxu0
    %v3616 = vadd.f32 %v3602, %v3615
    %v3617 = vpop.f32.mrf.mxu0
    %v3618 = vadd.f32 %v3604, %v3617
    %3619 = vdwg.mxu0
    %3620 = vmatpush.bf16.msra.mxu0 %v3384
    %3621 = vmatpush.bf16.msra.mxu0 %v3382
    %3622 = vmatpush.bf16.msra.mxu0 %v3380
    %3623 = vmatpush.bf16.msra.mxu0 %v3378
    %3624 = vmatpush.bf16.msra.mxu0 %v3376
    %3625 = vmatpush.bf16.msra.mxu0 %v3374
    %3626 = vmatpush.bf16.msra.mxu0 %v3372
    %3627 = vmatpush.bf16.msra.mxu0 %v3370
    %3628 = vmatmul.bf16.gmra.mxu0 %v2799
    %v3629 = vpop.f32.mrf.mxu0
    %v3630 = vadd.f32 %v3616, %v3629
    %v3631 = vpop.f32.mrf.mxu0
    %v3632 = vadd.f32 %v3618, %v3631
    %3633 = vdwg.mxu0
    %3634 = vmatpush.bf16.msra.mxu0 %v3400
    %3635 = vmatpush.bf16.msra.mxu0 %v3398
    %3636 = vmatpush.bf16.msra.mxu0 %v3396
    %3637 = vmatpush.bf16.msra.mxu0 %v3394
    %3638 = vmatpush.bf16.msra.mxu0 %v3392
    %3639 = vmatpush.bf16.msra.mxu0 %v3390
    %3640 = vmatpush.bf16.msra.mxu0 %v3388
    %3641 = vmatpush.bf16.msra.mxu0 %v3386
    %3642 = vmatmul.bf16.gmra.mxu0 %v2800
    %v3643 = vpop.f32.mrf.mxu0
    %v3644 = vadd.f32 %v3630, %v3643
    %v3645 = vpop.f32.mrf.mxu0
    %v3646 = vadd.f32 %v3632, %v3645
    %3647 = vdwg.mxu0
    %3648 = vmatpush.bf16.msra.mxu0 %v3416
    %3649 = vmatpush.bf16.msra.mxu0 %v3414
    %3650 = vmatpush.bf16.msra.mxu0 %v3412
    %3651 = vmatpush.bf16.msra.mxu0 %v3410
    %3652 = vmatpush.bf16.msra.mxu0 %v3408
    %3653 = vmatpush.bf16.msra.mxu0 %v3406
    %3654 = vmatpush.bf16.msra.mxu0 %v3404
    %3655 = vmatpush.bf16.msra.mxu0 %v3402
    %3656 = vmatmul.bf16.gmra.mxu0 %v2801
    %v3657 = vpop.f32.mrf.mxu0
    %v3658 = vadd.f32 %v3644, %v3657
    %v3659 = vpop.f32.mrf.mxu0
    %v3660 = vadd.f32 %v3646, %v3659
    %3661 = vdwg.mxu0
    %3662 = vmatpush.bf16.msra.mxu0 %v3432
    %3663 = vmatpush.bf16.msra.mxu0 %v3430
    %3664 = vmatpush.bf16.msra.mxu0 %v3428
    %3665 = vmatpush.bf16.msra.mxu0 %v3426
    %3666 = vmatpush.bf16.msra.mxu0 %v3424
    %3667 = vmatpush.bf16.msra.mxu0 %v3422
    %3668 = vmatpush.bf16.msra.mxu0 %v3420
    %3669 = vmatpush.bf16.msra.mxu0 %v3418
    %3670 = vmatmul.bf16.gmra.mxu0 %v2802
    %v3671 = vpop.f32.mrf.mxu0
    %v3672 = vadd.f32 %v3658, %v3671
    %v3673 = vpop.f32.mrf.mxu0
    %v3674 = vadd.f32 %v3660, %v3673
    %3675 = vdwg.mxu0
    %3676 = vmatpush.bf16.msra.mxu0 %v3448
    %3677 = vmatpush.bf16.msra.mxu0 %v3446
    %3678 = vmatpush.bf16.msra.mxu0 %v3444
    %3679 = vmatpush.bf16.msra.mxu0 %v3442
    %3680 = vmatpush.bf16.msra.mxu0 %v3440
    %3681 = vmatpush.bf16.msra.mxu0 %v3438
    %3682 = vmatpush.bf16.msra.mxu0 %v3436
    %3683 = vmatpush.bf16.msra.mxu0 %v3434
    %3684 = vmatmul.bf16.gmra.mxu0 %v2803
    %v3685 = vpop.f32.mrf.mxu0
    %v3686 = vadd.f32 %v3672, %v3685
    %v3687 = vpop.f32.mrf.mxu0
    %v3688 = vadd.f32 %v3674, %v3687
    %3689 = vdwg.mxu0
    %3690 = vmatpush.bf16.msra.mxu0 %v3337
    %3691 = vmatpush.bf16.msra.mxu0 %v3335
    %3692 = vmatpush.bf16.msra.mxu0 %v3333
    %3693 = vmatpush.bf16.msra.mxu0 %v3331
    %3694 = vmatpush.bf16.msra.mxu0 %v3329
    %3695 = vmatpush.bf16.msra.mxu0 %v3327
    %3696 = vmatpush.bf16.msra.mxu0 %v3325
    %3697 = vmatpush.bf16.msra.mxu0 %v3323
    %3698 = vmatmul.bf16.gmra.mxu0 %v2796
    %v3699 = vpop.f32.mrf.mxu0
    %v3700 = vadd.f32 %v2935, %v3699
    %v3701 = vpop.f32.mrf.mxu0
    %v3702 = vadd.f32 %v2935, %v3701
    %3703 = vdwg.mxu0
    %3704 = vmatpush.bf16.msra.mxu0 %v3353
    %3705 = vmatpush.bf16.msra.mxu0 %v3351
    %3706 = vmatpush.bf16.msra.mxu0 %v3349
    %3707 = vmatpush.bf16.msra.mxu0 %v3347
    %3708 = vmatpush.bf16.msra.mxu0 %v3345
    %3709 = vmatpush.bf16.msra.mxu0 %v3343
    %3710 = vmatpush.bf16.msra.mxu0 %v3341
    %3711 = vmatpush.bf16.msra.mxu0 %v3339
    %3712 = vmatmul.bf16.gmra.mxu0 %v2797
    %v3713 = vpop.f32.mrf.mxu0
    %v3714 = vadd.f32 %v3700, %v3713
    %v3715 = vpop.f32.mrf.mxu0
    %v3716 = vadd.f32 %v3702, %v3715
    %3717 = vdwg.mxu0
    %3718 = vmatpush.bf16.msra.mxu0 %v3369
    %3719 = vmatpush.bf16.msra.mxu0 %v3367
    %3720 = vmatpush.bf16.msra.mxu0 %v3365
    %3721 = vmatpush.bf16.msra.mxu0 %v3363
    %3722 = vmatpush.bf16.msra.mxu0 %v3361
    %3723 = vmatpush.bf16.msra.mxu0 %v3359
    %3724 = vmatpush.bf16.msra.mxu0 %v3357
    %3725 = vmatpush.bf16.msra.mxu0 %v3355
    %3726 = vmatmul.bf16.gmra.mxu0 %v2798
    %v3727 = vpop.f32.mrf.mxu0
    %v3728 = vadd.f32 %v3714, %v3727
    %v3729 = vpop.f32.mrf.mxu0
    %v3730 = vadd.f32 %v3716, %v3729
    %3731 = vdwg.mxu0
    %3732 = vmatpush.bf16.msra.mxu0 %v3385
    %3733 = vmatpush.bf16.msra.mxu0 %v3383
    %3734 = vmatpush.bf16.msra.mxu0 %v3381
    %3735 = vmatpush.bf16.msra.mxu0 %v3379
    %3736 = vmatpush.bf16.msra.mxu0 %v3377
    %3737 = vmatpush.bf16.msra.mxu0 %v3375
    %3738 = vmatpush.bf16.msra.mxu0 %v3373
    %3739 = vmatpush.bf16.msra.mxu0 %v3371
    %3740 = vmatmul.bf16.gmra.mxu0 %v2799
    %v3741 = vpop.f32.mrf.mxu0
    %v3742 = vadd.f32 %v3728, %v3741
    %v3743 = vpop.f32.mrf.mxu0
    %v3744 = vadd.f32 %v3730, %v3743
    %3745 = vdwg.mxu0
    %3746 = vmatpush.bf16.msra.mxu0 %v3401
    %3747 = vmatpush.bf16.msra.mxu0 %v3399
    %3748 = vmatpush.bf16.msra.mxu0 %v3397
    %3749 = vmatpush.bf16.msra.mxu0 %v3395
    %3750 = vmatpush.bf16.msra.mxu0 %v3393
    %3751 = vmatpush.bf16.msra.mxu0 %v3391
    %3752 = vmatpush.bf16.msra.mxu0 %v3389
    %3753 = vmatpush.bf16.msra.mxu0 %v3387
    %3754 = vmatmul.bf16.gmra.mxu0 %v2800
    %v3755 = vpop.f32.mrf.mxu0
    %v3756 = vadd.f32 %v3742, %v3755
    %v3757 = vpop.f32.mrf.mxu0
    %v3758 = vadd.f32 %v3744, %v3757
    %3759 = vdwg.mxu0
    %3760 = vmatpush.bf16.msra.mxu0 %v3417
    %3761 = vmatpush.bf16.msra.mxu0 %v3415
    %3762 = vmatpush.bf16.msra.mxu0 %v3413
    %3763 = vmatpush.bf16.msra.mxu0 %v3411
    %3764 = vmatpush.bf16.msra.mxu0 %v3409
    %3765 = vmatpush.bf16.msra.mxu0 %v3407
    %3766 = vmatpush.bf16.msra.mxu0 %v3405
    %3767 = vmatpush.bf16.msra.mxu0 %v3403
    %3768 = vmatmul.bf16.gmra.mxu0 %v2801
    %v3769 = vpop.f32.mrf.mxu0
    %v3770 = vadd.f32 %v3756, %v3769
    %v3771 = vpop.f32.mrf.mxu0
    %v3772 = vadd.f32 %v3758, %v3771
    %3773 = vdwg.mxu0
    %3774 = vmatpush.bf16.msra.mxu0 %v3433
    %3775 = vmatpush.bf16.msra.mxu0 %v3431
    %3776 = vmatpush.bf16.msra.mxu0 %v3429
    %3777 = vmatpush.bf16.msra.mxu0 %v3427
    %3778 = vmatpush.bf16.msra.mxu0 %v3425
    %3779 = vmatpush.bf16.msra.mxu0 %v3423
    %3780 = vmatpush.bf16.msra.mxu0 %v3421
    %3781 = vmatpush.bf16.msra.mxu0 %v3419
    %3782 = vmatmul.bf16.gmra.mxu0 %v2802
    %v3783 = vpop.f32.mrf.mxu0
    %v3784 = vadd.f32 %v3770, %v3783
    %v3785 = vpop.f32.mrf.mxu0
    %v3786 = vadd.f32 %v3772, %v3785
    %3787 = vdwg.mxu0
    %3788 = vmatpush.bf16.msra.mxu0 %v3449
    %3789 = vmatpush.bf16.msra.mxu0 %v3447
    %3790 = vmatpush.bf16.msra.mxu0 %v3445
    %3791 = vmatpush.bf16.msra.mxu0 %v3443
    %3792 = vmatpush.bf16.msra.mxu0 %v3441
    %3793 = vmatpush.bf16.msra.mxu0 %v3439
    %3794 = vmatpush.bf16.msra.mxu0 %v3437
    %3795 = vmatpush.bf16.msra.mxu0 %v3435
    %3796 = vmatmul.bf16.gmra.mxu0 %v2803
    %v3797 = vpop.f32.mrf.mxu0
    %v3798 = vadd.f32 %v3784, %v3797
    %v3799 = vpop.f32.mrf.mxu0
    %v3800 = vadd.f32 %v3786, %v3799
    %3801 = vdwg.mxu0
    %v3802 = vadd.f32 %v1578, %v3686
    %v3803 = vadd.f32 %v1760, %v3798
    %v3804 = vadd.f32 %v1580, %v3688
    %v3805 = vadd.f32 %v1762, %v3800
    %s3806 = sadd.s32 %s61, 16
    %p3807 = scmp.le.s32.totalorder %s3806, 8
    // Predicated region
    $region38: #{simplenet_forward.1} parent=36 // pred_check
      %p3808 = pneg %p3807
    $region39: #{simplenet_forward.1} parent=36 // pred_check_branch
      %3810 = sbr.rel (%p3808) target = $region41
    $region40: #{simplenet_forward.1} parent=36 // pred_region
      %v3811 = vld [vmem:[%s7] sm:$0x3]
      %v3812 = vadd.f32 %v3802, %v3804
      %v3813 = vrot.slane %v3812, 4
      %v3814 = vadd.f32 %v3812, %v3813
      %v3815 = vrot.slane %v3814, 2
      %v3816 = vadd.f32 %v3814, %v3815
      %v3817 = vrot.slane %v3816, 1
      %v3818 = vadd.f32 %v3816, %v3817
      %v3819 = vadd.f32 %v3803, %v3805
      %v3820 = vrot.slane %v3819, 4
      %v3821 = vadd.f32 %v3819, %v3820
      %v3822 = vrot.slane %v3821, 2
      %v3823 = vadd.f32 %v3821, %v3822
      %v3824 = vrot.slane %v3823, 1
      %v3825 = vadd.f32 %v3823, %v3824
      %v3828 = vrot.slane %v3825, 7
      %vm3829 = vcmask 1040384
      %v3830 = vsel %vm3829, %v3818, %v3828
      %v3832 = vadd.f32 %v3811, %v3830
      %v3833 = vlaneseq
      %vm3834 = vcmp.ge.s32.totalorder %v3833, 0
      %vm3835 = vcmp.lt.s32.totalorder %v3833, 256
      %vm3836 = vmand %vm3834, %vm3835
      %3837 = vst.msk [vmem:[%s7] sm:$0x3] %vm3836, %v3832
    $region41: #{simplenet_forward.1} parent=36 // pred_fallthru
      _
    %p3838 = scmp.gt.s32.totalorder %s3806, 8
    // Predicated region
    $region42: #{simplenet_forward.1} parent=36 // pred_check
      %p3839 = pneg %p3838
    $region43: #{simplenet_forward.1} parent=36 // pred_check_branch
      %3841 = sbr.rel (%p3839) target = $region45
    $region44: #{simplenet_forward.1} parent=36 // pred_region
      %v3842 = vlaneseq
      %v3843 = vshrl.u32 %v3842, 7
      %v3844 = vadd.s32 %v3843, 8
      %v3845 = vstv %s61
      %v3846 = vadd.s32 %v3845, %v3843
      %v3847 = vadd.s32 %v3845, %v3844
      %vm3848 = vcmp.lt.s32.totalorder %v3846, 8
      %vm3849 = vcmp.lt.s32.totalorder %v3847, 8
      %v3850 = vsel %vm3848, %v3802, 0.0
      %v3851 = vsel %vm3848, %v3803, 0.0
      %v3852 = vsel %vm3849, %v3804, 0.0
      %v3853 = vsel %vm3849, %v3805, 0.0
      %v3854 = vld [vmem:[%s7] sm:$0x3]
      %v3855 = vadd.f32 %v3850, %v3852
      %v3856 = vrot.slane %v3855, 4
      %v3857 = vadd.f32 %v3855, %v3856
      %v3858 = vrot.slane %v3857, 2
      %v3859 = vadd.f32 %v3857, %v3858
      %v3860 = vrot.slane %v3859, 1
      %v3861 = vadd.f32 %v3859, %v3860
      %v3862 = vadd.f32 %v3851, %v3853
      %v3863 = vrot.slane %v3862, 4
      %v3864 = vadd.f32 %v3862, %v3863
      %v3865 = vrot.slane %v3864, 2
      %v3866 = vadd.f32 %v3864, %v3865
      %v3867 = vrot.slane %v3866, 1
      %v3868 = vadd.f32 %v3866, %v3867
      %v3871 = vrot.slane %v3868, 7
      %vm3872 = vcmask 1040384
      %v3873 = vsel %vm3872, %v3861, %v3871
      %v3875 = vadd.f32 %v3854, %v3873
      %v3876 = vlaneseq
      %vm3877 = vcmp.ge.s32.totalorder %v3876, 0
      %vm3878 = vcmp.lt.s32.totalorder %v3876, 256
      %vm3879 = vmand %vm3877, %vm3878
      %3880 = vst.msk [vmem:[%s7] sm:$0x3] %vm3879, %v3875
    $region45: #{simplenet_forward.1} parent=36 // pred_fallthru
      _
  $region37: #{simplenet_forward.1} parent=0 // pred_fallthru
    _
  // Predicated region
  $region46: #{simplenet_forward.1} parent=0 // pred_check
    _
  $region47: #{simplenet_forward.1} parent=0 // pred_check_branch
    %3882 = sbr.rel (0) target = $region49
  $region48: #{simplenet_forward.1} parent=0 // pred_region
    _
  $region49: #{simplenet_forward.1} parent=0 // pred_fallthru
    _
  // Predicated region
  $region50: #{simplenet_forward.1} parent=0 // pred_check
    _
  $region51: #{simplenet_forward.1} parent=0 // pred_check_branch
    %3884 = sbr.rel (0) target = $region53
  $region52: #{simplenet_forward.1} parent=0 // pred_region
    _
  $region53: #{simplenet_forward.1} parent=0 // pred_fallthru
    _

</llo_original>
